<compile_context>
chip_gen: v6e
topology: v6e:2x2x1
jax: 0.10.0
libtpu: 0.0.40
codegen_flags: <defaults>
</compile_context>

<pallas_src>
import functools

import jax
import jax.numpy as jnp
from jax.experimental import pallas as pl
from jax.experimental.pallas import tpu as pltpu

LANE = 128


def _pad_to_lane(n):
    return ((n + LANE - 1) // LANE) * LANE


def _default_vmem_limit():
    # Per-generation scoped-VMEM budget: ~3/4 of physical, capped at 100 MiB.
    # v5e/v6e (128 MiB) -> 96 MiB; v7x (64 MiB) -> 48 MiB; fallback -> 48 MiB.
    try:
        cap = int(pltpu.get_tpu_info().vmem_capacity_bytes)
    except Exception:  # pragma: no cover - info query unavailable
        cap = 64 * 1024 * 1024
    return min(100 * 1024 * 1024, max(32 * 1024 * 1024, (cap * 3) // 4))


_VMEM_LIMIT = _default_vmem_limit()


def _compiler_params(semantics):
    return pltpu.CompilerParams(dimension_semantics=semantics,
                                vmem_limit_bytes=_VMEM_LIMIT)


# ---------------------------------------------------------------------------
# Pallas kernels
# ---------------------------------------------------------------------------

def _first_conv_kernel(x_ref, w_ref, b_ref, o_ref, *, L, K, P):
    # x_ref: (L+2P, 8) f32 with zero halo; only channel 0 is real (Cin = 1).
    # w_ref: (K, Cout_p) f32.  b_ref: (1, Cout_p) f32.
    # o_ref: (L+2P, Cout_p) bf16 (zero halo written here so the next conv
    # kernel can consume it directly).
    Cout = o_ref.shape[-1]
    x = x_ref[...]
    wv = w_ref[...]
    # Conv1d(Cin=1) as K VPU broadcast-multiplies (outer product of the scalar
    # signal column with the k-th weight row) -- no 128x zero-padded MXU work.
    acc = x[0:L, 0:1] * wv[0:1, :]
    for k in range(1, K):
        acc = acc + x[k:k + L, 0:1] * wv[k:k + 1, :]
    y = jnp.maximum(acc + b_ref[...], 0.0)      # Conv1d + ReLU (ConvolutionBlock1D)
    zeros = jnp.zeros((P, Cout), o_ref.dtype)
    o_ref[0:P, :] = zeros
    o_ref[P:P + L, :] = y.astype(o_ref.dtype)
    o_ref[P + L:P + L + P, :] = zeros


def _res_block_kernel(x_ref, w1_ref, b1_ref, w2_ref, b2_ref, wr_ref, br_ref,
                      o_ref, hpad_ref, *, L, K, P, pool_S):
    # Fused ResNetBlock1D: conv1+ReLU -> conv2+ReLU, plus 1x1-conv skip, summed.
    # x_ref: (L+2P, Cin_p) bf16 (zero halo).
    # If pool_S is None: o_ref is (L+2P, Cout_p) bf16 (halo-padded activation).
    # Else:              o_ref is (1, pool_S*Cout_p) f32 holding the fused
    #                    AdaptiveAvgPool1d segment means, lane-contiguous.
    # hpad_ref: bf16 VMEM scratch (L+2P, Cout_p) holding the halo-padded conv1
    # output (no HBM round-trip between the two convs, no re-casts).
    Cout = w2_ref.shape[-1]
    xb = x_ref[...]                                  # already bf16, no per-tap cast

    # conv1 + ReLU (accumulator initialised by the k=0 tap: no zeros tensor)
    acc = jnp.dot(xb[0:L, :], w1_ref[0], preferred_element_type=jnp.float32)
    for k in range(1, K):
        acc += jnp.dot(xb[k:k + L, :], w1_ref[k], preferred_element_type=jnp.float32)
    h1 = jnp.maximum(acc + b1_ref[...], 0.0)

    # stage halo-padded conv1 output in VMEM (bf16)
    hzeros = jnp.zeros((P, Cout), jnp.bfloat16)
    hpad_ref[0:P, :] = hzeros
    hpad_ref[P:P + L, :] = h1.astype(jnp.bfloat16)
    hpad_ref[P + L:P + L + P, :] = hzeros
    hp = hpad_ref[...]

    # conv2 + ReLU
    acc = jnp.dot(hp[0:L, :], w2_ref[0], preferred_element_type=jnp.float32)
    for k in range(1, K):
        acc += jnp.dot(hp[k:k + L, :], w2_ref[k], preferred_element_type=jnp.float32)
    h2 = jnp.maximum(acc + b2_ref[...], 0.0)

    # 1x1-conv skip on the (unpadded) block input + residual add (f32)
    skip = jnp.dot(xb[P:P + L, :], wr_ref[...],
                   preferred_element_type=jnp.float32) + br_ref[...]
    y = h2 + skip

    if pool_S is None:
        o_ref[0:P, :] = hzeros
        o_ref[P:P + L, :] = y.astype(o_ref.dtype)
        o_ref[P + L:P + L + P, :] = hzeros
    else:
        # fused AdaptiveAvgPool1d: per-segment means written lane-contiguously
        # as (1, S*Cout) so the head does one deep matmul with no reshapes and
        # never re-reads the full activation from HBM.
        seg = L // pool_S
        inv_seg = 1.0 / float(seg)
        for s in range(pool_S):
            m = jnp.sum(y[s * seg:(s + 1) * seg, :], axis=0, keepdims=True) * inv_seg
            o_ref[:, s * Cout:(s + 1) * Cout] = m.astype(o_ref.dtype)


def _make_head_kernel(n_hidden):
    def kernel(*refs):
        # refs: pooled, (w1, b1), n_hidden * (w, b), (wf, bf), out
        x_ref = refs[0]
        w1_ref, b1_ref = refs[1], refs[2]
        wf_ref, bf_ref = refs[3 + 2 * n_hidden], refs[4 + 2 * n_hidden]
        o_ref = refs[5 + 2 * n_hidden]

        tb = x_ref.shape[0]
        scp = x_ref.shape[-1]
        # pooled means, already flattened in PyTorch's .view(-1, C*S) order
        x2 = x_ref[...].reshape(tb, scp).astype(jnp.bfloat16)

        # first LinearBlock: one deep (tb, S*Cp) x (S*Cp, D1p) matmul
        lin = jnp.dot(x2, w1_ref[...], preferred_element_type=jnp.float32) + b1_ref[...]
        lin = jnp.maximum(lin, 0.0)

        for i in range(n_hidden):                              # hidden LinearBlocks
            w_ref, b_ref = refs[3 + 2 * i], refs[4 + 2 * i]
            lin = jnp.dot(lin.astype(jnp.bfloat16), w_ref[...],
                          preferred_element_type=jnp.float32) + b_ref[...]
            lin = jnp.maximum(lin, 0.0)

        # final Linear (no activation); output lane-padded to 128 (dense stores)
        out = jnp.dot(lin.astype(jnp.bfloat16), wf_ref[...],
                      preferred_element_type=jnp.float32) + bf_ref[...]
        o_ref[...] = out.astype(o_ref.dtype)

    return kernel


# ---------------------------------------------------------------------------
# pallas_call wrappers
# ---------------------------------------------------------------------------

def _first_conv_call(x_pad, w, b, *, L, K, P):
    B, Lp, Cin_s = x_pad.shape
    Cout_p = w.shape[-1]
    kernel = functools.partial(_first_conv_kernel, L=L, K=K, P=P)
    return pl.pallas_call(
        kernel,
        out_shape=jax.ShapeDtypeStruct((B, Lp, Cout_p), jnp.bfloat16),
        grid=(B,),  # independent batch rows: pipelined + megacore-parallel
        in_specs=[
            pl.BlockSpec((None, Lp, Cin_s), lambda b_: (b_, 0, 0)),
            pl.BlockSpec((K, Cout_p), lambda b_: (0, 0)),       # stays resident
            pl.BlockSpec((1, Cout_p), lambda b_: (0, 0)),       # stays resident
        ],
        out_specs=pl.BlockSpec((None, Lp, Cout_p), lambda b_: (b_, 0, 0)),
        compiler_params=_compiler_params(("parallel",)),
    )(x_pad, w, b)


def _res_block_call(x_act, p, *, L, K, P, pool_S=None):
    B, Lp, Cin_p = x_act.shape
    Cout_p = p["w1"].shape[-1]
    kernel = functools.partial(_res_block_kernel, L=L, K=K, P=P, pool_S=pool_S)
    if pool_S is None:
        out_shape = jax.ShapeDtypeStruct((B, Lp, Cout_p), jnp.bfloat16)
        out_spec = pl.BlockSpec((None, Lp, Cout_p), lambda b_: (b_, 0, 0))
    else:
        out_shape = jax.ShapeDtypeStruct((B, 1, pool_S * Cout_p), jnp.float32)
        out_spec = pl.BlockSpec((None, 1, pool_S * Cout_p), lambda b_: (b_, 0, 0))
    return pl.pallas_call(
        kernel,
        out_shape=out_shape,
        grid=(B,),
        in_specs=[
            pl.BlockSpec((None, Lp, Cin_p), lambda b_: (b_, 0, 0)),
            pl.BlockSpec((K, Cin_p, Cout_p), lambda b_: (0, 0, 0)),
            pl.BlockSpec((1, Cout_p), lambda b_: (0, 0)),
            pl.BlockSpec((K, Cout_p, Cout_p), lambda b_: (0, 0, 0)),
            pl.BlockSpec((1, Cout_p), lambda b_: (0, 0)),
            pl.BlockSpec((Cin_p, Cout_p), lambda b_: (0, 0)),
            pl.BlockSpec((1, Cout_p), lambda b_: (0, 0)),
        ],
        out_specs=out_spec,
        scratch_shapes=[pltpu.VMEM((Lp, Cout_p), jnp.bfloat16)],
        compiler_params=_compiler_params(("parallel",)),
    )(x_act, p["w1"], p["b1"], p["w2"], p["b2"], p["wr"], p["br"])


def _head_call(pooled, hp):
    B, _, SCp = pooled.shape
    n_hidden = len(hp["hidden"])
    NT_p = hp["wf"].shape[-1]
    TB = min(B, 256)                      # batch tile; remainder handled by Pallas
    kernel = _make_head_kernel(n_hidden)

    args = [pooled, hp["w1"], hp["b1"]]
    in_specs = [
        pl.BlockSpec((TB, 1, SCp), lambda i: (i, 0, 0)),
        pl.BlockSpec(hp["w1"].shape, lambda i: (0, 0)),
        pl.BlockSpec(hp["b1"].shape, lambda i: (0, 0)),
    ]
    for w, b in hp["hidden"]:
        args += [w, b]
        in_specs += [pl.BlockSpec(w.shape, lambda i: (0, 0)),
                     pl.BlockSpec(b.shape, lambda i: (0, 0))]
    args += [hp["wf"], hp["bf"]]
    in_specs += [pl.BlockSpec(hp["wf"].shape, lambda i: (0, 0)),
                 pl.BlockSpec(hp["bf"].shape, lambda i: (0, 0))]

    return pl.pallas_call(
        kernel,
        out_shape=jax.ShapeDtypeStruct((B, NT_p), jnp.float32),
        grid=(pl.cdiv(B, TB),),
        in_specs=in_specs,
        out_specs=pl.BlockSpec((TB, NT_p), lambda i: (i, 0)),
        compiler_params=_compiler_params(("parallel",)),
    )(*args)


# ---------------------------------------------------------------------------
# Parameters: natural (PyTorch-shaped) init + packing into padded tensors
# ---------------------------------------------------------------------------

def init_bossnet_params(key, model_dim, dim_mults, kernel_size, num_targets,
                        adapt_pool_output_dim, num_linear, linear_dim):
    """Natural-shape parameters; linear weights stored transposed as (in, out)."""
    dims = [model_dim * m for m in dim_mults]
    keys = iter(jax.random.split(key, 128))

    def nrm(shape, scale=0.1):
        return scale * jax.random.normal(next(keys), shape, dtype=jnp.float32)

    params = {
        "first_conv": {"w": nrm((dims[0], 1, kernel_size)), "b": nrm((dims[0],))},
        "res_blocks": [],
        "linear": [],
    }
    for cin, cout in zip(dims[:-1], dims[1:]):
        params["res_blocks"].append({
            "w1": nrm((cout, cin, kernel_size)), "b1": nrm((cout,)),
            "w2": nrm((cout, cout, kernel_size)), "b2": nrm((cout,)),
            "wr": nrm((cout, cin, 1)), "br": nrm((cout,)),
        })
    lin_in = dims[-1] * adapt_pool_output_dim
    lin_dims = [lin_in] + [linear_dim] * num_linear + [num_targets]
    for din, dout in zip(lin_dims[:-1], lin_dims[1:]):
        params["linear"].append({"w": nrm((din, dout)), "b": nrm((dout,))})
    return params


def _pack_first_conv_w(w):
    # (Cout, 1, K) -> (K, Cout_p) f32 (first conv runs on the VPU, Cin=1 only).
    Cout, _, K = w.shape
    wt = jnp.transpose(w[:, 0, :], (1, 0))                    # (K, Cout)
    return jnp.zeros((K, _pad_to_lane(Cout)), jnp.float32).at[:, :Cout].set(wt)


def _pack_conv_w(w):
    # (Cout, Cin, K) -> (K, Cin_p, Cout_p) bf16, zero-padded to 128 lanes.
    Cout, Cin, K = w.shape
    Cin_p, Cout_p = _pad_to_lane(Cin), _pad_to_lane(Cout)
    wt = jnp.transpose(w, (2, 1, 0))                          # (K, Cin, Cout)
    out = jnp.zeros((K, Cin_p, Cout_p), jnp.float32).at[:, :Cin, :Cout].set(wt)
    return out.astype(jnp.bfloat16)


def _pack_bias(b):
    n = b.shape[0]
    return jnp.zeros((1, _pad_to_lane(n)), jnp.float32).at[0, :n].set(b)


def _pack_linear_w(w):
    din, dout = w.shape
    out = jnp.zeros((_pad_to_lane(din), _pad_to_lane(dout)),
                    jnp.float32).at[:din, :dout].set(w)
    return out.astype(jnp.bfloat16)


def _pack_first_linear_w(w, c_last, S):
    # w: (c_last*S, D1) with PyTorch input index c*S + s (from .view(-1, C*S)).
    # Re-permute / pad to (S*Cp, D1p) with row index s*Cp + c so the head can do
    # a single deep matmul against the pooled (B, S*Cp) input -- no in-kernel
    # transpose / reshape.  Padded rows are zero (pooled padded lanes are zero).
    D1 = w.shape[1]
    Cp = _pad_to_lane(c_last)
    w3 = jnp.transpose(w.reshape(c_last, S, D1), (1, 0, 2))   # (S, c_last, D1)
    out = jnp.zeros((S, Cp, _pad_to_lane(D1)), jnp.float32).at[:, :c_last, :D1].set(w3)
    return out.reshape(S * Cp, _pad_to_lane(D1)).astype(jnp.bfloat16)


def pack_params(params, *, adapt_pool_output_dim):
    assert params["res_blocks"], "BossNet requires at least two dim_mults entries"
    c_last = params["res_blocks"][-1]["w2"].shape[0]
    packed = {
        "first_conv": {"w": _pack_first_conv_w(params["first_conv"]["w"]),
                       "b": _pack_bias(params["first_conv"]["b"])},
        "res_blocks": [],
        "head": {},
    }
    for p in params["res_blocks"]:
        packed["res_blocks"].append({
            "w1": _pack_conv_w(p["w1"]), "b1": _pack_bias(p["b1"]),
            "w2": _pack_conv_w(p["w2"]), "b2": _pack_bias(p["b2"]),
            "wr": _pack_conv_w(p["wr"])[0],          # (Cin_p, Cout_p), K=1
            "br": _pack_bias(p["br"]),
        })
    lin = params["linear"]
    packed["head"]["w1"] = _pack_first_linear_w(lin[0]["w"], c_last,
                                                adapt_pool_output_dim)
    packed["head"]["b1"] = _pack_bias(lin[0]["b"])
    packed["head"]["hidden"] = [(_pack_linear_w(p["w"]), _pack_bias(p["b"]))
                                for p in lin[1:-1]]
    packed["head"]["wf"] = _pack_linear_w(lin[-1]["w"])
    packed["head"]["bf"] = _pack_bias(lin[-1]["b"])
    return packed


# ---------------------------------------------------------------------------
# Forward
# ---------------------------------------------------------------------------

def bossnet_forward(packed, x, *, kernel_size, adapt_pool_output_dim,
                    num_targets):
    # x: (B, 1, L) float32, NCW (pos_enc=False branch).
    B, Cin, L = x.shape
    K = kernel_size
    P = K // 2
    S = adapt_pool_output_dim
    assert L % S == 0, "shapes chosen so AdaptiveAvgPool1d is uniform"
    Lp = L + 2 * P

    # One-time layout glue: NCW -> channel-last with zero conv halo.  The single
    # input channel is padded only to 8 (not 128) - no 128x zero inflation.
    x_pad = jnp.zeros((B, Lp, 8), jnp.float32)
    x_pad = x_pad.at[:, P:P + L, 0].set(x[:, 0, :])

    act = _first_conv_call(x_pad, packed["first_conv"]["w"],
                           packed["first_conv"]["b"], L=L, K=K, P=P)

    blocks = packed["res_blocks"]
    for p in blocks[:-1]:
        act = _res_block_call(act, p, L=L, K=K, P=P, pool_S=None)
    # last block: AdaptiveAvgPool1d fused, emits only (B, 1, S*Cp) pooled means
    pooled = _res_block_call(act, blocks[-1], L=L, K=K, P=P, pool_S=S)

    out_padded = _head_call(pooled, packed["head"])
    return out_padded[:, :num_targets]


# ---------------------------------------------------------------------------
# Demo
# ---------------------------------------------------------------------------

if __name__ == "__main__":
    key = jax.random.PRNGKey(0)
    k_param, k_x = jax.random.split(key)

    # Small, forward-consistent shapes.
    B, L = 2, 16
    model_dim, dim_mults = 4, (1, 2, 4)       # channels: 4 -> 8 -> 16
    kernel_size, num_targets = 3, 3
    adapt_pool_output_dim, num_linear, linear_dim = 4, 2, 32

    params = init_bossnet_params(k_param, model_dim, dim_mults, kernel_size,
                                 num_targets, adapt_pool_output_dim,
                                 num_linear, linear_dim)
    packed = pack_params(params, adapt_pool_output_dim=adapt_pool_output_dim)
    x = jax.random.normal(k_x, (B, 1, L), dtype=jnp.float32)

    fwd = jax.jit(functools.partial(bossnet_forward,
                                    kernel_size=kernel_size,
                                    adapt_pool_output_dim=adapt_pool_output_dim,
                                    num_targets=num_targets))
    out = fwd(packed, x)
    jax.block_until_ready(out)
    assert out.shape == (B, num_targets)
    assert out.dtype == jnp.float32
    print("KERNEL_OK")
</pallas_src>

<mosaic_0001>
module attributes {stable_mosaic.version = 11 : i64} {
  func.func @_first_conv_kernel(%arg0: i32, %arg1: memref<1x18x8xf32, #tpu.memory_space<vmem>>, %arg2: memref<3x128xf32, #tpu.memory_space<vmem>>, %arg3: memref<1x128xf32, #tpu.memory_space<vmem>>, %arg4: memref<1x18x128xbf16, #tpu.memory_space<vmem>>) attributes {dimension_semantics = [#tpu.dimension_semantics<parallel>], iteration_bounds = array<i64: 2>, scalar_prefetch = 0 : i64, scratch_operands = 0 : i64, tpu.core_type = #tpu.core_type<tc>, window_params = [{transform_indices = @transform_0, window_bounds = array<i64: 1, 18, 8>}, {pipeline_mode = #tpu.pipeline_mode<synchronous>, transform_indices = @transform_1, window_bounds = array<i64: 3, 128>}, {pipeline_mode = #tpu.pipeline_mode<synchronous>, transform_indices = @transform_2, window_bounds = array<i64: 1, 128>}, {transform_indices = @transform_3, window_bounds = array<i64: 1, 18, 128>}]} {
    %c0 = arith.constant 0 : index
    %c0_0 = arith.constant 0 : index
    %c0_1 = arith.constant 0 : index
    %0 = vector.load %arg1[%c0, %c0_0, %c0_1] : memref<1x18x8xf32, #tpu.memory_space<vmem>>, vector<1x18x8xf32>
    %1 = vector.shape_cast %0 : vector<1x18x8xf32> to vector<18x8xf32>
    %c0_2 = arith.constant 0 : index
    %c0_3 = arith.constant 0 : index
    %2 = vector.load %arg2[%c0_2, %c0_3] : memref<3x128xf32, #tpu.memory_space<vmem>>, vector<3x128xf32>
    %3 = vector.extract_strided_slice %1 {offsets = [0, 0], sizes = [16, 1], strides = [1, 1]} : vector<18x8xf32> to vector<16x1xf32>
    %4 = vector.extract_strided_slice %2 {offsets = [0, 0], sizes = [1, 128], strides = [1, 1]} : vector<3x128xf32> to vector<1x128xf32>
    %5 = vector.broadcast %3 : vector<16x1xf32> to vector<16x128xf32>
    %6 = vector.broadcast %4 : vector<1x128xf32> to vector<16x128xf32>
    %7 = arith.mulf %5, %6 : vector<16x128xf32>
    %8 = vector.extract_strided_slice %1 {offsets = [1, 0], sizes = [16, 1], strides = [1, 1]} : vector<18x8xf32> to vector<16x1xf32>
    %9 = vector.extract_strided_slice %2 {offsets = [1, 0], sizes = [1, 128], strides = [1, 1]} : vector<3x128xf32> to vector<1x128xf32>
    %10 = vector.broadcast %8 : vector<16x1xf32> to vector<16x128xf32>
    %11 = vector.broadcast %9 : vector<1x128xf32> to vector<16x128xf32>
    %12 = arith.mulf %10, %11 : vector<16x128xf32>
    %13 = arith.addf %7, %12 : vector<16x128xf32>
    %14 = vector.extract_strided_slice %1 {offsets = [2, 0], sizes = [16, 1], strides = [1, 1]} : vector<18x8xf32> to vector<16x1xf32>
    %15 = vector.extract_strided_slice %2 {offsets = [2, 0], sizes = [1, 128], strides = [1, 1]} : vector<3x128xf32> to vector<1x128xf32>
    %16 = vector.broadcast %14 : vector<16x1xf32> to vector<16x128xf32>
    %17 = vector.broadcast %15 : vector<1x128xf32> to vector<16x128xf32>
    %18 = arith.mulf %16, %17 : vector<16x128xf32>
    %19 = arith.addf %13, %18 : vector<16x128xf32>
    %c0_4 = arith.constant 0 : index
    %c0_5 = arith.constant 0 : index
    %20 = vector.load %arg3[%c0_4, %c0_5] : memref<1x128xf32, #tpu.memory_space<vmem>>, vector<1x128xf32>
    %21 = vector.broadcast %20 : vector<1x128xf32> to vector<16x128xf32>
    %22 = arith.addf %19, %21 : vector<16x128xf32>
    %cst = arith.constant 0.000000e+00 : f32
    %23 = vector.broadcast %cst : f32 to vector<16x128xf32>
    %24 = arith.maximumf %22, %23 : vector<16x128xf32>
    %cst_6 = arith.constant 0.000000e+00 : bf16
    %25 = vector.broadcast %cst_6 : bf16 to vector<1x128xbf16>
    %c0_7 = arith.constant 0 : index
    %c0_8 = arith.constant 0 : index
    %c0_9 = arith.constant 0 : index
    %26 = vector.load %arg4[%c0_7, %c0_8, %c0_9] : memref<1x18x128xbf16, #tpu.memory_space<vmem>>, vector<1x1x128xbf16>
    %27 = vector.shape_cast %26 : vector<1x1x128xbf16> to vector<1x128xbf16>
    %28 = vector.shape_cast %25 : vector<1x128xbf16> to vector<1x1x128xbf16>
    tpu.vector_store %arg4[%c0_7, %c0_8, %c0_9], %28 {strides = array<i32>} : memref<1x18x128xbf16, #tpu.memory_space<vmem>>, vector<1x1x128xbf16>,
    %29 = arith.truncf %24 : vector<16x128xf32> to vector<16x128xbf16>
    %c0_10 = arith.constant 0 : index
    %c1 = arith.constant 1 : index
    %c0_11 = arith.constant 0 : index
    %30 = vector.load %arg4[%c0_10, %c1, %c0_11] : memref<1x18x128xbf16, #tpu.memory_space<vmem>>, vector<1x16x128xbf16>
    %31 = vector.shape_cast %30 : vector<1x16x128xbf16> to vector<16x128xbf16>
    %32 = vector.shape_cast %29 : vector<16x128xbf16> to vector<1x16x128xbf16>
    tpu.vector_store %arg4[%c0_10, %c1, %c0_11], %32 {strides = array<i32>} : memref<1x18x128xbf16, #tpu.memory_space<vmem>>, vector<1x16x128xbf16>,
    %c0_12 = arith.constant 0 : index
    %c17 = arith.constant 17 : index
    %c0_13 = arith.constant 0 : index
    %33 = vector.load %arg4[%c0_12, %c17, %c0_13] : memref<1x18x128xbf16, #tpu.memory_space<vmem>>, vector<1x1x128xbf16>
    %34 = vector.shape_cast %33 : vector<1x1x128xbf16> to vector<1x128xbf16>
    %35 = vector.shape_cast %25 : vector<1x128xbf16> to vector<1x1x128xbf16>
    tpu.vector_store %arg4[%c0_12, %c17, %c0_13], %35 {strides = array<i32>} : memref<1x18x128xbf16, #tpu.memory_space<vmem>>, vector<1x1x128xbf16>,
    return
  }
  func.func @transform_0(%arg0: i32) -> (i32, i32, i32) {
    %c0_i32 = arith.constant 0 : i32
    %c0_i32_0 = arith.constant 0 : i32
    %c0_i32_1 = arith.constant 0 : i32
    return %arg0, %c0_i32, %c0_i32_0 : i32, i32, i32
  }
  func.func @transform_1(%arg0: i32) -> (i32, i32) {
    %c0_i32 = arith.constant 0 : i32
    %c0_i32_0 = arith.constant 0 : i32
    %c0_i32_1 = arith.constant 0 : i32
    return %c0_i32, %c0_i32_0 : i32, i32
  }
  func.func @transform_2(%arg0: i32) -> (i32, i32) {
    %c0_i32 = arith.constant 0 : i32
    %c0_i32_0 = arith.constant 0 : i32
    %c0_i32_1 = arith.constant 0 : i32
    return %c0_i32, %c0_i32_0 : i32, i32
  }
  func.func @transform_3(%arg0: i32) -> (i32, i32, i32) {
    %c0_i32 = arith.constant 0 : i32
    %c0_i32_0 = arith.constant 0 : i32
    %c0_i32_1 = arith.constant 0 : i32
    return %arg0, %c0_i32, %c0_i32_0 : i32, i32, i32
  }
}

module attributes {stable_mosaic.version = 11 : i64} {
  func.func @_res_block_kernel(%arg0: i32, %arg1: memref<1x18x128xbf16, #tpu.memory_space<vmem>>, %arg2: memref<3x128x128xbf16, #tpu.memory_space<vmem>>, %arg3: memref<1x128xf32, #tpu.memory_space<vmem>>, %arg4: memref<3x128x128xbf16, #tpu.memory_space<vmem>>, %arg5: memref<1x128xf32, #tpu.memory_space<vmem>>, %arg6: memref<128x128xbf16, #tpu.memory_space<vmem>>, %arg7: memref<1x128xf32, #tpu.memory_space<vmem>>, %arg8: memref<1x18x128xbf16, #tpu.memory_space<vmem>>, %arg9: memref<18x128xbf16, #tpu.memory_space<vmem>>) attributes {dimension_semantics = [#tpu.dimension_semantics<parallel>], iteration_bounds = array<i64: 2>, scalar_prefetch = 0 : i64, scratch_operands = 1 : i64, tpu.core_type = #tpu.core_type<tc>, window_params = [{transform_indices = @transform_0, window_bounds = array<i64: 1, 18, 128>}, {pipeline_mode = #tpu.pipeline_mode<synchronous>, transform_indices = @transform_1, window_bounds = array<i64: 3, 128, 128>}, {pipeline_mode = #tpu.pipeline_mode<synchronous>, transform_indices = @transform_2, window_bounds = array<i64: 1, 128>}, {pipeline_mode = #tpu.pipeline_mode<synchronous>, transform_indices = @transform_3, window_bounds = array<i64: 3, 128, 128>}, {pipeline_mode = #tpu.pipeline_mode<synchronous>, transform_indices = @transform_4, window_bounds = array<i64: 1, 128>}, {pipeline_mode = #tpu.pipeline_mode<synchronous>, transform_indices = @transform_5, window_bounds = array<i64: 128, 128>}, {pipeline_mode = #tpu.pipeline_mode<synchronous>, transform_indices = @transform_6, window_bounds = array<i64: 1, 128>}, {transform_indices = @transform_7, window_bounds = array<i64: 1, 18, 128>}]} {
    %c0 = arith.constant 0 : index
    %c0_0 = arith.constant 0 : index
    %c0_1 = arith.constant 0 : index
    %0 = vector.load %arg1[%c0, %c0_0, %c0_1] : memref<1x18x128xbf16, #tpu.memory_space<vmem>>, vector<1x18x128xbf16>
    %1 = vector.shape_cast %0 : vector<1x18x128xbf16> to vector<18x128xbf16>
    %2 = vector.extract_strided_slice %1 {offsets = [0, 0], sizes = [16, 128], strides = [1, 1]} : vector<18x128xbf16> to vector<16x128xbf16>
    %c0_2 = arith.constant 0 : index
    %c0_3 = arith.constant 0 : index
    %c0_4 = arith.constant 0 : index
    %3 = vector.load %arg2[%c0_2, %c0_3, %c0_4] : memref<3x128x128xbf16, #tpu.memory_space<vmem>>, vector<1x128x128xbf16>
    %4 = vector.shape_cast %3 : vector<1x128x128xbf16> to vector<128x128xbf16>
    %cst = arith.constant dense<0.000000e+00> : vector<16x128xf32>
    %5 = tpu.matmul %2, %4, %cst {dimension_numbers = #tpu.dot_dimension_numbers<[1], [0], [0], [1], [0, 0, 1, 1], [], []>} : vector<16x128xbf16>, vector<128x128xbf16>, vector<16x128xf32> -> vector<16x128xf32>
    %6 = vector.extract_strided_slice %1 {offsets = [1, 0], sizes = [16, 128], strides = [1, 1]} : vector<18x128xbf16> to vector<16x128xbf16>
    %c1 = arith.constant 1 : index
    %c0_5 = arith.constant 0 : index
    %c0_6 = arith.constant 0 : index
    %7 = vector.load %arg2[%c1, %c0_5, %c0_6] : memref<3x128x128xbf16, #tpu.memory_space<vmem>>, vector<1x128x128xbf16>
    %8 = vector.shape_cast %7 : vector<1x128x128xbf16> to vector<128x128xbf16>
    %cst_7 = arith.constant dense<0.000000e+00> : vector<16x128xf32>
    %9 = tpu.matmul %6, %8, %cst_7 {dimension_numbers = #tpu.dot_dimension_numbers<[1], [0], [0], [1], [0, 0, 1, 1], [], []>} : vector<16x128xbf16>, vector<128x128xbf16>, vector<16x128xf32> -> vector<16x128xf32>
    %10 = arith.addf %5, %9 : vector<16x128xf32>
    %11 = vector.extract_strided_slice %1 {offsets = [2, 0], sizes = [16, 128], strides = [1, 1]} : vector<18x128xbf16> to vector<16x128xbf16>
    %c2 = arith.constant 2 : index
    %c0_8 = arith.constant 0 : index
    %c0_9 = arith.constant 0 : index
    %12 = vector.load %arg2[%c2, %c0_8, %c0_9] : memref<3x128x128xbf16, #tpu.memory_space<vmem>>, vector<1x128x128xbf16>
    %13 = vector.shape_cast %12 : vector<1x128x128xbf16> to vector<128x128xbf16>
    %cst_10 = arith.constant dense<0.000000e+00> : vector<16x128xf32>
    %14 = tpu.matmul %11, %13, %cst_10 {dimension_numbers = #tpu.dot_dimension_numbers<[1], [0], [0], [1], [0, 0, 1, 1], [], []>} : vector<16x128xbf16>, vector<128x128xbf16>, vector<16x128xf32> -> vector<16x128xf32>
    %15 = arith.addf %10, %14 : vector<16x128xf32>
    %c0_11 = arith.constant 0 : index
    %c0_12 = arith.constant 0 : index
    %16 = vector.load %arg3[%c0_11, %c0_12] : memref<1x128xf32, #tpu.memory_space<vmem>>, vector<1x128xf32>
    %17 = vector.broadcast %16 : vector<1x128xf32> to vector<16x128xf32>
    %18 = arith.addf %15, %17 : vector<16x128xf32>
    %cst_13 = arith.constant 0.000000e+00 : f32
    %19 = vector.broadcast %cst_13 : f32 to vector<16x128xf32>
    %20 = arith.maximumf %18, %19 : vector<16x128xf32>
    %cst_14 = arith.constant 0.000000e+00 : bf16
    %21 = vector.broadcast %cst_14 : bf16 to vector<1x128xbf16>
    %c0_15 = arith.constant 0 : index
    %c0_16 = arith.constant 0 : index
    %22 = vector.load %arg9[%c0_15, %c0_16] : memref<18x128xbf16, #tpu.memory_space<vmem>>, vector<1x128xbf16>
    tpu.vector_store %arg9[%c0_15, %c0_16], %21 {strides = array<i32>} : memref<18x128xbf16, #tpu.memory_space<vmem>>, vector<1x128xbf16>,
    %23 = arith.truncf %20 : vector<16x128xf32> to vector<16x128xbf16>
    %c1_17 = arith.constant 1 : index
    %c0_18 = arith.constant 0 : index
    %24 = vector.load %arg9[%c1_17, %c0_18] : memref<18x128xbf16, #tpu.memory_space<vmem>>, vector<16x128xbf16>
    tpu.vector_store %arg9[%c1_17, %c0_18], %23 {strides = array<i32>} : memref<18x128xbf16, #tpu.memory_space<vmem>>, vector<16x128xbf16>,
    %c17 = arith.constant 17 : index
    %c0_19 = arith.constant 0 : index
    %25 = vector.load %arg9[%c17, %c0_19] : memref<18x128xbf16, #tpu.memory_space<vmem>>, vector<1x128xbf16>
    tpu.vector_store %arg9[%c17, %c0_19], %21 {strides = array<i32>} : memref<18x128xbf16, #tpu.memory_space<vmem>>, vector<1x128xbf16>,
    %c0_20 = arith.constant 0 : index
    %c0_21 = arith.constant 0 : index
    %26 = vector.load %arg9[%c0_20, %c0_21] : memref<18x128xbf16, #tpu.memory_space<vmem>>, vector<18x128xbf16>
    %27 = vector.extract_strided_slice %26 {offsets = [0, 0], sizes = [16, 128], strides = [1, 1]} : vector<18x128xbf16> to vector<16x128xbf16>
    %c0_22 = arith.constant 0 : index
    %c0_23 = arith.constant 0 : index
    %c0_24 = arith.constant 0 : index
    %28 = vector.load %arg4[%c0_22, %c0_23, %c0_24] : memref<3x128x128xbf16, #tpu.memory_space<vmem>>, vector<1x128x128xbf16>
    %29 = vector.shape_cast %28 : vector<1x128x128xbf16> to vector<128x128xbf16>
    %cst_25 = arith.constant dense<0.000000e+00> : vector<16x128xf32>
    %30 = tpu.matmul %27, %29, %cst_25 {dimension_numbers = #tpu.dot_dimension_numbers<[1], [0], [0], [1], [0, 0, 1, 1], [], []>} : vector<16x128xbf16>, vector<128x128xbf16>, vector<16x128xf32> -> vector<16x128xf32>
    %31 = vector.extract_strided_slice %26 {offsets = [1, 0], sizes = [16, 128], strides = [1, 1]} : vector<18x128xbf16> to vector<16x128xbf16>
    %c1_26 = arith.constant 1 : index
    %c0_27 = arith.constant 0 : index
    %c0_28 = arith.constant 0 : index
    %32 = vector.load %arg4[%c1_26, %c0_27, %c0_28] : memref<3x128x128xbf16, #tpu.memory_space<vmem>>, vector<1x128x128xbf16>
    %33 = vector.shape_cast %32 : vector<1x128x128xbf16> to vector<128x128xbf16>
    %cst_29 = arith.constant dense<0.000000e+00> : vector<16x128xf32>
    %34 = tpu.matmul %31, %33, %cst_29 {dimension_numbers = #tpu.dot_dimension_numbers<[1], [0], [0], [1], [0, 0, 1, 1], [], []>} : vector<16x128xbf16>, vector<128x128xbf16>, vector<16x128xf32> -> vector<16x128xf32>
    %35 = arith.addf %30, %34 : vector<16x128xf32>
    %36 = vector.extract_strided_slice %26 {offsets = [2, 0], sizes = [16, 128], strides = [1, 1]} : vector<18x128xbf16> to vector<16x128xbf16>
    %c2_30 = arith.constant 2 : index
    %c0_31 = arith.constant 0 : index
    %c0_32 = arith.constant 0 : index
    %37 = vector.load %arg4[%c2_30, %c0_31, %c0_32] : memref<3x128x128xbf16, #tpu.memory_space<vmem>>, vector<1x128x128xbf16>
    %38 = vector.shape_cast %37 : vector<1x128x128xbf16> to vector<128x128xbf16>
    %cst_33 = arith.constant dense<0.000000e+00> : vector<16x128xf32>
    %39 = tpu.matmul %36, %38, %cst_33 {dimension_numbers = #tpu.dot_dimension_numbers<[1], [0], [0], [1], [0, 0, 1, 1], [], []>} : vector<16x128xbf16>, vector<128x128xbf16>, vector<16x128xf32> -> vector<16x128xf32>
    %40 = arith.addf %35, %39 : vector<16x128xf32>
    %c0_34 = arith.constant 0 : index
    %c0_35 = arith.constant 0 : index
    %41 = vector.load %arg5[%c0_34, %c0_35] : memref<1x128xf32, #tpu.memory_space<vmem>>, vector<1x128xf32>
    %42 = vector.broadcast %41 : vector<1x128xf32> to vector<16x128xf32>
    %43 = arith.addf %40, %42 : vector<16x128xf32>
    %cst_36 = arith.constant 0.000000e+00 : f32
    %44 = vector.broadcast %cst_36 : f32 to vector<16x128xf32>
    %45 = arith.maximumf %43, %44 : vector<16x128xf32>
    %46 = vector.extract_strided_slice %1 {offsets = [1, 0], sizes = [16, 128], strides = [1, 1]} : vector<18x128xbf16> to vector<16x128xbf16>
    %c0_37 = arith.constant 0 : index
    %c0_38 = arith.constant 0 : index
    %47 = vector.load %arg6[%c0_37, %c0_38] : memref<128x128xbf16, #tpu.memory_space<vmem>>, vector<128x128xbf16>
    %cst_39 = arith.constant dense<0.000000e+00> : vector<16x128xf32>
    %48 = tpu.matmul %46, %47, %cst_39 {dimension_numbers = #tpu.dot_dimension_numbers<[1], [0], [0], [1], [0, 0, 1, 1], [], []>} : vector<16x128xbf16>, vector<128x128xbf16>, vector<16x128xf32> -> vector<16x128xf32>
    %c0_40 = arith.constant 0 : index
    %c0_41 = arith.constant 0 : index
    %49 = vector.load %arg7[%c0_40, %c0_41] : memref<1x128xf32, #tpu.memory_space<vmem>>, vector<1x128xf32>
    %50 = vector.broadcast %49 : vector<1x128xf32> to vector<16x128xf32>
    %51 = arith.addf %48, %50 : vector<16x128xf32>
    %52 = arith.addf %45, %51 : vector<16x128xf32>
    %c0_42 = arith.constant 0 : index
    %c0_43 = arith.constant 0 : index
    %c0_44 = arith.constant 0 : index
    %53 = vector.load %arg8[%c0_42, %c0_43, %c0_44] : memref<1x18x128xbf16, #tpu.memory_space<vmem>>, vector<1x1x128xbf16>
    %54 = vector.shape_cast %53 : vector<1x1x128xbf16> to vector<1x128xbf16>
    %55 = vector.shape_cast %21 : vector<1x128xbf16> to vector<1x1x128xbf16>
    tpu.vector_store %arg8[%c0_42, %c0_43, %c0_44], %55 {strides = array<i32>} : memref<1x18x128xbf16, #tpu.memory_space<vmem>>, vector<1x1x128xbf16>,
    %56 = arith.truncf %52 : vector<16x128xf32> to vector<16x128xbf16>
    %c0_45 = arith.constant 0 : index
    %c1_46 = arith.constant 1 : index
    %c0_47 = arith.constant 0 : index
    %57 = vector.load %arg8[%c0_45, %c1_46, %c0_47] : memref<1x18x128xbf16, #tpu.memory_space<vmem>>, vector<1x16x128xbf16>
    %58 = vector.shape_cast %57 : vector<1x16x128xbf16> to vector<16x128xbf16>
    %59 = vector.shape_cast %56 : vector<16x128xbf16> to vector<1x16x128xbf16>
    tpu.vector_store %arg8[%c0_45, %c1_46, %c0_47], %59 {strides = array<i32>} : memref<1x18x128xbf16, #tpu.memory_space<vmem>>, vector<1x16x128xbf16>,
    %c0_48 = arith.constant 0 : index
    %c17_49 = arith.constant 17 : index
    %c0_50 = arith.constant 0 : index
    %60 = vector.load %arg8[%c0_48, %c17_49, %c0_50] : memref<1x18x128xbf16, #tpu.memory_space<vmem>>, vector<1x1x128xbf16>
    %61 = vector.shape_cast %60 : vector<1x1x128xbf16> to vector<1x128xbf16>
    %62 = vector.shape_cast %21 : vector<1x128xbf16> to vector<1x1x128xbf16>
    tpu.vector_store %arg8[%c0_48, %c17_49, %c0_50], %62 {strides = array<i32>} : memref<1x18x128xbf16, #tpu.memory_space<vmem>>, vector<1x1x128xbf16>,
    return
  }
  func.func @transform_0(%arg0: i32) -> (i32, i32, i32) {
    %c0_i32 = arith.constant 0 : i32
    %c0_i32_0 = arith.constant 0 : i32
    %c0_i32_1 = arith.constant 0 : i32
    return %arg0, %c0_i32, %c0_i32_0 : i32, i32, i32
  }
  func.func @transform_1(%arg0: i32) -> (i32, i32, i32) {
    %c0_i32 = arith.constant 0 : i32
    %c0_i32_0 = arith.constant 0 : i32
    %c0_i32_1 = arith.constant 0 : i32
    %c0_i32_2 = arith.constant 0 : i32
    return %c0_i32, %c0_i32_0, %c0_i32_1 : i32, i32, i32
  }
  func.func @transform_2(%arg0: i32) -> (i32, i32) {
    %c0_i32 = arith.constant 0 : i32
    %c0_i32_0 = arith.constant 0 : i32
    %c0_i32_1 = arith.constant 0 : i32
    return %c0_i32, %c0_i32_0 : i32, i32
  }
  func.func @transform_3(%arg0: i32) -> (i32, i32, i32) {
    %c0_i32 = arith.constant 0 : i32
    %c0_i32_0 = arith.constant 0 : i32
    %c0_i32_1 = arith.constant 0 : i32
    %c0_i32_2 = arith.constant 0 : i32
    return %c0_i32, %c0_i32_0, %c0_i32_1 : i32, i32, i32
  }
  func.func @transform_4(%arg0: i32) -> (i32, i32) {
    %c0_i32 = arith.constant 0 : i32
    %c0_i32_0 = arith.constant 0 : i32
    %c0_i32_1 = arith.constant 0 : i32
    return %c0_i32, %c0_i32_0 : i32, i32
  }
  func.func @transform_5(%arg0: i32) -> (i32, i32) {
    %c0_i32 = arith.constant 0 : i32
    %c0_i32_0 = arith.constant 0 : i32
    %c0_i32_1 = arith.constant 0 : i32
    return %c0_i32, %c0_i32_0 : i32, i32
  }
  func.func @transform_6(%arg0: i32) -> (i32, i32) {
    %c0_i32 = arith.constant 0 : i32
    %c0_i32_0 = arith.constant 0 : i32
    %c0_i32_1 = arith.constant 0 : i32
    return %c0_i32, %c0_i32_0 : i32, i32
  }
  func.func @transform_7(%arg0: i32) -> (i32, i32, i32) {
    %c0_i32 = arith.constant 0 : i32
    %c0_i32_0 = arith.constant 0 : i32
    %c0_i32_1 = arith.constant 0 : i32
    return %arg0, %c0_i32, %c0_i32_0 : i32, i32, i32
  }
}

module attributes {stable_mosaic.version = 11 : i64} {
  func.func @kernel(%arg0: i32, %arg1: memref<2x1x512xf32, #tpu.memory_space<vmem>>, %arg2: memref<512x128xbf16, #tpu.memory_space<vmem>>, %arg3: memref<1x128xf32, #tpu.memory_space<vmem>>, %arg4: memref<128x128xbf16, #tpu.memory_space<vmem>>, %arg5: memref<1x128xf32, #tpu.memory_space<vmem>>, %arg6: memref<128x128xbf16, #tpu.memory_space<vmem>>, %arg7: memref<1x128xf32, #tpu.memory_space<vmem>>, %arg8: memref<2x128xf32, #tpu.memory_space<vmem>>) attributes {dimension_semantics = [#tpu.dimension_semantics<parallel>], iteration_bounds = array<i64: 1>, scalar_prefetch = 0 : i64, scratch_operands = 0 : i64, tpu.core_type = #tpu.core_type<tc>, window_params = [{transform_indices = @transform_0, window_bounds = array<i64: 2, 1, 512>}, {pipeline_mode = #tpu.pipeline_mode<synchronous>, transform_indices = @transform_1, window_bounds = array<i64: 512, 128>}, {pipeline_mode = #tpu.pipeline_mode<synchronous>, transform_indices = @transform_2, window_bounds = array<i64: 1, 128>}, {pipeline_mode = #tpu.pipeline_mode<synchronous>, transform_indices = @transform_3, window_bounds = array<i64: 128, 128>}, {pipeline_mode = #tpu.pipeline_mode<synchronous>, transform_indices = @transform_4, window_bounds = array<i64: 1, 128>}, {pipeline_mode = #tpu.pipeline_mode<synchronous>, transform_indices = @transform_5, window_bounds = array<i64: 128, 128>}, {pipeline_mode = #tpu.pipeline_mode<synchronous>, transform_indices = @transform_6, window_bounds = array<i64: 1, 128>}, {transform_indices = @transform_7, window_bounds = array<i64: 2, 128>}]} {
    %c0 = arith.constant 0 : index
    %c0_0 = arith.constant 0 : index
    %c0_1 = arith.constant 0 : index
    %0 = vector.load %arg1[%c0, %c0_0, %c0_1] : memref<2x1x512xf32, #tpu.memory_space<vmem>>, vector<2x1x512xf32>
    %1 = vector.shape_cast %0 : vector<2x1x512xf32> to vector<2x512xf32>
    %2 = arith.truncf %1 : vector<2x512xf32> to vector<2x512xbf16>
    %c0_2 = arith.constant 0 : index
    %c0_3 = arith.constant 0 : index
    %3 = vector.load %arg2[%c0_2, %c0_3] : memref<512x128xbf16, #tpu.memory_space<vmem>>, vector<512x128xbf16>
    %cst = arith.constant dense<0.000000e+00> : vector<2x128xf32>
    %4 = tpu.matmul %2, %3, %cst {dimension_numbers = #tpu.dot_dimension_numbers<[1], [0], [0], [1], [0, 0, 1, 1], [], []>} : vector<2x512xbf16>, vector<512x128xbf16>, vector<2x128xf32> -> vector<2x128xf32>
    %c0_4 = arith.constant 0 : index
    %c0_5 = arith.constant 0 : index
    %5 = vector.load %arg3[%c0_4, %c0_5] : memref<1x128xf32, #tpu.memory_space<vmem>>, vector<1x128xf32>
    %6 = vector.broadcast %5 : vector<1x128xf32> to vector<2x128xf32>
    %7 = arith.addf %4, %6 : vector<2x128xf32>
    %cst_6 = arith.constant 0.000000e+00 : f32
    %8 = vector.broadcast %cst_6 : f32 to vector<2x128xf32>
    %9 = arith.maximumf %7, %8 : vector<2x128xf32>
    %10 = arith.truncf %9 : vector<2x128xf32> to vector<2x128xbf16>
    %c0_7 = arith.constant 0 : index
    %c0_8 = arith.constant 0 : index
    %11 = vector.load %arg4[%c0_7, %c0_8] : memref<128x128xbf16, #tpu.memory_space<vmem>>, vector<128x128xbf16>
    %cst_9 = arith.constant dense<0.000000e+00> : vector<2x128xf32>
    %12 = tpu.matmul %10, %11, %cst_9 {dimension_numbers = #tpu.dot_dimension_numbers<[1], [0], [0], [1], [0, 0, 1, 1], [], []>} : vector<2x128xbf16>, vector<128x128xbf16>, vector<2x128xf32> -> vector<2x128xf32>
    %c0_10 = arith.constant 0 : index
    %c0_11 = arith.constant 0 : index
    %13 = vector.load %arg5[%c0_10, %c0_11] : memref<1x128xf32, #tpu.memory_space<vmem>>, vector<1x128xf32>
    %14 = vector.broadcast %13 : vector<1x128xf32> to vector<2x128xf32>
    %15 = arith.addf %12, %14 : vector<2x128xf32>
    %cst_12 = arith.constant 0.000000e+00 : f32
    %16 = vector.broadcast %cst_12 : f32 to vector<2x128xf32>
    %17 = arith.maximumf %15, %16 : vector<2x128xf32>
    %18 = arith.truncf %17 : vector<2x128xf32> to vector<2x128xbf16>
    %c0_13 = arith.constant 0 : index
    %c0_14 = arith.constant 0 : index
    %19 = vector.load %arg6[%c0_13, %c0_14] : memref<128x128xbf16, #tpu.memory_space<vmem>>, vector<128x128xbf16>
    %cst_15 = arith.constant dense<0.000000e+00> : vector<2x128xf32>
    %20 = tpu.matmul %18, %19, %cst_15 {dimension_numbers = #tpu.dot_dimension_numbers<[1], [0], [0], [1], [0, 0, 1, 1], [], []>} : vector<2x128xbf16>, vector<128x128xbf16>, vector<2x128xf32> -> vector<2x128xf32>
    %c0_16 = arith.constant 0 : index
    %c0_17 = arith.constant 0 : index
    %21 = vector.load %arg7[%c0_16, %c0_17] : memref<1x128xf32, #tpu.memory_space<vmem>>, vector<1x128xf32>
    %22 = vector.broadcast %21 : vector<1x128xf32> to vector<2x128xf32>
    %23 = arith.addf %20, %22 : vector<2x128xf32>
    %c0_18 = arith.constant 0 : index
    %c0_19 = arith.constant 0 : index
    %24 = vector.load %arg8[%c0_18, %c0_19] : memref<2x128xf32, #tpu.memory_space<vmem>>, vector<2x128xf32>
    tpu.vector_store %arg8[%c0_18, %c0_19], %23 {strides = array<i32>} : memref<2x128xf32, #tpu.memory_space<vmem>>, vector<2x128xf32>,
    return
  }
  func.func @transform_0(%arg0: i32) -> (i32, i32, i32) {
    %c0_i32 = arith.constant 0 : i32
    %c0_i32_0 = arith.constant 0 : i32
    %c0_i32_1 = arith.constant 0 : i32
    return %arg0, %c0_i32, %c0_i32_0 : i32, i32, i32
  }
  func.func @transform_1(%arg0: i32) -> (i32, i32) {
    %c0_i32 = arith.constant 0 : i32
    %c0_i32_0 = arith.constant 0 : i32
    %c0_i32_1 = arith.constant 0 : i32
    return %c0_i32, %c0_i32_0 : i32, i32
  }
  func.func @transform_2(%arg0: i32) -> (i32, i32) {
    %c0_i32 = arith.constant 0 : i32
    %c0_i32_0 = arith.constant 0 : i32
    %c0_i32_1 = arith.constant 0 : i32
    return %c0_i32, %c0_i32_0 : i32, i32
  }
  func.func @transform_3(%arg0: i32) -> (i32, i32) {
    %c0_i32 = arith.constant 0 : i32
    %c0_i32_0 = arith.constant 0 : i32
    %c0_i32_1 = arith.constant 0 : i32
    return %c0_i32, %c0_i32_0 : i32, i32
  }
  func.func @transform_4(%arg0: i32) -> (i32, i32) {
    %c0_i32 = arith.constant 0 : i32
    %c0_i32_0 = arith.constant 0 : i32
    %c0_i32_1 = arith.constant 0 : i32
    return %c0_i32, %c0_i32_0 : i32, i32
  }
  func.func @transform_5(%arg0: i32) -> (i32, i32) {
    %c0_i32 = arith.constant 0 : i32
    %c0_i32_0 = arith.constant 0 : i32
    %c0_i32_1 = arith.constant 0 : i32
    return %c0_i32, %c0_i32_0 : i32, i32
  }
  func.func @transform_6(%arg0: i32) -> (i32, i32) {
    %c0_i32 = arith.constant 0 : i32
    %c0_i32_0 = arith.constant 0 : i32
    %c0_i32_1 = arith.constant 0 : i32
    return %c0_i32, %c0_i32_0 : i32, i32
  }
  func.func @transform_7(%arg0: i32) -> (i32, i32) {
    %c0_i32 = arith.constant 0 : i32
    %c0_i32_0 = arith.constant 0 : i32
    return %arg0, %c0_i32 : i32, i32
  }
}

module attributes {stable_mosaic.version = 11 : i64} {
  func.func @_res_block_kernel(%arg0: i32, %arg1: memref<1x18x128xbf16, #tpu.memory_space<vmem>>, %arg2: memref<3x128x128xbf16, #tpu.memory_space<vmem>>, %arg3: memref<1x128xf32, #tpu.memory_space<vmem>>, %arg4: memref<3x128x128xbf16, #tpu.memory_space<vmem>>, %arg5: memref<1x128xf32, #tpu.memory_space<vmem>>, %arg6: memref<128x128xbf16, #tpu.memory_space<vmem>>, %arg7: memref<1x128xf32, #tpu.memory_space<vmem>>, %arg8: memref<1x1x512xf32, #tpu.memory_space<vmem>>, %arg9: memref<18x128xbf16, #tpu.memory_space<vmem>>) attributes {dimension_semantics = [#tpu.dimension_semantics<parallel>], iteration_bounds = array<i64: 2>, scalar_prefetch = 0 : i64, scratch_operands = 1 : i64, tpu.core_type = #tpu.core_type<tc>, window_params = [{transform_indices = @transform_0, window_bounds = array<i64: 1, 18, 128>}, {pipeline_mode = #tpu.pipeline_mode<synchronous>, transform_indices = @transform_1, window_bounds = array<i64: 3, 128, 128>}, {pipeline_mode = #tpu.pipeline_mode<synchronous>, transform_indices = @transform_2, window_bounds = array<i64: 1, 128>}, {pipeline_mode = #tpu.pipeline_mode<synchronous>, transform_indices = @transform_3, window_bounds = array<i64: 3, 128, 128>}, {pipeline_mode = #tpu.pipeline_mode<synchronous>, transform_indices = @transform_4, window_bounds = array<i64: 1, 128>}, {pipeline_mode = #tpu.pipeline_mode<synchronous>, transform_indices = @transform_5, window_bounds = array<i64: 128, 128>}, {pipeline_mode = #tpu.pipeline_mode<synchronous>, transform_indices = @transform_6, window_bounds = array<i64: 1, 128>}, {transform_indices = @transform_7, window_bounds = array<i64: 1, 1, 512>}]} {
    %c0 = arith.constant 0 : index
    %c0_0 = arith.constant 0 : index
    %c0_1 = arith.constant 0 : index
    %0 = vector.load %arg1[%c0, %c0_0, %c0_1] : memref<1x18x128xbf16, #tpu.memory_space<vmem>>, vector<1x18x128xbf16>
    %1 = vector.shape_cast %0 : vector<1x18x128xbf16> to vector<18x128xbf16>
    %2 = vector.extract_strided_slice %1 {offsets = [0, 0], sizes = [16, 128], strides = [1, 1]} : vector<18x128xbf16> to vector<16x128xbf16>
    %c0_2 = arith.constant 0 : index
    %c0_3 = arith.constant 0 : index
    %c0_4 = arith.constant 0 : index
    %3 = vector.load %arg2[%c0_2, %c0_3, %c0_4] : memref<3x128x128xbf16, #tpu.memory_space<vmem>>, vector<1x128x128xbf16>
    %4 = vector.shape_cast %3 : vector<1x128x128xbf16> to vector<128x128xbf16>
    %cst = arith.constant dense<0.000000e+00> : vector<16x128xf32>
    %5 = tpu.matmul %2, %4, %cst {dimension_numbers = #tpu.dot_dimension_numbers<[1], [0], [0], [1], [0, 0, 1, 1], [], []>} : vector<16x128xbf16>, vector<128x128xbf16>, vector<16x128xf32> -> vector<16x128xf32>
    %6 = vector.extract_strided_slice %1 {offsets = [1, 0], sizes = [16, 128], strides = [1, 1]} : vector<18x128xbf16> to vector<16x128xbf16>
    %c1 = arith.constant 1 : index
    %c0_5 = arith.constant 0 : index
    %c0_6 = arith.constant 0 : index
    %7 = vector.load %arg2[%c1, %c0_5, %c0_6] : memref<3x128x128xbf16, #tpu.memory_space<vmem>>, vector<1x128x128xbf16>
    %8 = vector.shape_cast %7 : vector<1x128x128xbf16> to vector<128x128xbf16>
    %cst_7 = arith.constant dense<0.000000e+00> : vector<16x128xf32>
    %9 = tpu.matmul %6, %8, %cst_7 {dimension_numbers = #tpu.dot_dimension_numbers<[1], [0], [0], [1], [0, 0, 1, 1], [], []>} : vector<16x128xbf16>, vector<128x128xbf16>, vector<16x128xf32> -> vector<16x128xf32>
    %10 = arith.addf %5, %9 : vector<16x128xf32>
    %11 = vector.extract_strided_slice %1 {offsets = [2, 0], sizes = [16, 128], strides = [1, 1]} : vector<18x128xbf16> to vector<16x128xbf16>
    %c2 = arith.constant 2 : index
    %c0_8 = arith.constant 0 : index
    %c0_9 = arith.constant 0 : index
    %12 = vector.load %arg2[%c2, %c0_8, %c0_9] : memref<3x128x128xbf16, #tpu.memory_space<vmem>>, vector<1x128x128xbf16>
    %13 = vector.shape_cast %12 : vector<1x128x128xbf16> to vector<128x128xbf16>
    %cst_10 = arith.constant dense<0.000000e+00> : vector<16x128xf32>
    %14 = tpu.matmul %11, %13, %cst_10 {dimension_numbers = #tpu.dot_dimension_numbers<[1], [0], [0], [1], [0, 0, 1, 1], [], []>} : vector<16x128xbf16>, vector<128x128xbf16>, vector<16x128xf32> -> vector<16x128xf32>
    %15 = arith.addf %10, %14 : vector<16x128xf32>
    %c0_11 = arith.constant 0 : index
    %c0_12 = arith.constant 0 : index
    %16 = vector.load %arg3[%c0_11, %c0_12] : memref<1x128xf32, #tpu.memory_space<vmem>>, vector<1x128xf32>
    %17 = vector.broadcast %16 : vector<1x128xf32> to vector<16x128xf32>
    %18 = arith.addf %15, %17 : vector<16x128xf32>
    %cst_13 = arith.constant 0.000000e+00 : f32
    %19 = vector.broadcast %cst_13 : f32 to vector<16x128xf32>
    %20 = arith.maximumf %18, %19 : vector<16x128xf32>
    %cst_14 = arith.constant 0.000000e+00 : bf16
    %21 = vector.broadcast %cst_14 : bf16 to vector<1x128xbf16>
    %c0_15 = arith.constant 0 : index
    %c0_16 = arith.constant 0 : index
    %22 = vector.load %arg9[%c0_15, %c0_16] : memref<18x128xbf16, #tpu.memory_space<vmem>>, vector<1x128xbf16>
    tpu.vector_store %arg9[%c0_15, %c0_16], %21 {strides = array<i32>} : memref<18x128xbf16, #tpu.memory_space<vmem>>, vector<1x128xbf16>,
    %23 = arith.truncf %20 : vector<16x128xf32> to vector<16x128xbf16>
    %c1_17 = arith.constant 1 : index
    %c0_18 = arith.constant 0 : index
    %24 = vector.load %arg9[%c1_17, %c0_18] : memref<18x128xbf16, #tpu.memory_space<vmem>>, vector<16x128xbf16>
    tpu.vector_store %arg9[%c1_17, %c0_18], %23 {strides = array<i32>} : memref<18x128xbf16, #tpu.memory_space<vmem>>, vector<16x128xbf16>,
    %c17 = arith.constant 17 : index
    %c0_19 = arith.constant 0 : index
    %25 = vector.load %arg9[%c17, %c0_19] : memref<18x128xbf16, #tpu.memory_space<vmem>>, vector<1x128xbf16>
    tpu.vector_store %arg9[%c17, %c0_19], %21 {strides = array<i32>} : memref<18x128xbf16, #tpu.memory_space<vmem>>, vector<1x128xbf16>,
    %c0_20 = arith.constant 0 : index
    %c0_21 = arith.constant 0 : index
    %26 = vector.load %arg9[%c0_20, %c0_21] : memref<18x128xbf16, #tpu.memory_space<vmem>>, vector<18x128xbf16>
    %27 = vector.extract_strided_slice %26 {offsets = [0, 0], sizes = [16, 128], strides = [1, 1]} : vector<18x128xbf16> to vector<16x128xbf16>
    %c0_22 = arith.constant 0 : index
    %c0_23 = arith.constant 0 : index
    %c0_24 = arith.constant 0 : index
    %28 = vector.load %arg4[%c0_22, %c0_23, %c0_24] : memref<3x128x128xbf16, #tpu.memory_space<vmem>>, vector<1x128x128xbf16>
    %29 = vector.shape_cast %28 : vector<1x128x128xbf16> to vector<128x128xbf16>
    %cst_25 = arith.constant dense<0.000000e+00> : vector<16x128xf32>
    %30 = tpu.matmul %27, %29, %cst_25 {dimension_numbers = #tpu.dot_dimension_numbers<[1], [0], [0], [1], [0, 0, 1, 1], [], []>} : vector<16x128xbf16>, vector<128x128xbf16>, vector<16x128xf32> -> vector<16x128xf32>
    %31 = vector.extract_strided_slice %26 {offsets = [1, 0], sizes = [16, 128], strides = [1, 1]} : vector<18x128xbf16> to vector<16x128xbf16>
    %c1_26 = arith.constant 1 : index
    %c0_27 = arith.constant 0 : index
    %c0_28 = arith.constant 0 : index
    %32 = vector.load %arg4[%c1_26, %c0_27, %c0_28] : memref<3x128x128xbf16, #tpu.memory_space<vmem>>, vector<1x128x128xbf16>
    %33 = vector.shape_cast %32 : vector<1x128x128xbf16> to vector<128x128xbf16>
    %cst_29 = arith.constant dense<0.000000e+00> : vector<16x128xf32>
    %34 = tpu.matmul %31, %33, %cst_29 {dimension_numbers = #tpu.dot_dimension_numbers<[1], [0], [0], [1], [0, 0, 1, 1], [], []>} : vector<16x128xbf16>, vector<128x128xbf16>, vector<16x128xf32> -> vector<16x128xf32>
    %35 = arith.addf %30, %34 : vector<16x128xf32>
    %36 = vector.extract_strided_slice %26 {offsets = [2, 0], sizes = [16, 128], strides = [1, 1]} : vector<18x128xbf16> to vector<16x128xbf16>
    %c2_30 = arith.constant 2 : index
    %c0_31 = arith.constant 0 : index
    %c0_32 = arith.constant 0 : index
    %37 = vector.load %arg4[%c2_30, %c0_31, %c0_32] : memref<3x128x128xbf16, #tpu.memory_space<vmem>>, vector<1x128x128xbf16>
    %38 = vector.shape_cast %37 : vector<1x128x128xbf16> to vector<128x128xbf16>
    %cst_33 = arith.constant dense<0.000000e+00> : vector<16x128xf32>
    %39 = tpu.matmul %36, %38, %cst_33 {dimension_numbers = #tpu.dot_dimension_numbers<[1], [0], [0], [1], [0, 0, 1, 1], [], []>} : vector<16x128xbf16>, vector<128x128xbf16>, vector<16x128xf32> -> vector<16x128xf32>
    %40 = arith.addf %35, %39 : vector<16x128xf32>
    %c0_34 = arith.constant 0 : index
    %c0_35 = arith.constant 0 : index
    %41 = vector.load %arg5[%c0_34, %c0_35] : memref<1x128xf32, #tpu.memory_space<vmem>>, vector<1x128xf32>
    %42 = vector.broadcast %41 : vector<1x128xf32> to vector<16x128xf32>
    %43 = arith.addf %40, %42 : vector<16x128xf32>
    %cst_36 = arith.constant 0.000000e+00 : f32
    %44 = vector.broadcast %cst_36 : f32 to vector<16x128xf32>
    %45 = arith.maximumf %43, %44 : vector<16x128xf32>
    %46 = vector.extract_strided_slice %1 {offsets = [1, 0], sizes = [16, 128], strides = [1, 1]} : vector<18x128xbf16> to vector<16x128xbf16>
    %c0_37 = arith.constant 0 : index
    %c0_38 = arith.constant 0 : index
    %47 = vector.load %arg6[%c0_37, %c0_38] : memref<128x128xbf16, #tpu.memory_space<vmem>>, vector<128x128xbf16>
    %cst_39 = arith.constant dense<0.000000e+00> : vector<16x128xf32>
    %48 = tpu.matmul %46, %47, %cst_39 {dimension_numbers = #tpu.dot_dimension_numbers<[1], [0], [0], [1], [0, 0, 1, 1], [], []>} : vector<16x128xbf16>, vector<128x128xbf16>, vector<16x128xf32> -> vector<16x128xf32>
    %c0_40 = arith.constant 0 : index
    %c0_41 = arith.constant 0 : index
    %49 = vector.load %arg7[%c0_40, %c0_41] : memref<1x128xf32, #tpu.memory_space<vmem>>, vector<1x128xf32>
    %50 = vector.broadcast %49 : vector<1x128xf32> to vector<16x128xf32>
    %51 = arith.addf %48, %50 : vector<16x128xf32>
    %52 = arith.addf %45, %51 : vector<16x128xf32>
    %53 = vector.extract_strided_slice %52 {offsets = [0, 0], sizes = [4, 128], strides = [1, 1]} : vector<16x128xf32> to vector<4x128xf32>
    %cst_42 = arith.constant dense<0.000000e+00> : vector<128xf32>
    %54 = vector.multi_reduction <add>, %53, %cst_42 [0] : vector<4x128xf32> to vector<128xf32>
    %55 = vector.shape_cast %54 : vector<128xf32> to vector<1x128xf32>
    %cst_43 = arith.constant 2.500000e-01 : f32
    %56 = vector.broadcast %cst_43 : f32 to vector<1x128xf32>
    %57 = arith.mulf %55, %56 : vector<1x128xf32>
    %c0_44 = arith.constant 0 : index
    %c0_45 = arith.constant 0 : index
    %c0_46 = arith.constant 0 : index
    %58 = vector.load %arg8[%c0_44, %c0_45, %c0_46] : memref<1x1x512xf32, #tpu.memory_space<vmem>>, vector<1x1x128xf32>
    %59 = vector.shape_cast %58 : vector<1x1x128xf32> to vector<1x128xf32>
    %60 = vector.shape_cast %57 : vector<1x128xf32> to vector<1x1x128xf32>
    tpu.vector_store %arg8[%c0_44, %c0_45, %c0_46], %60 {strides = array<i32>} : memref<1x1x512xf32, #tpu.memory_space<vmem>>, vector<1x1x128xf32>,
    %61 = vector.extract_strided_slice %52 {offsets = [4, 0], sizes = [4, 128], strides = [1, 1]} : vector<16x128xf32> to vector<4x128xf32>
    %cst_47 = arith.constant dense<0.000000e+00> : vector<128xf32>
    %62 = vector.multi_reduction <add>, %61, %cst_47 [0] : vector<4x128xf32> to vector<128xf32>
    %63 = vector.shape_cast %62 : vector<128xf32> to vector<1x128xf32>
    %cst_48 = arith.constant 2.500000e-01 : f32
    %64 = vector.broadcast %cst_48 : f32 to vector<1x128xf32>
    %65 = arith.mulf %63, %64 : vector<1x128xf32>
    %c0_49 = arith.constant 0 : index
    %c0_50 = arith.constant 0 : index
    %c128 = arith.constant 128 : index
    %66 = vector.load %arg8[%c0_49, %c0_50, %c128] : memref<1x1x512xf32, #tpu.memory_space<vmem>>, vector<1x1x128xf32>
    %67 = vector.shape_cast %66 : vector<1x1x128xf32> to vector<1x128xf32>
    %68 = vector.shape_cast %65 : vector<1x128xf32> to vector<1x1x128xf32>
    tpu.vector_store %arg8[%c0_49, %c0_50, %c128], %68 {strides = array<i32>} : memref<1x1x512xf32, #tpu.memory_space<vmem>>, vector<1x1x128xf32>,
    %69 = vector.extract_strided_slice %52 {offsets = [8, 0], sizes = [4, 128], strides = [1, 1]} : vector<16x128xf32> to vector<4x128xf32>
    %cst_51 = arith.constant dense<0.000000e+00> : vector<128xf32>
    %70 = vector.multi_reduction <add>, %69, %cst_51 [0] : vector<4x128xf32> to vector<128xf32>
    %71 = vector.shape_cast %70 : vector<128xf32> to vector<1x128xf32>
    %cst_52 = arith.constant 2.500000e-01 : f32
    %72 = vector.broadcast %cst_52 : f32 to vector<1x128xf32>
    %73 = arith.mulf %71, %72 : vector<1x128xf32>
    %c0_53 = arith.constant 0 : index
    %c0_54 = arith.constant 0 : index
    %c256 = arith.constant 256 : index
    %74 = vector.load %arg8[%c0_53, %c0_54, %c256] : memref<1x1x512xf32, #tpu.memory_space<vmem>>, vector<1x1x128xf32>
    %75 = vector.shape_cast %74 : vector<1x1x128xf32> to vector<1x128xf32>
    %76 = vector.shape_cast %73 : vector<1x128xf32> to vector<1x1x128xf32>
    tpu.vector_store %arg8[%c0_53, %c0_54, %c256], %76 {strides = array<i32>} : memref<1x1x512xf32, #tpu.memory_space<vmem>>, vector<1x1x128xf32>,
    %77 = vector.extract_strided_slice %52 {offsets = [12, 0], sizes = [4, 128], strides = [1, 1]} : vector<16x128xf32> to vector<4x128xf32>
    %cst_55 = arith.constant dense<0.000000e+00> : vector<128xf32>
    %78 = vector.multi_reduction <add>, %77, %cst_55 [0] : vector<4x128xf32> to vector<128xf32>
    %79 = vector.shape_cast %78 : vector<128xf32> to vector<1x128xf32>
    %cst_56 = arith.constant 2.500000e-01 : f32
    %80 = vector.broadcast %cst_56 : f32 to vector<1x128xf32>
    %81 = arith.mulf %79, %80 : vector<1x128xf32>
    %c0_57 = arith.constant 0 : index
    %c0_58 = arith.constant 0 : index
    %c384 = arith.constant 384 : index
    %82 = vector.load %arg8[%c0_57, %c0_58, %c384] : memref<1x1x512xf32, #tpu.memory_space<vmem>>, vector<1x1x128xf32>
    %83 = vector.shape_cast %82 : vector<1x1x128xf32> to vector<1x128xf32>
    %84 = vector.shape_cast %81 : vector<1x128xf32> to vector<1x1x128xf32>
    tpu.vector_store %arg8[%c0_57, %c0_58, %c384], %84 {strides = array<i32>} : memref<1x1x512xf32, #tpu.memory_space<vmem>>, vector<1x1x128xf32>,
    return
  }
  func.func @transform_0(%arg0: i32) -> (i32, i32, i32) {
    %c0_i32 = arith.constant 0 : i32
    %c0_i32_0 = arith.constant 0 : i32
    %c0_i32_1 = arith.constant 0 : i32
    return %arg0, %c0_i32, %c0_i32_0 : i32, i32, i32
  }
  func.func @transform_1(%arg0: i32) -> (i32, i32, i32) {
    %c0_i32 = arith.constant 0 : i32
    %c0_i32_0 = arith.constant 0 : i32
    %c0_i32_1 = arith.constant 0 : i32
    %c0_i32_2 = arith.constant 0 : i32
    return %c0_i32, %c0_i32_0, %c0_i32_1 : i32, i32, i32
  }
  func.func @transform_2(%arg0: i32) -> (i32, i32) {
    %c0_i32 = arith.constant 0 : i32
    %c0_i32_0 = arith.constant 0 : i32
    %c0_i32_1 = arith.constant 0 : i32
    return %c0_i32, %c0_i32_0 : i32, i32
  }
  func.func @transform_3(%arg0: i32) -> (i32, i32, i32) {
    %c0_i32 = arith.constant 0 : i32
    %c0_i32_0 = arith.constant 0 : i32
    %c0_i32_1 = arith.constant 0 : i32
    %c0_i32_2 = arith.constant 0 : i32
    return %c0_i32, %c0_i32_0, %c0_i32_1 : i32, i32, i32
  }
  func.func @transform_4(%arg0: i32) -> (i32, i32) {
    %c0_i32 = arith.constant 0 : i32
    %c0_i32_0 = arith.constant 0 : i32
    %c0_i32_1 = arith.constant 0 : i32
    return %c0_i32, %c0_i32_0 : i32, i32
  }
  func.func @transform_5(%arg0: i32) -> (i32, i32) {
    %c0_i32 = arith.constant 0 : i32
    %c0_i32_0 = arith.constant 0 : i32
    %c0_i32_1 = arith.constant 0 : i32
    return %c0_i32, %c0_i32_0 : i32, i32
  }
  func.func @transform_6(%arg0: i32) -> (i32, i32) {
    %c0_i32 = arith.constant 0 : i32
    %c0_i32_0 = arith.constant 0 : i32
    %c0_i32_1 = arith.constant 0 : i32
    return %c0_i32, %c0_i32_0 : i32, i32
  }
  func.func @transform_7(%arg0: i32) -> (i32, i32, i32) {
    %c0_i32 = arith.constant 0 : i32
    %c0_i32_0 = arith.constant 0 : i32
    %c0_i32_1 = arith.constant 0 : i32
    return %arg0, %c0_i32, %c0_i32_0 : i32, i32, i32
  }
}

</mosaic_0001>

<llo_original>
// kernel: bossnet_forward.4
$region0: #{bossnet_forward.4}
  #allocation0 [shape = 'u32[]', space=smem, size = 0x4, offset = 0x4, fixed_abs, tag = 'smem constant byte address 0x4 - core index']
  #allocation1 [shape = 'u32[144,128]{1,0:T(1,128)}', space=vmem, size = 0x12000, scoped, tag = 'internal scratch']
  %s0 = inlined_call_operand.vmem [shape: f32[2,18,8], index: 0, kind: input, shape index: {}]
  %s1 = inlined_call_operand.hbm [shape: f32[3,128], index: 1, kind: input, shape index: {}]
  %s2 = inlined_call_operand.hbm [shape: f32[1,128], index: 2, kind: input, shape index: {}]
  %s3 = inlined_call_operand.vmem [shape: bf16[2,18,128], index: 3, kind: output, shape index: {}]
  %s4 = sld [smem:[#allocation0]]
  $region53: #{bossnet_forward.4} parent=0
    _
  %s6 = ssub.s32 1, %s4
  %s7 = scalar_select 0, %s6, %s4
  $region1: #{bossnet_forward.4} parent=0
    #allocation2 [shape = 'u8[2048]{0}', space=vmem, size = 0x800, scoped, tag = 'input window, operand 1, single buffered']
    #allocation3 [shape = 's32[2]{0}', space=sflag, size = 0x8, scoped, tag = 'scoped memory for bossnet_forward.4']
    #allocation4 [shape = 'u8[512]{0}', space=vmem, size = 0x400, scoped, tag = 'input window, operand 2, single buffered']
    #allocation5 [shape = 's32[1]{0}', space=sflag, size = 0x4, scoped, tag = 'scoped memory for bossnet_forward.4']
    %8 = vsyncpa [#allocation3], 0
    %9 = vsyncpa [#allocation5], 0
    loop: start=0, step=1, limit=4
    $region2: #{bossnet_forward.4} parent=1 // loop_pre_header
      _
    $region3: #{bossnet_forward.4} parent=1 // loop_header
      %s11 = sphi 0, %s15
      %p12 = scmp.ge.s32.totalorder %s11, 4
      %s21 = sphi 0, %s23
      %s24 = sphi 0, %s21
      %s25 = sphi 0, %s24
      %s41 = sphi 0, %s25
      %s45 = sphi 0, %s45
      %s47 = sphi 0, %s45
      %s48 = sphi 0, %s47
      %s62 = sphi 0, %s48
      %s66 = sphi 0, %s66
      %s68 = sphi 0, %s66
      %s69 = sphi 0, %s68
      %s83 = sphi 0, %s69
      %s89 = sphi 0, %s91
      %s92 = sphi 0, %s89
      %s93 = sphi 0, %s92
      %s109 = sphi 0, %s93
    $region4: #{bossnet_forward.4} parent=1 // loop_header_branch
      %14 = sbr.rel (%p12) target = $region8
    $region5: #{bossnet_forward.4} parent=1 // loop_body
      %s16 = ssub.s32 %s11, 1
      %s17 = ssub.s32 %s11, 2
      %s18 = sadd.s32 %s11, 1
      %s19 = ssub.s32 %s11, %s18
      %p20 = scmp.eq.s32.totalorder %s19, 0
      %s22 = sadd.s32 %s21, 1
      %s23 = scalar_select %p20, %s21, %s22
      %p26 = pneg %p20
      %p27 = scmp.eq.s32.totalorder %s11, 1
      %p28 = por %p26, %p27
      %p29 = scmp.ne.s32.totalorder %s21, %s24
      %p30 = scmp.eq.s32.totalorder %s11, 0
      %p31 = por %p29, %p30
      %p32 = scmp.ne.s32.totalorder %s21, %s24
      %p33 = scmp.eq.s32.totalorder %s16, 1
      %p34 = por %p32, %p33
      %p35 = scmp.ne.s32.totalorder %s24, %s25
      %p36 = scmp.eq.s32.totalorder %s16, 0
      %p37 = por %p35, %p36
      %p38 = scmp.ne.s32.totalorder %s24, %s25
      %p39 = scmp.eq.s32.totalorder %s17, 1
      %p40 = por %p38, %p39
      %p42 = scmp.ne.s32.totalorder %s25, %s41
      %p43 = scmp.eq.s32.totalorder %s17, 0
      %p44 = por %p42, %p43
      %s46 = sadd.s32 %s45, 1
      %p49 = scmp.eq.s32.totalorder %s11, 1
      %p50 = scmp.ne.s32.totalorder %s45, %s47
      %p51 = scmp.eq.s32.totalorder %s11, 0
      %p52 = por %p50, %p51
      %p53 = scmp.ne.s32.totalorder %s45, %s47
      %p54 = scmp.eq.s32.totalorder %s16, 1
      %p55 = por %p53, %p54
      %p56 = scmp.ne.s32.totalorder %s47, %s48
      %p57 = scmp.eq.s32.totalorder %s16, 0
      %p58 = por %p56, %p57
      %p59 = scmp.ne.s32.totalorder %s47, %s48
      %p60 = scmp.eq.s32.totalorder %s17, 1
      %p61 = por %p59, %p60
      %p63 = scmp.ne.s32.totalorder %s48, %s62
      %p64 = scmp.eq.s32.totalorder %s17, 0
      %p65 = por %p63, %p64
      %s67 = sadd.s32 %s66, 1
      %p70 = scmp.eq.s32.totalorder %s11, 1
      %p71 = scmp.ne.s32.totalorder %s66, %s68
      %p72 = scmp.eq.s32.totalorder %s11, 0
      %p73 = por %p71, %p72
      %p74 = scmp.ne.s32.totalorder %s66, %s68
      %p75 = scmp.eq.s32.totalorder %s16, 1
      %p76 = por %p74, %p75
      %p77 = scmp.ne.s32.totalorder %s68, %s69
      %p78 = scmp.eq.s32.totalorder %s16, 0
      %p79 = por %p77, %p78
      %p80 = scmp.ne.s32.totalorder %s68, %s69
      %p81 = scmp.eq.s32.totalorder %s17, 1
      %p82 = por %p80, %p81
      %p84 = scmp.ne.s32.totalorder %s69, %s83
      %p85 = scmp.eq.s32.totalorder %s17, 0
      %p86 = por %p84, %p85
      %s87 = ssub.s32 %s11, %s18
      %p88 = scmp.eq.s32.totalorder %s87, 0
      %s90 = sadd.s32 %s89, 1
      %s91 = scalar_select %p88, %s89, %s90
      %p94 = pneg %p88
      %p95 = scmp.eq.s32.totalorder %s11, 1
      %p96 = por %p94, %p95
      %p97 = scmp.ne.s32.totalorder %s89, %s92
      %p98 = scmp.eq.s32.totalorder %s11, 0
      %p99 = por %p97, %p98
      %p100 = scmp.ne.s32.totalorder %s89, %s92
      %p101 = scmp.eq.s32.totalorder %s16, 1
      %p102 = por %p100, %p101
      %p103 = scmp.ne.s32.totalorder %s92, %s93
      %p104 = scmp.eq.s32.totalorder %s16, 0
      %p105 = por %p103, %p104
      %p106 = scmp.ne.s32.totalorder %s92, %s93
      %p107 = scmp.eq.s32.totalorder %s17, 1
      %p108 = por %p106, %p107
      %p110 = scmp.ne.s32.totalorder %s93, %s109
      %p111 = scmp.eq.s32.totalorder %s17, 0
      %p112 = por %p110, %p111
      %p113 = scmp.le.s32.totalorder 1, %s11
      %p114 = scmp.lt.s32.totalorder %s11, 3
      %p115 = pnand %p113, %p114
      %p116 = pneg %p115
      // Predicated region
      $region9: #{bossnet_forward.4} parent=5 // pred_check
        _
      $region10: #{bossnet_forward.4} parent=5 // pred_check_branch
        %118 = sbr.rel (%p115) target = $region12
      $region11: #{bossnet_forward.4} parent=5 // pred_region
        %s119 = ssub.s32 %s11, 1
        // Predicated region
        $region13: #{bossnet_forward.4} parent=11 // pred_check
          %p120 = pneg %p58
        $region14: #{bossnet_forward.4} parent=11 // pred_check_branch
          %122 = sbr.rel (%p120) target = $region16
        $region15: #{bossnet_forward.4} parent=11 // pred_region
          %s124 = ssub.s32 64, 64
          %125 = vsyncadd [#allocation3], %s124
          %s127 = sshll.u32 [#allocation2], 4
          %s128 = int_to_ptr.vmem [resolvable:$true] %s127
          %130 = dma.hbm_to_vmem [thread:$0]  %s1, 64, %s128, [#allocation3]
        $region16: #{bossnet_forward.4} parent=11 // pred_fallthru
          _
        // Predicated region
        $region17: #{bossnet_forward.4} parent=11 // pred_check
          %p131 = pneg %p79
        $region18: #{bossnet_forward.4} parent=11 // pred_check_branch
          %133 = sbr.rel (%p131) target = $region20
        $region19: #{bossnet_forward.4} parent=11 // pred_region
          %s135 = ssub.s32 16, 16
          %136 = vsyncadd [#allocation5], %s135
          %s138 = sshll.u32 [#allocation4], 4
          %s139 = int_to_ptr.vmem [resolvable:$true] %s138
          %141 = dma.hbm_to_vmem [thread:$0]  %s2, 16, %s139, [#allocation5]
        $region20: #{bossnet_forward.4} parent=11 // pred_fallthru
          _
      $region12: #{bossnet_forward.4} parent=5 // pred_fallthru
        _
      %p142 = scmp.lt.s32.totalorder %s11, 2
      // Predicated region
      $region21: #{bossnet_forward.4} parent=5 // pred_check
        %p143 = pneg %p142
      $region22: #{bossnet_forward.4} parent=5 // pred_check_branch
        %145 = sbr.rel (%p143) target = $region24
      $region23: #{bossnet_forward.4} parent=5 // pred_region
        // Predicated region
        $region25: #{bossnet_forward.4} parent=23 // pred_check
          %p146 = pneg %p31
        $region26: #{bossnet_forward.4} parent=23 // pred_check_branch
          %148 = sbr.rel (%p146) target = $region28
        $region27: #{bossnet_forward.4} parent=23 // pred_region
          %p149 = scmp.lt.s32.totalorder %s11, 1
          %s150 = scalar_select %p149, %s11, 1
          %s151 = smul.addr %s150, 3
          %s152 = smul.addr %s151, 8
          %s153 = scalar_lea.vmem %s0, %s152
        $region28: #{bossnet_forward.4} parent=23 // pred_fallthru
          _
      $region24: #{bossnet_forward.4} parent=5 // pred_fallthru
        _
      %p154 = scmp.le.s32.totalorder 1, %s11
      %p155 = scmp.lt.s32.totalorder %s11, 3
      %p156 = pnand %p154, %p155
      %p157 = pneg %p156
      // Predicated region
      $region29: #{bossnet_forward.4} parent=5 // pred_check
        _
      $region30: #{bossnet_forward.4} parent=5 // pred_check_branch
        %159 = sbr.rel (%p156) target = $region32
      $region31: #{bossnet_forward.4} parent=5 // pred_region
        %s160 = ssub.s32 %s11, 1
        // Predicated region
        $region33: #{bossnet_forward.4} parent=31 // pred_check
          %p161 = pneg %p58
        $region34: #{bossnet_forward.4} parent=31 // pred_check_branch
          %163 = sbr.rel (%p161) target = $region36
        $region35: #{bossnet_forward.4} parent=31 // pred_region
          %164 = dma.done [#allocation3], 64
        $region36: #{bossnet_forward.4} parent=31 // pred_fallthru
          _
        // Predicated region
        $region37: #{bossnet_forward.4} parent=31 // pred_check
          %p165 = pneg %p79
        $region38: #{bossnet_forward.4} parent=31 // pred_check_branch
          %167 = sbr.rel (%p165) target = $region40
        $region39: #{bossnet_forward.4} parent=31 // pred_region
          %168 = dma.done [#allocation5], 16
        $region40: #{bossnet_forward.4} parent=31 // pred_fallthru
          _
        %p169 = scmp.lt.s32.totalorder %s16, 1
        %s170 = scalar_select %p169, %s16, 1
        %s171 = smul.addr %s170, 3
        %s172 = smul.addr %s171, 8
        %s173 = scalar_lea.vmem %s0, %s172
        %p174 = pneg %p37
        %p175 = pneg %p34
        %p176 = pneg %p58
        %p177 = pneg %p55
        %p178 = pneg %p79
        %p179 = pneg %p76
        %p180 = pneg %p105
        %p181 = pneg %p102
        %p182 = scmp.lt.s32.totalorder %s16, 1
        %s183 = scalar_select %p182, %s16, 1
        %s184 = smul.addr %s183, 3
        %s185 = smul.addr %s184, 4
        %s186 = scalar_lea.vmem %s3, %s185
        %p187 = scmp.lt.s32.totalorder %s16, 1
        %s188 = scalar_select %p187, %s16, 1
        %s189 = smul.addr %s188, 3
        %s190 = smul.addr %s189, 8
        %s191 = scalar_lea.vmem %s0, %s190
        %p192 = scmp.lt.s32.totalorder %s16, 1
        %s193 = scalar_select %p192, %s16, 1
        %s194 = smul.addr %s193, 3
        %s195 = smul.addr %s194, 4
        %s196 = scalar_lea.vmem %s3, %s195
        %v198 = vld [vmem:[%s191] sm:$0xff]
        %v199 = vld [vmem:[%s191 + $0x8] sm:$0xff]
        %v200 = vld [vmem:[%s191 + $0x10] sm:$0x3]
        %v201 = vld [vmem:[#allocation2] sm:$0x7]
        %203 = vset.pattern.permute.xlu0 0
        %204 = vperm.xlu0 %203, %v198
        %v205 = vpop.permute.xlu0 %204
        %208 = vset.pattern.permute.xlu0 0
        %209 = vperm.xlu0 %208, %v199
        %v210 = vpop.permute.xlu0 %209
        %v212 = vlaneseq
        %v213 = vshrl.u32 %v212, 7
        %v214 = vsub.s32 0, %v213
        %v215 = vrot.slane %v201, %v214
        %v216 = vmul.f32 %v205, %v215
        %v217 = vmul.f32 %v210, %v215
        %219 = vset.pattern.permute.xlu0 0
        %220 = vperm.xlu0 %219, %v200
        %v221 = vpop.permute.xlu0 %220
        %v223 = vlaneseq
        %v224 = vshrl.u32 %v223, 7
        %v225 = vsub.s32 1, %v224
        %v226 = vrot.slane %v201, %v225
        %v227 = vmul.f32 %v205, %v226
        %v228 = vmul.f32 %v210, %v226
        %v229 = vmul.f32 %v221, %v226
        %vm233 = vcmask 1046528
        %v234 = vrot.slane %v227, 1
        %v235 = vrot.slane %v228, 1
        %v236 = vsel %vm233, %v234, %v235
        %v237 = vrot.slane %v229, 1
        %v238 = vsel %vm233, %v235, %v237
        %v241 = vadd.f32 %v216, %v236
        %v242 = vadd.f32 %v217, %v238
        %v243 = vlaneseq
        %v244 = vshrl.u32 %v243, 7
        %v245 = vsub.s32 2, %v244
        %v246 = vrot.slane %v201, %v245
        %v247 = vmul.f32 %v205, %v246
        %v248 = vmul.f32 %v210, %v246
        %v249 = vmul.f32 %v221, %v246
        %vm253 = vcmask 1045504
        %v254 = vrot.slane %v247, 2
        %v255 = vrot.slane %v248, 2
        %v256 = vsel %vm253, %v254, %v255
        %v257 = vrot.slane %v249, 2
        %v258 = vsel %vm253, %v255, %v257
        %v261 = vadd.f32 %v241, %v256
        %v262 = vadd.f32 %v242, %v258
        %v263 = vld [vmem:[#allocation4] sm:$0x1]
        %v265 = vlaneseq
        %v266 = vshrl.u32 %v265, 7
        %v267 = vsub.s32 0, %v266
        %v268 = vrot.slane %v263, %v267
        %v270 = vadd.f32 %v261, %v268
        %v271 = vadd.f32 %v262, %v268
        %v272 = vmax.f32 %v270, 0.0
        %v273 = vmax.f32 %v271, 0.0
        %vm274 = vcmask 1040384
        %vm275 = vsmask.f32 256
        %vm276 = vmand %vm274, %vm275
        %v277 = vld [vmem:[%s196] sm:$0x1]
        %v278 = vsel %vm276, 0, %v277
        %279 = vst [vmem:[%s196] sm:$0x1] %v278
        %v280 = vpack.c.bf16 %v273, %v272
        %v282 = vunpack.c.l.b16 %v280
        %v283 = vunpack.c.h.b16 %v280
        %v284 = vpack.c.b16 %v282, %v282
        %v285 = vpack.c.b16 %v283, %v283
        %vm286 = vsmask.f32 4368
        %vm287 = vmor %vm275, %vm286
        %v289 = vshrl.u32 %v284, 16
        %v291 = vrot.slane %v289, 7
        %v292 = vshll.u32 %v284, 16
        %v294 = vor.u32 %v291, %v292
        %v295 = vrot.slane %v291, 4
        %v297 = vshrl.u32 %v285, 16
        %v299 = vrot.slane %v297, 7
        %v300 = vshll.u32 %v285, 16
        %v302 = vor.u32 %v299, %v300
        %v303 = vsel %vm287, %v295, %v302
        %v304 = vrot.slane %v299, 4
        %vm308 = vcmask 1043456
        %vm309 = vsmask.f32 7938
        %vm310 = vmand %vm308, %vm309
        %v311 = vld [vmem:[%s196] sm:$0xf]
        %v312 = vsel %vm310, %v294, %v311
        %313 = vst [vmem:[%s196] sm:$0xf] %v312
        %314 = vst [vmem:[%s196 + $0x4] sm:$0xf] %v303
        %v315 = vld [vmem:[%s196 + $0x8] sm:$0x1]
        %v316 = vsel %vm276, %v304, %v315
        %317 = vst [vmem:[%s196 + $0x8] sm:$0x1] %v316
        %vm318 = vmand %vm274, %vm309
        %v319 = vld [vmem:[%s196 + $0x8] sm:$0x1]
        %v320 = vsel %vm318, 0, %v319
        %321 = vst [vmem:[%s196 + $0x8] sm:$0x1] %v320
        %p322 = scmp.lt.s32.totalorder %s16, 1
        %s323 = scalar_select %p322, %s16, 1
        %s324 = smul.addr %s323, 3
        %s325 = smul.addr %s324, 4
        %s326 = scalar_lea.vmem %s3, %s325
        // Predicated region
        $region41: #{bossnet_forward.4} parent=31 // pred_check
          %p327 = pneg %p102
        $region42: #{bossnet_forward.4} parent=31 // pred_check_branch
          %329 = sbr.rel (%p327) target = $region44
        $region43: #{bossnet_forward.4} parent=31 // pred_region
          _
        $region44: #{bossnet_forward.4} parent=31 // pred_fallthru
          _
      $region32: #{bossnet_forward.4} parent=5 // pred_fallthru
        _
      %p330 = scmp.le.s32.totalorder 2, %s11
      // Predicated region
      $region45: #{bossnet_forward.4} parent=5 // pred_check
        %p331 = pneg %p330
      $region46: #{bossnet_forward.4} parent=5 // pred_check_branch
        %333 = sbr.rel (%p331) target = $region48
      $region47: #{bossnet_forward.4} parent=5 // pred_region
        %s334 = ssub.s32 %s11, 2
        // Predicated region
        $region49: #{bossnet_forward.4} parent=47 // pred_check
          %p335 = pneg %p108
        $region50: #{bossnet_forward.4} parent=47 // pred_check_branch
          %337 = sbr.rel (%p335) target = $region52
        $region51: #{bossnet_forward.4} parent=47 // pred_region
          %p338 = scmp.lt.s32.totalorder %s17, 1
          %s339 = scalar_select %p338, %s17, 1
          %s340 = smul.addr %s339, 3
          %s341 = smul.addr %s340, 4
          %s342 = scalar_lea.vmem %s3, %s341
        $region52: #{bossnet_forward.4} parent=47 // pred_fallthru
          _
      $region48: #{bossnet_forward.4} parent=5 // pred_fallthru
        _
    $region6: #{bossnet_forward.4} parent=1 // loop_footer
      %s15 = sadd.s32 1, %s11
    $region7: #{bossnet_forward.4} parent=1 // loop_footer_branch
      %10 = sbr.rel target = $region3
    $region8: #{bossnet_forward.4} parent=1 // loop_exit
      _
    %343 = vsyncpa [#allocation3], 1
    %s344 = scalar_lea.sflag [#allocation3], 1
    %345 = vsyncpa %s344, 1
    %346 = vsyncpa [#allocation5], 1

// kernel: bossnet_forward.7
$region0: #{bossnet_forward.7}
  #allocation0 [shape = 'u32[]', space=smem, size = 0x4, offset = 0x4, fixed_abs, tag = 'smem constant byte address 0x4 - core index']
  #allocation1 [shape = 'u32[144,128]{1,0:T(1,128)}', space=vmem, size = 0x12000, scoped, tag = 'internal scratch']
  %s0 = inlined_call_operand.vmem [shape: f32[2,1,512], index: 0, kind: input, shape index: {}]
  %s1 = inlined_call_operand.vmem [shape: bf16[512,128], index: 1, kind: input, shape index: {}]
  %s2 = inlined_call_operand.vmem [shape: f32[1,128], index: 2, kind: input, shape index: {}]
  %s3 = inlined_call_operand.vmem [shape: bf16[128,128], index: 3, kind: input, shape index: {}]
  %s4 = inlined_call_operand.vmem [shape: f32[1,128], index: 4, kind: input, shape index: {}]
  %s5 = inlined_call_operand.vmem [shape: bf16[128,128], index: 5, kind: input, shape index: {}]
  %s6 = inlined_call_operand.vmem [shape: f32[1,128], index: 6, kind: input, shape index: {}]
  %s7 = inlined_call_operand.hbm [shape: f32[2,128], index: 7, kind: output, shape index: {}]
  %s8 = sld [smem:[#allocation0]]
  $region38: #{bossnet_forward.7} parent=0
    _
  %s10 = ssub.s32 1, %s8
  %s11 = scalar_select 0, %s10, %s8
  $region1: #{bossnet_forward.7} parent=0
    #allocation2 [shape = 'u8[1024]{0}', space=vmem, size = 0x400, scoped, tag = 'output window, operand 0, single buffered']
    #allocation3 [shape = 's32[1]{0}', space=sflag, size = 0x4, scoped, tag = 'scoped memory for bossnet_forward.7']
    %12 = vsyncpa [#allocation3], 0
    // Predicated region
    $region2: #{bossnet_forward.7} parent=1 // pred_check
      _
    $region3: #{bossnet_forward.7} parent=1 // pred_check_branch
      %14 = sbr.rel (0) target = $region5
    $region4: #{bossnet_forward.7} parent=1 // pred_region
      _
    $region5: #{bossnet_forward.7} parent=1 // pred_fallthru
      _
    // Predicated region
    $region6: #{bossnet_forward.7} parent=1 // pred_check
      _
    $region7: #{bossnet_forward.7} parent=1 // pred_check_branch
      %16 = sbr.rel (0) target = $region9
    $region8: #{bossnet_forward.7} parent=1 // pred_region
      _
    $region9: #{bossnet_forward.7} parent=1 // pred_fallthru
      _
    // Predicated region
    $region10: #{bossnet_forward.7} parent=1 // pred_check
      _
    $region11: #{bossnet_forward.7} parent=1 // pred_check_branch
      %18 = sbr.rel (0) target = $region13
    $region12: #{bossnet_forward.7} parent=1 // pred_region
      _
    $region13: #{bossnet_forward.7} parent=1 // pred_fallthru
      _
    // Predicated region
    $region14: #{bossnet_forward.7} parent=1 // pred_check
      _
    $region15: #{bossnet_forward.7} parent=1 // pred_check_branch
      %20 = sbr.rel (0) target = $region17
    $region16: #{bossnet_forward.7} parent=1 // pred_region
      _
    $region17: #{bossnet_forward.7} parent=1 // pred_fallthru
      _
    // Predicated region
    $region18: #{bossnet_forward.7} parent=1 // pred_check
      _
    $region19: #{bossnet_forward.7} parent=1 // pred_check_branch
      %22 = sbr.rel (0) target = $region21
    $region20: #{bossnet_forward.7} parent=1 // pred_region
      _
    $region21: #{bossnet_forward.7} parent=1 // pred_fallthru
      _
    // Predicated region
    $region22: #{bossnet_forward.7} parent=1 // pred_check
      _
    $region23: #{bossnet_forward.7} parent=1 // pred_check_branch
      %24 = sbr.rel (0) target = $region25
    $region24: #{bossnet_forward.7} parent=1 // pred_region
      _
    $region25: #{bossnet_forward.7} parent=1 // pred_fallthru
      _
    // Predicated region
    $region26: #{bossnet_forward.7} parent=1 // pred_check
      _
    $region27: #{bossnet_forward.7} parent=1 // pred_check_branch
      %26 = sbr.rel (0) target = $region29
    $region28: #{bossnet_forward.7} parent=1 // pred_region
      _
    $region29: #{bossnet_forward.7} parent=1 // pred_fallthru
      _
    %v28 = vld [vmem:[%s0] sm:$0xf]
    %v29 = vld [vmem:[%s0 + $0x4] sm:$0xf]
    %v32 = vlaneseq
    %v33 = vshrl.u32 %v32, 7
    %v34 = vsub.s32 0, %v33
    %v35 = vrot.slane %v28, %v34
    %v36 = vlaneseq
    %v37 = vshrl.u32 %v36, 7
    %v38 = vsub.s32 1, %v37
    %v39 = vrot.slane %v28, %v38
    %v40 = vlaneseq
    %v41 = vshrl.u32 %v40, 7
    %v42 = vsub.s32 2, %v41
    %v43 = vrot.slane %v28, %v42
    %v44 = vlaneseq
    %v45 = vshrl.u32 %v44, 7
    %v46 = vsub.s32 3, %v45
    %v47 = vrot.slane %v28, %v46
    %v48 = vlaneseq
    %v49 = vshrl.u32 %v48, 7
    %v50 = vsub.s32 0, %v49
    %v51 = vrot.slane %v29, %v50
    %v52 = vlaneseq
    %v53 = vshrl.u32 %v52, 7
    %v54 = vsub.s32 1, %v53
    %v55 = vrot.slane %v29, %v54
    %v56 = vlaneseq
    %v57 = vshrl.u32 %v56, 7
    %v58 = vsub.s32 2, %v57
    %v59 = vrot.slane %v29, %v58
    %v60 = vlaneseq
    %v61 = vshrl.u32 %v60, 7
    %v62 = vsub.s32 3, %v61
    %v63 = vrot.slane %v29, %v62
    %v72 = vpack.c.bf16 %v35, %v35
    %v73 = vpack.c.bf16 %v39, %v39
    %v74 = vpack.c.bf16 %v43, %v43
    %v75 = vpack.c.bf16 %v47, %v47
    %v76 = vpack.c.bf16 %v51, %v51
    %v77 = vpack.c.bf16 %v55, %v55
    %v78 = vpack.c.bf16 %v59, %v59
    %v79 = vpack.c.bf16 %v63, %v63
    %v80 = vld [vmem:[%s1] sm:$0xf]
    %v81 = vld [vmem:[%s1 + $0x4] sm:$0xf]
    %v82 = vld [vmem:[%s1 + $0x8] sm:$0xf]
    %v83 = vld [vmem:[%s1 + $0xc] sm:$0xf]
    %v84 = vld [vmem:[%s1 + $0x10] sm:$0xf]
    %v85 = vld [vmem:[%s1 + $0x14] sm:$0xf]
    %v86 = vld [vmem:[%s1 + $0x18] sm:$0xf]
    %v87 = vld [vmem:[%s1 + $0x1c] sm:$0xf]
    %v88 = vld [vmem:[%s1 + $0x20] sm:$0xf]
    %v89 = vld [vmem:[%s1 + $0x24] sm:$0xf]
    %v90 = vld [vmem:[%s1 + $0x28] sm:$0xf]
    %v91 = vld [vmem:[%s1 + $0x2c] sm:$0xf]
    %v92 = vld [vmem:[%s1 + $0x30] sm:$0xf]
    %v93 = vld [vmem:[%s1 + $0x34] sm:$0xf]
    %v94 = vld [vmem:[%s1 + $0x38] sm:$0xf]
    %v95 = vld [vmem:[%s1 + $0x3c] sm:$0xf]
    %v96 = vld [vmem:[%s1 + $0x40] sm:$0xf]
    %v97 = vld [vmem:[%s1 + $0x44] sm:$0xf]
    %v98 = vld [vmem:[%s1 + $0x48] sm:$0xf]
    %v99 = vld [vmem:[%s1 + $0x4c] sm:$0xf]
    %v100 = vld [vmem:[%s1 + $0x50] sm:$0xf]
    %v101 = vld [vmem:[%s1 + $0x54] sm:$0xf]
    %v102 = vld [vmem:[%s1 + $0x58] sm:$0xf]
    %v103 = vld [vmem:[%s1 + $0x5c] sm:$0xf]
    %v104 = vld [vmem:[%s1 + $0x60] sm:$0xf]
    %v105 = vld [vmem:[%s1 + $0x64] sm:$0xf]
    %v106 = vld [vmem:[%s1 + $0x68] sm:$0xf]
    %v107 = vld [vmem:[%s1 + $0x6c] sm:$0xf]
    %v108 = vld [vmem:[%s1 + $0x70] sm:$0xf]
    %v109 = vld [vmem:[%s1 + $0x74] sm:$0xf]
    %v110 = vld [vmem:[%s1 + $0x78] sm:$0xf]
    %v111 = vld [vmem:[%s1 + $0x7c] sm:$0xf]
    %v112 = vld [vmem:[%s1 + $0x80] sm:$0xf]
    %v113 = vld [vmem:[%s1 + $0x84] sm:$0xf]
    %v114 = vld [vmem:[%s1 + $0x88] sm:$0xf]
    %v115 = vld [vmem:[%s1 + $0x8c] sm:$0xf]
    %v116 = vld [vmem:[%s1 + $0x90] sm:$0xf]
    %v117 = vld [vmem:[%s1 + $0x94] sm:$0xf]
    %v118 = vld [vmem:[%s1 + $0x98] sm:$0xf]
    %v119 = vld [vmem:[%s1 + $0x9c] sm:$0xf]
    %v120 = vld [vmem:[%s1 + $0xa0] sm:$0xf]
    %v121 = vld [vmem:[%s1 + $0xa4] sm:$0xf]
    %v122 = vld [vmem:[%s1 + $0xa8] sm:$0xf]
    %v123 = vld [vmem:[%s1 + $0xac] sm:$0xf]
    %v124 = vld [vmem:[%s1 + $0xb0] sm:$0xf]
    %v125 = vld [vmem:[%s1 + $0xb4] sm:$0xf]
    %v126 = vld [vmem:[%s1 + $0xb8] sm:$0xf]
    %v127 = vld [vmem:[%s1 + $0xbc] sm:$0xf]
    %v128 = vld [vmem:[%s1 + $0xc0] sm:$0xf]
    %v129 = vld [vmem:[%s1 + $0xc4] sm:$0xf]
    %v130 = vld [vmem:[%s1 + $0xc8] sm:$0xf]
    %v131 = vld [vmem:[%s1 + $0xcc] sm:$0xf]
    %v132 = vld [vmem:[%s1 + $0xd0] sm:$0xf]
    %v133 = vld [vmem:[%s1 + $0xd4] sm:$0xf]
    %v134 = vld [vmem:[%s1 + $0xd8] sm:$0xf]
    %v135 = vld [vmem:[%s1 + $0xdc] sm:$0xf]
    %v136 = vld [vmem:[%s1 + $0xe0] sm:$0xf]
    %v137 = vld [vmem:[%s1 + $0xe4] sm:$0xf]
    %v138 = vld [vmem:[%s1 + $0xe8] sm:$0xf]
    %v139 = vld [vmem:[%s1 + $0xec] sm:$0xf]
    %v140 = vld [vmem:[%s1 + $0xf0] sm:$0xf]
    %v141 = vld [vmem:[%s1 + $0xf4] sm:$0xf]
    %v142 = vld [vmem:[%s1 + $0xf8] sm:$0xf]
    %v143 = vld [vmem:[%s1 + $0xfc] sm:$0xf]
    %v144 = vld [vmem:[%s2] sm:$0x1]
    %v146 = vlaneseq
    %v147 = vshrl.u32 %v146, 7
    %v148 = vsub.s32 0, %v147
    %v149 = vrot.slane %v144, %v148
    %v159 = vunpack.c.l.b16 %v72
    %v160 = vunpack.c.l.b16 %v73
    %v161 = vunpack.c.l.b16 %v74
    %v162 = vunpack.c.l.b16 %v75
    %v163 = vunpack.c.l.b16 %v76
    %v164 = vunpack.c.l.b16 %v77
    %v165 = vunpack.c.l.b16 %v78
    %v166 = vunpack.c.l.b16 %v79
    %v167 = vrot.slane %v163, 7
    %vm168 = vcmask 1041409
    %v169 = vsel %vm168, %v167, %v159
    %v170 = vrot.slane %v164, 7
    %v171 = vsel %vm168, %v170, %v160
    %v172 = vrot.slane %v165, 7
    %v173 = vsel %vm168, %v172, %v161
    %v174 = vrot.slane %v166, 7
    %v175 = vsel %vm168, %v174, %v162
    %v176 = vpack.c.b16 %v169, %v169
    %v177 = vpack.c.b16 %v171, %v171
    %v178 = vpack.c.b16 %v173, %v173
    %v179 = vpack.c.b16 %v175, %v175
    %v248 = vunpack.c.l.b16 %v80
    %v249 = vunpack.c.l.b16 %v81
    %v250 = vunpack.c.l.b16 %v82
    %v251 = vunpack.c.l.b16 %v83
    %v252 = vunpack.c.l.b16 %v84
    %v253 = vunpack.c.l.b16 %v85
    %v254 = vunpack.c.l.b16 %v86
    %v255 = vunpack.c.l.b16 %v87
    %v256 = vunpack.c.l.b16 %v88
    %v257 = vunpack.c.l.b16 %v89
    %v258 = vunpack.c.l.b16 %v90
    %v259 = vunpack.c.l.b16 %v91
    %v260 = vunpack.c.l.b16 %v92
    %v261 = vunpack.c.l.b16 %v93
    %v262 = vunpack.c.l.b16 %v94
    %v263 = vunpack.c.l.b16 %v95
    %v264 = vunpack.c.l.b16 %v96
    %v265 = vunpack.c.l.b16 %v97
    %v266 = vunpack.c.l.b16 %v98
    %v267 = vunpack.c.l.b16 %v99
    %v268 = vunpack.c.l.b16 %v100
    %v269 = vunpack.c.l.b16 %v101
    %v270 = vunpack.c.l.b16 %v102
    %v271 = vunpack.c.l.b16 %v103
    %v272 = vunpack.c.l.b16 %v104
    %v273 = vunpack.c.l.b16 %v105
    %v274 = vunpack.c.l.b16 %v106
    %v275 = vunpack.c.l.b16 %v107
    %v276 = vunpack.c.l.b16 %v108
    %v277 = vunpack.c.l.b16 %v109
    %v278 = vunpack.c.l.b16 %v110
    %v279 = vunpack.c.l.b16 %v111
    %v280 = vunpack.c.l.b16 %v112
    %v281 = vunpack.c.l.b16 %v113
    %v282 = vunpack.c.l.b16 %v114
    %v283 = vunpack.c.l.b16 %v115
    %v284 = vunpack.c.l.b16 %v116
    %v285 = vunpack.c.l.b16 %v117
    %v286 = vunpack.c.l.b16 %v118
    %v287 = vunpack.c.l.b16 %v119
    %v288 = vunpack.c.l.b16 %v120
    %v289 = vunpack.c.l.b16 %v121
    %v290 = vunpack.c.l.b16 %v122
    %v291 = vunpack.c.l.b16 %v123
    %v292 = vunpack.c.l.b16 %v124
    %v293 = vunpack.c.l.b16 %v125
    %v294 = vunpack.c.l.b16 %v126
    %v295 = vunpack.c.l.b16 %v127
    %v296 = vunpack.c.l.b16 %v128
    %v297 = vunpack.c.l.b16 %v129
    %v298 = vunpack.c.l.b16 %v130
    %v299 = vunpack.c.l.b16 %v131
    %v300 = vunpack.c.l.b16 %v132
    %v301 = vunpack.c.l.b16 %v133
    %v302 = vunpack.c.l.b16 %v134
    %v303 = vunpack.c.l.b16 %v135
    %v304 = vunpack.c.l.b16 %v136
    %v305 = vunpack.c.l.b16 %v137
    %v306 = vunpack.c.l.b16 %v138
    %v307 = vunpack.c.l.b16 %v139
    %v308 = vunpack.c.l.b16 %v140
    %v309 = vunpack.c.l.b16 %v141
    %v310 = vunpack.c.l.b16 %v142
    %v311 = vunpack.c.l.b16 %v143
    %v312 = vpack.c.b16 %v249, %v248
    %v313 = vpack.c.b16 %v251, %v250
    %v314 = vpack.c.b16 %v253, %v252
    %v315 = vpack.c.b16 %v255, %v254
    %v316 = vpack.c.b16 %v257, %v256
    %v317 = vpack.c.b16 %v259, %v258
    %v318 = vpack.c.b16 %v261, %v260
    %v319 = vpack.c.b16 %v263, %v262
    %v320 = vpack.c.b16 %v265, %v264
    %v321 = vpack.c.b16 %v267, %v266
    %v322 = vpack.c.b16 %v269, %v268
    %v323 = vpack.c.b16 %v271, %v270
    %v324 = vpack.c.b16 %v273, %v272
    %v325 = vpack.c.b16 %v275, %v274
    %v326 = vpack.c.b16 %v277, %v276
    %v327 = vpack.c.b16 %v279, %v278
    %v328 = vpack.c.b16 %v281, %v280
    %v329 = vpack.c.b16 %v283, %v282
    %v330 = vpack.c.b16 %v285, %v284
    %v331 = vpack.c.b16 %v287, %v286
    %v332 = vpack.c.b16 %v289, %v288
    %v333 = vpack.c.b16 %v291, %v290
    %v334 = vpack.c.b16 %v293, %v292
    %v335 = vpack.c.b16 %v295, %v294
    %v336 = vpack.c.b16 %v297, %v296
    %v337 = vpack.c.b16 %v299, %v298
    %v338 = vpack.c.b16 %v301, %v300
    %v339 = vpack.c.b16 %v303, %v302
    %v340 = vpack.c.b16 %v305, %v304
    %v341 = vpack.c.b16 %v307, %v306
    %v342 = vpack.c.b16 %v309, %v308
    %v343 = vpack.c.b16 %v311, %v310
    %376 = vmatprep.subr.bf16.mxu0 0
    %377 = vmatpush1.bf16.msra.mxu0 %v319
    %378 = vmatprep.subr.bf16.mxu0 0
    %379 = vmatpush1.bf16.msra.mxu0 %v318
    %380 = vmatprep.subr.bf16.mxu0 0
    %381 = vmatpush1.bf16.msra.mxu0 %v317
    %382 = vmatprep.subr.bf16.mxu0 0
    %383 = vmatpush1.bf16.msra.mxu0 %v316
    %384 = vmatprep.subr.bf16.mxu0 0
    %385 = vmatpush1.bf16.msra.mxu0 %v315
    %386 = vmatprep.subr.bf16.mxu0 0
    %387 = vmatpush1.bf16.msra.mxu0 %v314
    %388 = vmatprep.subr.bf16.mxu0 0
    %389 = vmatpush1.bf16.msra.mxu0 %v313
    %390 = vmatprep.subr.bf16.mxu0 0
    %391 = vmatpush1.bf16.msra.mxu0 %v312
    %392 = vmatprep.subr.bf16.mxu0 0
    %393 = vmatpush2.bf16.msra.mxu0 %v327
    %394 = vmatprep.subr.bf16.mxu0 0
    %395 = vmatpush2.bf16.msra.mxu0 %v326
    %396 = vmatprep.subr.bf16.mxu0 0
    %397 = vmatpush2.bf16.msra.mxu0 %v325
    %398 = vmatprep.subr.bf16.mxu0 0
    %399 = vmatpush2.bf16.msra.mxu0 %v324
    %400 = vmatprep.subr.bf16.mxu0 0
    %401 = vmatpush2.bf16.msra.mxu0 %v323
    %402 = vmatprep.subr.bf16.mxu0 0
    %403 = vmatpush2.bf16.msra.mxu0 %v322
    %404 = vmatprep.subr.bf16.mxu0 0
    %405 = vmatpush2.bf16.msra.mxu0 %v321
    %406 = vmatprep.subr.bf16.mxu0 0
    %407 = vmatpush2.bf16.msra.mxu0 %v320
    %408 = vmatprep.mubr.bf16.mxu0 %v177
    %409 = vmatmul.mubr.bf16.gmra.mxu0 %v176
    %v410 = vpop.f32.mrf.mxu0
    %v411 = vadd.f32 %v149, %v410
    %v412 = vpop.f32.mrf.mxu0
    %v413 = vpop.f32.mrf.mxu0
    %v414 = vpop.f32.mrf.mxu0
    %415 = vdwg.mxu0
    %416 = vmatprep.subr.bf16.mxu0 0
    %417 = vmatpush1.bf16.msra.mxu0 %v335
    %418 = vmatprep.subr.bf16.mxu0 0
    %419 = vmatpush1.bf16.msra.mxu0 %v334
    %420 = vmatprep.subr.bf16.mxu0 0
    %421 = vmatpush1.bf16.msra.mxu0 %v333
    %422 = vmatprep.subr.bf16.mxu0 0
    %423 = vmatpush1.bf16.msra.mxu0 %v332
    %424 = vmatprep.subr.bf16.mxu0 0
    %425 = vmatpush1.bf16.msra.mxu0 %v331
    %426 = vmatprep.subr.bf16.mxu0 0
    %427 = vmatpush1.bf16.msra.mxu0 %v330
    %428 = vmatprep.subr.bf16.mxu0 0
    %429 = vmatpush1.bf16.msra.mxu0 %v329
    %430 = vmatprep.subr.bf16.mxu0 0
    %431 = vmatpush1.bf16.msra.mxu0 %v328
    %432 = vmatprep.subr.bf16.mxu0 0
    %433 = vmatpush2.bf16.msra.mxu0 %v343
    %434 = vmatprep.subr.bf16.mxu0 0
    %435 = vmatpush2.bf16.msra.mxu0 %v342
    %436 = vmatprep.subr.bf16.mxu0 0
    %437 = vmatpush2.bf16.msra.mxu0 %v341
    %438 = vmatprep.subr.bf16.mxu0 0
    %439 = vmatpush2.bf16.msra.mxu0 %v340
    %440 = vmatprep.subr.bf16.mxu0 0
    %441 = vmatpush2.bf16.msra.mxu0 %v339
    %442 = vmatprep.subr.bf16.mxu0 0
    %443 = vmatpush2.bf16.msra.mxu0 %v338
    %444 = vmatprep.subr.bf16.mxu0 0
    %445 = vmatpush2.bf16.msra.mxu0 %v337
    %446 = vmatprep.subr.bf16.mxu0 0
    %447 = vmatpush2.bf16.msra.mxu0 %v336
    %448 = vmatprep.mubr.bf16.mxu0 %v179
    %449 = vmatmul.mubr.bf16.gmra.mxu0 %v178
    %v450 = vpop.f32.mrf.mxu0
    %v451 = vadd.f32 %v411, %v450
    %v452 = vpop.f32.mrf.mxu0
    %v453 = vpop.f32.mrf.mxu0
    %v454 = vpop.f32.mrf.mxu0
    %455 = vdwg.mxu0
    %v456 = vmax.f32 %v451, 0.0
    %v457 = vpack.c.bf16 %v456, %v456
    %v458 = vld [vmem:[%s3] sm:$0xf]
    %v459 = vld [vmem:[%s3 + $0x4] sm:$0xf]
    %v460 = vld [vmem:[%s3 + $0x8] sm:$0xf]
    %v461 = vld [vmem:[%s3 + $0xc] sm:$0xf]
    %v462 = vld [vmem:[%s3 + $0x10] sm:$0xf]
    %v463 = vld [vmem:[%s3 + $0x14] sm:$0xf]
    %v464 = vld [vmem:[%s3 + $0x18] sm:$0xf]
    %v465 = vld [vmem:[%s3 + $0x1c] sm:$0xf]
    %v466 = vld [vmem:[%s3 + $0x20] sm:$0xf]
    %v467 = vld [vmem:[%s3 + $0x24] sm:$0xf]
    %v468 = vld [vmem:[%s3 + $0x28] sm:$0xf]
    %v469 = vld [vmem:[%s3 + $0x2c] sm:$0xf]
    %v470 = vld [vmem:[%s3 + $0x30] sm:$0xf]
    %v471 = vld [vmem:[%s3 + $0x34] sm:$0xf]
    %v472 = vld [vmem:[%s3 + $0x38] sm:$0xf]
    %v473 = vld [vmem:[%s3 + $0x3c] sm:$0xf]
    %v474 = vld [vmem:[%s4] sm:$0x1]
    %v476 = vlaneseq
    %v477 = vshrl.u32 %v476, 7
    %v478 = vsub.s32 0, %v477
    %v479 = vrot.slane %v474, %v478
    %v497 = vunpack.c.l.b16 %v458
    %v498 = vunpack.c.l.b16 %v459
    %v499 = vunpack.c.l.b16 %v460
    %v500 = vunpack.c.l.b16 %v461
    %v501 = vunpack.c.l.b16 %v462
    %v502 = vunpack.c.l.b16 %v463
    %v503 = vunpack.c.l.b16 %v464
    %v504 = vunpack.c.l.b16 %v465
    %v505 = vunpack.c.l.b16 %v466
    %v506 = vunpack.c.l.b16 %v467
    %v507 = vunpack.c.l.b16 %v468
    %v508 = vunpack.c.l.b16 %v469
    %v509 = vunpack.c.l.b16 %v470
    %v510 = vunpack.c.l.b16 %v471
    %v511 = vunpack.c.l.b16 %v472
    %v512 = vunpack.c.l.b16 %v473
    %v513 = vpack.c.b16 %v498, %v497
    %v514 = vpack.c.b16 %v500, %v499
    %v515 = vpack.c.b16 %v502, %v501
    %v516 = vpack.c.b16 %v504, %v503
    %v517 = vpack.c.b16 %v506, %v505
    %v518 = vpack.c.b16 %v508, %v507
    %v519 = vpack.c.b16 %v510, %v509
    %v520 = vpack.c.b16 %v512, %v511
    %529 = vmatprep.subr.bf16.mxu0 0
    %530 = vmatpush1.bf16.msra.mxu0 %v520
    %531 = vmatprep.subr.bf16.mxu0 0
    %532 = vmatpush1.bf16.msra.mxu0 %v519
    %533 = vmatprep.subr.bf16.mxu0 0
    %534 = vmatpush1.bf16.msra.mxu0 %v518
    %535 = vmatprep.subr.bf16.mxu0 0
    %536 = vmatpush1.bf16.msra.mxu0 %v517
    %537 = vmatprep.subr.bf16.mxu0 0
    %538 = vmatpush1.bf16.msra.mxu0 %v516
    %539 = vmatprep.subr.bf16.mxu0 0
    %540 = vmatpush1.bf16.msra.mxu0 %v515
    %541 = vmatprep.subr.bf16.mxu0 0
    %542 = vmatpush1.bf16.msra.mxu0 %v514
    %543 = vmatprep.subr.bf16.mxu0 0
    %544 = vmatpush1.bf16.msra.mxu0 %v513
    %545 = vmatprep.subr.bf16.mxu0 0
    %546 = vmatpush2.bf16.msra.mxu0 0
    %547 = vmatprep.subr.bf16.mxu0 0
    %548 = vmatpush2.bf16.msra.mxu0 0
    %549 = vmatprep.subr.bf16.mxu0 0
    %550 = vmatpush2.bf16.msra.mxu0 0
    %551 = vmatprep.subr.bf16.mxu0 0
    %552 = vmatpush2.bf16.msra.mxu0 0
    %553 = vmatprep.subr.bf16.mxu0 0
    %554 = vmatpush2.bf16.msra.mxu0 0
    %555 = vmatprep.subr.bf16.mxu0 0
    %556 = vmatpush2.bf16.msra.mxu0 0
    %557 = vmatprep.subr.bf16.mxu0 0
    %558 = vmatpush2.bf16.msra.mxu0 0
    %559 = vmatprep.subr.bf16.mxu0 0
    %560 = vmatpush2.bf16.msra.mxu0 0
    %561 = vmatprep.mubr.bf16.mxu0 0
    %562 = vmatmul.mubr.bf16.gmra.mxu0 %v457
    %v563 = vpop.f32.mrf.mxu0
    %v564 = vadd.f32 %v479, %v563
    %v565 = vpop.f32.mrf.mxu0
    %v566 = vpop.f32.mrf.mxu0
    %v567 = vpop.f32.mrf.mxu0
    %568 = vdwg.mxu0
    %v569 = vmax.f32 %v564, 0.0
    %v570 = vpack.c.bf16 %v569, %v569
    %v571 = vld [vmem:[%s5] sm:$0xf]
    %v572 = vld [vmem:[%s5 + $0x4] sm:$0xf]
    %v573 = vld [vmem:[%s5 + $0x8] sm:$0xf]
    %v574 = vld [vmem:[%s5 + $0xc] sm:$0xf]
    %v575 = vld [vmem:[%s5 + $0x10] sm:$0xf]
    %v576 = vld [vmem:[%s5 + $0x14] sm:$0xf]
    %v577 = vld [vmem:[%s5 + $0x18] sm:$0xf]
    %v578 = vld [vmem:[%s5 + $0x1c] sm:$0xf]
    %v579 = vld [vmem:[%s5 + $0x20] sm:$0xf]
    %v580 = vld [vmem:[%s5 + $0x24] sm:$0xf]
    %v581 = vld [vmem:[%s5 + $0x28] sm:$0xf]
    %v582 = vld [vmem:[%s5 + $0x2c] sm:$0xf]
    %v583 = vld [vmem:[%s5 + $0x30] sm:$0xf]
    %v584 = vld [vmem:[%s5 + $0x34] sm:$0xf]
    %v585 = vld [vmem:[%s5 + $0x38] sm:$0xf]
    %v586 = vld [vmem:[%s5 + $0x3c] sm:$0xf]
    %v587 = vld [vmem:[%s6] sm:$0x1]
    %v589 = vlaneseq
    %v590 = vshrl.u32 %v589, 7
    %v591 = vsub.s32 0, %v590
    %v592 = vrot.slane %v587, %v591
    %v610 = vunpack.c.l.b16 %v571
    %v611 = vunpack.c.l.b16 %v572
    %v612 = vunpack.c.l.b16 %v573
    %v613 = vunpack.c.l.b16 %v574
    %v614 = vunpack.c.l.b16 %v575
    %v615 = vunpack.c.l.b16 %v576
    %v616 = vunpack.c.l.b16 %v577
    %v617 = vunpack.c.l.b16 %v578
    %v618 = vunpack.c.l.b16 %v579
    %v619 = vunpack.c.l.b16 %v580
    %v620 = vunpack.c.l.b16 %v581
    %v621 = vunpack.c.l.b16 %v582
    %v622 = vunpack.c.l.b16 %v583
    %v623 = vunpack.c.l.b16 %v584
    %v624 = vunpack.c.l.b16 %v585
    %v625 = vunpack.c.l.b16 %v586
    %v626 = vpack.c.b16 %v611, %v610
    %v627 = vpack.c.b16 %v613, %v612
    %v628 = vpack.c.b16 %v615, %v614
    %v629 = vpack.c.b16 %v617, %v616
    %v630 = vpack.c.b16 %v619, %v618
    %v631 = vpack.c.b16 %v621, %v620
    %v632 = vpack.c.b16 %v623, %v622
    %v633 = vpack.c.b16 %v625, %v624
    %642 = vmatprep.subr.bf16.mxu0 0
    %643 = vmatpush1.bf16.msra.mxu0 %v633
    %644 = vmatprep.subr.bf16.mxu0 0
    %645 = vmatpush1.bf16.msra.mxu0 %v632
    %646 = vmatprep.subr.bf16.mxu0 0
    %647 = vmatpush1.bf16.msra.mxu0 %v631
    %648 = vmatprep.subr.bf16.mxu0 0
    %649 = vmatpush1.bf16.msra.mxu0 %v630
    %650 = vmatprep.subr.bf16.mxu0 0
    %651 = vmatpush1.bf16.msra.mxu0 %v629
    %652 = vmatprep.subr.bf16.mxu0 0
    %653 = vmatpush1.bf16.msra.mxu0 %v628
    %654 = vmatprep.subr.bf16.mxu0 0
    %655 = vmatpush1.bf16.msra.mxu0 %v627
    %656 = vmatprep.subr.bf16.mxu0 0
    %657 = vmatpush1.bf16.msra.mxu0 %v626
    %658 = vmatprep.subr.bf16.mxu0 0
    %659 = vmatpush2.bf16.msra.mxu0 0
    %660 = vmatprep.subr.bf16.mxu0 0
    %661 = vmatpush2.bf16.msra.mxu0 0
    %662 = vmatprep.subr.bf16.mxu0 0
    %663 = vmatpush2.bf16.msra.mxu0 0
    %664 = vmatprep.subr.bf16.mxu0 0
    %665 = vmatpush2.bf16.msra.mxu0 0
    %666 = vmatprep.subr.bf16.mxu0 0
    %667 = vmatpush2.bf16.msra.mxu0 0
    %668 = vmatprep.subr.bf16.mxu0 0
    %669 = vmatpush2.bf16.msra.mxu0 0
    %670 = vmatprep.subr.bf16.mxu0 0
    %671 = vmatpush2.bf16.msra.mxu0 0
    %672 = vmatprep.subr.bf16.mxu0 0
    %673 = vmatpush2.bf16.msra.mxu0 0
    %674 = vmatprep.mubr.bf16.mxu0 0
    %675 = vmatmul.mubr.bf16.gmra.mxu0 %v570
    %v676 = vpop.f32.mrf.mxu0
    %v677 = vadd.f32 %v592, %v676
    %v678 = vpop.f32.mrf.mxu0
    %v679 = vpop.f32.mrf.mxu0
    %v680 = vpop.f32.mrf.mxu0
    %681 = vdwg.mxu0
    %682 = vst [vmem:[#allocation2] sm:$0x3] %v677
    // Predicated region
    $region30: #{bossnet_forward.7} parent=1 // pred_check
      _
    $region31: #{bossnet_forward.7} parent=1 // pred_check_branch
      %684 = sbr.rel (0) target = $region33
    $region32: #{bossnet_forward.7} parent=1 // pred_region
      %s686 = ssub.s32 32, 32
      %687 = vsyncadd [#allocation3], %s686
      %s689 = sshll.u32 [#allocation2], 4
      %s690 = int_to_ptr.vmem [resolvable:$true] %s689
      %692 = dma.vmem_to_hbm [thread:$0]  %s690, 32, %s7, [#allocation3]
    $region33: #{bossnet_forward.7} parent=1 // pred_fallthru
      _
    // Predicated region
    $region34: #{bossnet_forward.7} parent=1 // pred_check
      _
    $region35: #{bossnet_forward.7} parent=1 // pred_check_branch
      %694 = sbr.rel (0) target = $region37
    $region36: #{bossnet_forward.7} parent=1 // pred_region
      %695 = dma.done [#allocation3], 32
    $region37: #{bossnet_forward.7} parent=1 // pred_fallthru
      _
    %696 = vsyncpa [#allocation3], 1

// kernel: bossnet_forward.5
$region0: #{bossnet_forward.5}
  #allocation0 [shape = 'u32[]', space=smem, size = 0x4, offset = 0x4, fixed_abs, tag = 'smem constant byte address 0x4 - core index']
  #allocation1 [shape = 'u32[144,128]{1,0:T(1,128)}', space=vmem, size = 0x12000, scoped, tag = 'internal scratch']
  #allocation2 [shape = 'bf16[18,128]{1,0:T(8,128)(2,1)}', space=vmem, size = 0x1800, scoped, tag = 'scratch operand']
  %s0 = inlined_call_operand.vmem [shape: bf16[2,18,128], index: 0, kind: input, shape index: {}]
  %s1 = inlined_call_operand.vmem [shape: bf16[3,128,128], index: 1, kind: input, shape index: {}]
  %s2 = inlined_call_operand.vmem [shape: f32[1,128], index: 2, kind: input, shape index: {}]
  %s3 = inlined_call_operand.hbm [shape: bf16[3,128,128], index: 3, kind: input, shape index: {}]
  %s4 = inlined_call_operand.vmem [shape: f32[1,128], index: 4, kind: input, shape index: {}]
  %s5 = inlined_call_operand.hbm [shape: bf16[128,128], index: 5, kind: input, shape index: {}]
  %s6 = inlined_call_operand.vmem [shape: f32[1,128], index: 6, kind: input, shape index: {}]
  %s7 = inlined_call_operand.vmem [shape: bf16[2,18,128], index: 7, kind: output, shape index: {}]
  %s8 = sld [smem:[#allocation0]]
  $region69: #{bossnet_forward.5} parent=0
    _
  %s10 = ssub.s32 1, %s8
  %s11 = scalar_select 0, %s10, %s8
  $region1: #{bossnet_forward.5} parent=0
    #allocation3 [shape = 'u8[98304]{0}', space=vmem, size = 0x18000, scoped, tag = 'input window, operand 3, single buffered']
    #allocation4 [shape = 's32[2]{0}', space=sflag, size = 0x8, scoped, tag = 'scoped memory for bossnet_forward.5']
    #allocation5 [shape = 'u8[32768]{0}', space=vmem, size = 0x8000, scoped, tag = 'input window, operand 5, single buffered']
    #allocation6 [shape = 's32[1]{0}', space=sflag, size = 0x4, scoped, tag = 'scoped memory for bossnet_forward.5']
    %12 = vsyncpa [#allocation4], 0
    %13 = vsyncpa [#allocation6], 0
    loop: start=0, step=1, limit=4
    $region2: #{bossnet_forward.5} parent=1 // loop_pre_header
      _
    $region3: #{bossnet_forward.5} parent=1 // loop_header
      %s15 = sphi 0, %s19
      %p16 = scmp.ge.s32.totalorder %s15, 4
      %s25 = sphi 0, %s27
      %s28 = sphi 0, %s25
      %s29 = sphi 0, %s28
      %s45 = sphi 0, %s29
      %s49 = sphi 0, %s49
      %s51 = sphi 0, %s49
      %s52 = sphi 0, %s51
      %s66 = sphi 0, %s52
      %s70 = sphi 0, %s70
      %s72 = sphi 0, %s70
      %s73 = sphi 0, %s72
      %s87 = sphi 0, %s73
      %s91 = sphi 0, %s91
      %s93 = sphi 0, %s91
      %s94 = sphi 0, %s93
      %s108 = sphi 0, %s94
      %s112 = sphi 0, %s112
      %s114 = sphi 0, %s112
      %s115 = sphi 0, %s114
      %s129 = sphi 0, %s115
      %s133 = sphi 0, %s133
      %s135 = sphi 0, %s133
      %s136 = sphi 0, %s135
      %s150 = sphi 0, %s136
      %s154 = sphi 0, %s154
      %s156 = sphi 0, %s154
      %s157 = sphi 0, %s156
      %s171 = sphi 0, %s157
      %s177 = sphi 0, %s179
      %s180 = sphi 0, %s177
      %s181 = sphi 0, %s180
      %s197 = sphi 0, %s181
    $region4: #{bossnet_forward.5} parent=1 // loop_header_branch
      %18 = sbr.rel (%p16) target = $region8
    $region5: #{bossnet_forward.5} parent=1 // loop_body
      %s20 = ssub.s32 %s15, 1
      %s21 = ssub.s32 %s15, 2
      %s22 = sadd.s32 %s15, 1
      %s23 = ssub.s32 %s15, %s22
      %p24 = scmp.eq.s32.totalorder %s23, 0
      %s26 = sadd.s32 %s25, 1
      %s27 = scalar_select %p24, %s25, %s26
      %p30 = pneg %p24
      %p31 = scmp.eq.s32.totalorder %s15, 1
      %p32 = por %p30, %p31
      %p33 = scmp.ne.s32.totalorder %s25, %s28
      %p34 = scmp.eq.s32.totalorder %s15, 0
      %p35 = por %p33, %p34
      %p36 = scmp.ne.s32.totalorder %s25, %s28
      %p37 = scmp.eq.s32.totalorder %s20, 1
      %p38 = por %p36, %p37
      %p39 = scmp.ne.s32.totalorder %s28, %s29
      %p40 = scmp.eq.s32.totalorder %s20, 0
      %p41 = por %p39, %p40
      %p42 = scmp.ne.s32.totalorder %s28, %s29
      %p43 = scmp.eq.s32.totalorder %s21, 1
      %p44 = por %p42, %p43
      %p46 = scmp.ne.s32.totalorder %s29, %s45
      %p47 = scmp.eq.s32.totalorder %s21, 0
      %p48 = por %p46, %p47
      %s50 = sadd.s32 %s49, 1
      %p53 = scmp.eq.s32.totalorder %s15, 1
      %p54 = scmp.ne.s32.totalorder %s49, %s51
      %p55 = scmp.eq.s32.totalorder %s15, 0
      %p56 = por %p54, %p55
      %p57 = scmp.ne.s32.totalorder %s49, %s51
      %p58 = scmp.eq.s32.totalorder %s20, 1
      %p59 = por %p57, %p58
      %p60 = scmp.ne.s32.totalorder %s51, %s52
      %p61 = scmp.eq.s32.totalorder %s20, 0
      %p62 = por %p60, %p61
      %p63 = scmp.ne.s32.totalorder %s51, %s52
      %p64 = scmp.eq.s32.totalorder %s21, 1
      %p65 = por %p63, %p64
      %p67 = scmp.ne.s32.totalorder %s52, %s66
      %p68 = scmp.eq.s32.totalorder %s21, 0
      %p69 = por %p67, %p68
      %s71 = sadd.s32 %s70, 1
      %p74 = scmp.eq.s32.totalorder %s15, 1
      %p75 = scmp.ne.s32.totalorder %s70, %s72
      %p76 = scmp.eq.s32.totalorder %s15, 0
      %p77 = por %p75, %p76
      %p78 = scmp.ne.s32.totalorder %s70, %s72
      %p79 = scmp.eq.s32.totalorder %s20, 1
      %p80 = por %p78, %p79
      %p81 = scmp.ne.s32.totalorder %s72, %s73
      %p82 = scmp.eq.s32.totalorder %s20, 0
      %p83 = por %p81, %p82
      %p84 = scmp.ne.s32.totalorder %s72, %s73
      %p85 = scmp.eq.s32.totalorder %s21, 1
      %p86 = por %p84, %p85
      %p88 = scmp.ne.s32.totalorder %s73, %s87
      %p89 = scmp.eq.s32.totalorder %s21, 0
      %p90 = por %p88, %p89
      %s92 = sadd.s32 %s91, 1
      %p95 = scmp.eq.s32.totalorder %s15, 1
      %p96 = scmp.ne.s32.totalorder %s91, %s93
      %p97 = scmp.eq.s32.totalorder %s15, 0
      %p98 = por %p96, %p97
      %p99 = scmp.ne.s32.totalorder %s91, %s93
      %p100 = scmp.eq.s32.totalorder %s20, 1
      %p101 = por %p99, %p100
      %p102 = scmp.ne.s32.totalorder %s93, %s94
      %p103 = scmp.eq.s32.totalorder %s20, 0
      %p104 = por %p102, %p103
      %p105 = scmp.ne.s32.totalorder %s93, %s94
      %p106 = scmp.eq.s32.totalorder %s21, 1
      %p107 = por %p105, %p106
      %p109 = scmp.ne.s32.totalorder %s94, %s108
      %p110 = scmp.eq.s32.totalorder %s21, 0
      %p111 = por %p109, %p110
      %s113 = sadd.s32 %s112, 1
      %p116 = scmp.eq.s32.totalorder %s15, 1
      %p117 = scmp.ne.s32.totalorder %s112, %s114
      %p118 = scmp.eq.s32.totalorder %s15, 0
      %p119 = por %p117, %p118
      %p120 = scmp.ne.s32.totalorder %s112, %s114
      %p121 = scmp.eq.s32.totalorder %s20, 1
      %p122 = por %p120, %p121
      %p123 = scmp.ne.s32.totalorder %s114, %s115
      %p124 = scmp.eq.s32.totalorder %s20, 0
      %p125 = por %p123, %p124
      %p126 = scmp.ne.s32.totalorder %s114, %s115
      %p127 = scmp.eq.s32.totalorder %s21, 1
      %p128 = por %p126, %p127
      %p130 = scmp.ne.s32.totalorder %s115, %s129
      %p131 = scmp.eq.s32.totalorder %s21, 0
      %p132 = por %p130, %p131
      %s134 = sadd.s32 %s133, 1
      %p137 = scmp.eq.s32.totalorder %s15, 1
      %p138 = scmp.ne.s32.totalorder %s133, %s135
      %p139 = scmp.eq.s32.totalorder %s15, 0
      %p140 = por %p138, %p139
      %p141 = scmp.ne.s32.totalorder %s133, %s135
      %p142 = scmp.eq.s32.totalorder %s20, 1
      %p143 = por %p141, %p142
      %p144 = scmp.ne.s32.totalorder %s135, %s136
      %p145 = scmp.eq.s32.totalorder %s20, 0
      %p146 = por %p144, %p145
      %p147 = scmp.ne.s32.totalorder %s135, %s136
      %p148 = scmp.eq.s32.totalorder %s21, 1
      %p149 = por %p147, %p148
      %p151 = scmp.ne.s32.totalorder %s136, %s150
      %p152 = scmp.eq.s32.totalorder %s21, 0
      %p153 = por %p151, %p152
      %s155 = sadd.s32 %s154, 1
      %p158 = scmp.eq.s32.totalorder %s15, 1
      %p159 = scmp.ne.s32.totalorder %s154, %s156
      %p160 = scmp.eq.s32.totalorder %s15, 0
      %p161 = por %p159, %p160
      %p162 = scmp.ne.s32.totalorder %s154, %s156
      %p163 = scmp.eq.s32.totalorder %s20, 1
      %p164 = por %p162, %p163
      %p165 = scmp.ne.s32.totalorder %s156, %s157
      %p166 = scmp.eq.s32.totalorder %s20, 0
      %p167 = por %p165, %p166
      %p168 = scmp.ne.s32.totalorder %s156, %s157
      %p169 = scmp.eq.s32.totalorder %s21, 1
      %p170 = por %p168, %p169
      %p172 = scmp.ne.s32.totalorder %s157, %s171
      %p173 = scmp.eq.s32.totalorder %s21, 0
      %p174 = por %p172, %p173
      %s175 = ssub.s32 %s15, %s22
      %p176 = scmp.eq.s32.totalorder %s175, 0
      %s178 = sadd.s32 %s177, 1
      %s179 = scalar_select %p176, %s177, %s178
      %p182 = pneg %p176
      %p183 = scmp.eq.s32.totalorder %s15, 1
      %p184 = por %p182, %p183
      %p185 = scmp.ne.s32.totalorder %s177, %s180
      %p186 = scmp.eq.s32.totalorder %s15, 0
      %p187 = por %p185, %p186
      %p188 = scmp.ne.s32.totalorder %s177, %s180
      %p189 = scmp.eq.s32.totalorder %s20, 1
      %p190 = por %p188, %p189
      %p191 = scmp.ne.s32.totalorder %s180, %s181
      %p192 = scmp.eq.s32.totalorder %s20, 0
      %p193 = por %p191, %p192
      %p194 = scmp.ne.s32.totalorder %s180, %s181
      %p195 = scmp.eq.s32.totalorder %s21, 1
      %p196 = por %p194, %p195
      %p198 = scmp.ne.s32.totalorder %s181, %s197
      %p199 = scmp.eq.s32.totalorder %s21, 0
      %p200 = por %p198, %p199
      %p201 = scmp.le.s32.totalorder 1, %s15
      %p202 = scmp.lt.s32.totalorder %s15, 3
      %p203 = pnand %p201, %p202
      %p204 = pneg %p203
      // Predicated region
      $region9: #{bossnet_forward.5} parent=5 // pred_check
        _
      $region10: #{bossnet_forward.5} parent=5 // pred_check_branch
        %206 = sbr.rel (%p203) target = $region12
      $region11: #{bossnet_forward.5} parent=5 // pred_region
        %s207 = ssub.s32 %s15, 1
        // Predicated region
        $region13: #{bossnet_forward.5} parent=11 // pred_check
          %p208 = pneg %p62
        $region14: #{bossnet_forward.5} parent=11 // pred_check_branch
          %210 = sbr.rel (%p208) target = $region16
        $region15: #{bossnet_forward.5} parent=11 // pred_region
          _
        $region16: #{bossnet_forward.5} parent=11 // pred_fallthru
          _
        // Predicated region
        $region17: #{bossnet_forward.5} parent=11 // pred_check
          %p211 = pneg %p83
        $region18: #{bossnet_forward.5} parent=11 // pred_check_branch
          %213 = sbr.rel (%p211) target = $region20
        $region19: #{bossnet_forward.5} parent=11 // pred_region
          _
        $region20: #{bossnet_forward.5} parent=11 // pred_fallthru
          _
        // Predicated region
        $region21: #{bossnet_forward.5} parent=11 // pred_check
          %p214 = pneg %p104
        $region22: #{bossnet_forward.5} parent=11 // pred_check_branch
          %216 = sbr.rel (%p214) target = $region24
        $region23: #{bossnet_forward.5} parent=11 // pred_region
          %s218 = ssub.s32 3072, 3072
          %219 = vsyncadd [#allocation4], %s218
          %s220 = sshll.u32 [#allocation3], 4
          %s221 = int_to_ptr.vmem [resolvable:$true] %s220
          %226 = dma.hbm_to_vmem [thread:$0]  %s3, 3072, %s221, [#allocation4], 64, 64, 4
        $region24: #{bossnet_forward.5} parent=11 // pred_fallthru
          _
        // Predicated region
        $region25: #{bossnet_forward.5} parent=11 // pred_check
          %p227 = pneg %p125
        $region26: #{bossnet_forward.5} parent=11 // pred_check_branch
          %229 = sbr.rel (%p227) target = $region28
        $region27: #{bossnet_forward.5} parent=11 // pred_region
          _
        $region28: #{bossnet_forward.5} parent=11 // pred_fallthru
          _
        // Predicated region
        $region29: #{bossnet_forward.5} parent=11 // pred_check
          %p230 = pneg %p146
        $region30: #{bossnet_forward.5} parent=11 // pred_check_branch
          %232 = sbr.rel (%p230) target = $region32
        $region31: #{bossnet_forward.5} parent=11 // pred_region
          %s234 = ssub.s32 1024, 1024
          %235 = vsyncadd [#allocation6], %s234
          %s236 = sshll.u32 [#allocation5], 4
          %s237 = int_to_ptr.vmem [resolvable:$true] %s236
          %242 = dma.hbm_to_vmem [thread:$0]  %s5, 1024, %s237, [#allocation6], 64, 64, 4
        $region32: #{bossnet_forward.5} parent=11 // pred_fallthru
          _
        // Predicated region
        $region33: #{bossnet_forward.5} parent=11 // pred_check
          %p243 = pneg %p167
        $region34: #{bossnet_forward.5} parent=11 // pred_check_branch
          %245 = sbr.rel (%p243) target = $region36
        $region35: #{bossnet_forward.5} parent=11 // pred_region
          _
        $region36: #{bossnet_forward.5} parent=11 // pred_fallthru
          _
      $region12: #{bossnet_forward.5} parent=5 // pred_fallthru
        _
      %p246 = scmp.lt.s32.totalorder %s15, 2
      // Predicated region
      $region37: #{bossnet_forward.5} parent=5 // pred_check
        %p247 = pneg %p246
      $region38: #{bossnet_forward.5} parent=5 // pred_check_branch
        %249 = sbr.rel (%p247) target = $region40
      $region39: #{bossnet_forward.5} parent=5 // pred_region
        // Predicated region
        $region41: #{bossnet_forward.5} parent=39 // pred_check
          %p250 = pneg %p35
        $region42: #{bossnet_forward.5} parent=39 // pred_check_branch
          %252 = sbr.rel (%p250) target = $region44
        $region43: #{bossnet_forward.5} parent=39 // pred_region
          %p253 = scmp.lt.s32.totalorder %s15, 1
          %s254 = scalar_select %p253, %s15, 1
          %s255 = smul.addr %s254, 3
          %s256 = smul.addr %s255, 4
          %s257 = scalar_lea.vmem %s0, %s256
        $region44: #{bossnet_forward.5} parent=39 // pred_fallthru
          _
      $region40: #{bossnet_forward.5} parent=5 // pred_fallthru
        _
      %p258 = scmp.le.s32.totalorder 1, %s15
      %p259 = scmp.lt.s32.totalorder %s15, 3
      %p260 = pnand %p258, %p259
      %p261 = pneg %p260
      // Predicated region
      $region45: #{bossnet_forward.5} parent=5 // pred_check
        _
      $region46: #{bossnet_forward.5} parent=5 // pred_check_branch
        %263 = sbr.rel (%p260) target = $region48
      $region47: #{bossnet_forward.5} parent=5 // pred_region
        %s264 = ssub.s32 %s15, 1
        // Predicated region
        $region49: #{bossnet_forward.5} parent=47 // pred_check
          %p265 = pneg %p104
        $region50: #{bossnet_forward.5} parent=47 // pred_check_branch
          %267 = sbr.rel (%p265) target = $region52
        $region51: #{bossnet_forward.5} parent=47 // pred_region
          %268 = dma.done [#allocation4], 3072
        $region52: #{bossnet_forward.5} parent=47 // pred_fallthru
          _
        // Predicated region
        $region53: #{bossnet_forward.5} parent=47 // pred_check
          %p269 = pneg %p146
        $region54: #{bossnet_forward.5} parent=47 // pred_check_branch
          %271 = sbr.rel (%p269) target = $region56
        $region55: #{bossnet_forward.5} parent=47 // pred_region
          %272 = dma.done [#allocation6], 1024
        $region56: #{bossnet_forward.5} parent=47 // pred_fallthru
          _
        %p273 = scmp.lt.s32.totalorder %s20, 1
        %s274 = scalar_select %p273, %s20, 1
        %s275 = smul.addr %s274, 3
        %s276 = smul.addr %s275, 4
        %s277 = scalar_lea.vmem %s0, %s276
        %p278 = pneg %p41
        %p279 = pneg %p38
        %p280 = pneg %p62
        %p281 = pneg %p59
        %p282 = pneg %p83
        %p283 = pneg %p80
        %p284 = pneg %p104
        %p285 = pneg %p101
        %p286 = pneg %p125
        %p287 = pneg %p122
        %p288 = pneg %p146
        %p289 = pneg %p143
        %p290 = pneg %p167
        %p291 = pneg %p164
        %p292 = pneg %p193
        %p293 = pneg %p190
        %p294 = scmp.lt.s32.totalorder %s20, 1
        %s295 = scalar_select %p294, %s20, 1
        %s296 = smul.addr %s295, 3
        %s297 = smul.addr %s296, 4
        %s298 = scalar_lea.vmem %s7, %s297
        %p299 = scmp.lt.s32.totalorder %s20, 1
        %s300 = scalar_select %p299, %s20, 1
        %s301 = smul.addr %s300, 3
        %s302 = smul.addr %s301, 4
        %s303 = scalar_lea.vmem %s0, %s302
        %p304 = scmp.lt.s32.totalorder %s20, 1
        %s305 = scalar_select %p304, %s20, 1
        %s306 = smul.addr %s305, 3
        %s307 = smul.addr %s306, 4
        %s308 = scalar_lea.vmem %s7, %s307
        %v310 = vld [vmem:[%s303] sm:$0xf]
        %v311 = vld [vmem:[%s303 + $0x4] sm:$0xf]
        %v312 = vld [vmem:[%s303 + $0x8] sm:$0x1]
        %v313 = vld [vmem:[%s1] sm:$0xf]
        %v314 = vld [vmem:[%s1 + $0x4] sm:$0xf]
        %v315 = vld [vmem:[%s1 + $0x8] sm:$0xf]
        %v316 = vld [vmem:[%s1 + $0xc] sm:$0xf]
        %v317 = vld [vmem:[%s1 + $0x10] sm:$0xf]
        %v318 = vld [vmem:[%s1 + $0x14] sm:$0xf]
        %v319 = vld [vmem:[%s1 + $0x18] sm:$0xf]
        %v320 = vld [vmem:[%s1 + $0x1c] sm:$0xf]
        %v321 = vld [vmem:[%s1 + $0x20] sm:$0xf]
        %v322 = vld [vmem:[%s1 + $0x24] sm:$0xf]
        %v323 = vld [vmem:[%s1 + $0x28] sm:$0xf]
        %v324 = vld [vmem:[%s1 + $0x2c] sm:$0xf]
        %v325 = vld [vmem:[%s1 + $0x30] sm:$0xf]
        %v326 = vld [vmem:[%s1 + $0x34] sm:$0xf]
        %v327 = vld [vmem:[%s1 + $0x38] sm:$0xf]
        %v328 = vld [vmem:[%s1 + $0x3c] sm:$0xf]
        %s329 = scalar_lea.vmem %s1, 64
        %v330 = vld [vmem:[%s329] sm:$0xf]
        %v331 = vld [vmem:[%s329 + $0x4] sm:$0xf]
        %v332 = vld [vmem:[%s329 + $0x8] sm:$0xf]
        %v333 = vld [vmem:[%s329 + $0xc] sm:$0xf]
        %v334 = vld [vmem:[%s329 + $0x10] sm:$0xf]
        %v335 = vld [vmem:[%s329 + $0x14] sm:$0xf]
        %v336 = vld [vmem:[%s329 + $0x18] sm:$0xf]
        %v337 = vld [vmem:[%s329 + $0x1c] sm:$0xf]
        %v338 = vld [vmem:[%s329 + $0x20] sm:$0xf]
        %v339 = vld [vmem:[%s329 + $0x24] sm:$0xf]
        %v340 = vld [vmem:[%s329 + $0x28] sm:$0xf]
        %v341 = vld [vmem:[%s329 + $0x2c] sm:$0xf]
        %v342 = vld [vmem:[%s329 + $0x30] sm:$0xf]
        %v343 = vld [vmem:[%s329 + $0x34] sm:$0xf]
        %v344 = vld [vmem:[%s329 + $0x38] sm:$0xf]
        %v345 = vld [vmem:[%s329 + $0x3c] sm:$0xf]
        %v349 = vunpack.c.l.b16 %v310
        %v350 = vunpack.c.l.b16 %v311
        %v351 = vunpack.c.l.b16 %v312
        %v352 = vpack.c.b16 %v350, %v349
        %v353 = vpack.c.b16 %v351, %v351
        %vm354 = vsmask.f32 7424
        %v356 = vshrl.u32 %v352, 16
        %v358 = vshll.u32 %v352, 16
        %v360 = vrot.slane %v358, 1
        %v361 = vor.u32 %v356, %v360
        %v363 = vshll.u32 %v353, 16
        %v365 = vrot.slane %v363, 1
        %v366 = vsel %vm354, %v361, %v365
        %v384 = vunpack.c.l.b16 %v330
        %v385 = vunpack.c.l.b16 %v331
        %v386 = vunpack.c.l.b16 %v332
        %v387 = vunpack.c.l.b16 %v333
        %v388 = vunpack.c.l.b16 %v334
        %v389 = vunpack.c.l.b16 %v335
        %v390 = vunpack.c.l.b16 %v336
        %v391 = vunpack.c.l.b16 %v337
        %v392 = vunpack.c.l.b16 %v338
        %v393 = vunpack.c.l.b16 %v339
        %v394 = vunpack.c.l.b16 %v340
        %v395 = vunpack.c.l.b16 %v341
        %v396 = vunpack.c.l.b16 %v342
        %v397 = vunpack.c.l.b16 %v343
        %v398 = vunpack.c.l.b16 %v344
        %v399 = vunpack.c.l.b16 %v345
        %v400 = vpack.c.b16 %v385, %v384
        %v401 = vpack.c.b16 %v387, %v386
        %v402 = vpack.c.b16 %v389, %v388
        %v403 = vpack.c.b16 %v391, %v390
        %v404 = vpack.c.b16 %v393, %v392
        %v405 = vpack.c.b16 %v395, %v394
        %v406 = vpack.c.b16 %v397, %v396
        %v407 = vpack.c.b16 %v399, %v398
        %416 = vmatprep.subr.bf16.mxu0 0
        %417 = vmatpush1.bf16.msra.mxu0 %v407
        %418 = vmatprep.subr.bf16.mxu0 0
        %419 = vmatpush1.bf16.msra.mxu0 %v406
        %420 = vmatprep.subr.bf16.mxu0 0
        %421 = vmatpush1.bf16.msra.mxu0 %v405
        %422 = vmatprep.subr.bf16.mxu0 0
        %423 = vmatpush1.bf16.msra.mxu0 %v404
        %424 = vmatprep.subr.bf16.mxu0 0
        %425 = vmatpush1.bf16.msra.mxu0 %v403
        %426 = vmatprep.subr.bf16.mxu0 0
        %427 = vmatpush1.bf16.msra.mxu0 %v402
        %428 = vmatprep.subr.bf16.mxu0 0
        %429 = vmatpush1.bf16.msra.mxu0 %v401
        %430 = vmatprep.subr.bf16.mxu0 0
        %431 = vmatpush1.bf16.msra.mxu0 %v400
        %432 = vmatprep.subr.bf16.mxu0 0
        %433 = vmatpush2.bf16.msra.mxu0 0
        %434 = vmatprep.subr.bf16.mxu0 0
        %435 = vmatpush2.bf16.msra.mxu0 0
        %436 = vmatprep.subr.bf16.mxu0 0
        %437 = vmatpush2.bf16.msra.mxu0 0
        %438 = vmatprep.subr.bf16.mxu0 0
        %439 = vmatpush2.bf16.msra.mxu0 0
        %440 = vmatprep.subr.bf16.mxu0 0
        %441 = vmatpush2.bf16.msra.mxu0 0
        %442 = vmatprep.subr.bf16.mxu0 0
        %443 = vmatpush2.bf16.msra.mxu0 0
        %444 = vmatprep.subr.bf16.mxu0 0
        %445 = vmatpush2.bf16.msra.mxu0 0
        %446 = vmatprep.subr.bf16.mxu0 0
        %447 = vmatpush2.bf16.msra.mxu0 0
        %448 = vmatprep.mubr.bf16.mxu0 0
        %449 = vmatmul.mubr.bf16.gmra.mxu0 %v366
        %v450 = vpop.f32.mrf.mxu0
        %v451 = vadd.f32 0.0, %v450
        %v452 = vpop.f32.mrf.mxu0
        %v453 = vpop.f32.mrf.mxu0
        %v454 = vadd.f32 0.0, %v453
        %v455 = vpop.f32.mrf.mxu0
        %456 = vdwg.mxu0
        %v474 = vunpack.c.l.b16 %v313
        %v475 = vunpack.c.l.b16 %v314
        %v476 = vunpack.c.l.b16 %v315
        %v477 = vunpack.c.l.b16 %v316
        %v478 = vunpack.c.l.b16 %v317
        %v479 = vunpack.c.l.b16 %v318
        %v480 = vunpack.c.l.b16 %v319
        %v481 = vunpack.c.l.b16 %v320
        %v482 = vunpack.c.l.b16 %v321
        %v483 = vunpack.c.l.b16 %v322
        %v484 = vunpack.c.l.b16 %v323
        %v485 = vunpack.c.l.b16 %v324
        %v486 = vunpack.c.l.b16 %v325
        %v487 = vunpack.c.l.b16 %v326
        %v488 = vunpack.c.l.b16 %v327
        %v489 = vunpack.c.l.b16 %v328
        %v490 = vpack.c.b16 %v475, %v474
        %v491 = vpack.c.b16 %v477, %v476
        %v492 = vpack.c.b16 %v479, %v478
        %v493 = vpack.c.b16 %v481, %v480
        %v494 = vpack.c.b16 %v483, %v482
        %v495 = vpack.c.b16 %v485, %v484
        %v496 = vpack.c.b16 %v487, %v486
        %v497 = vpack.c.b16 %v489, %v488
        %506 = vmatprep.subr.bf16.mxu0 0
        %507 = vmatpush1.bf16.msra.mxu0 %v497
        %508 = vmatprep.subr.bf16.mxu0 0
        %509 = vmatpush1.bf16.msra.mxu0 %v496
        %510 = vmatprep.subr.bf16.mxu0 0
        %511 = vmatpush1.bf16.msra.mxu0 %v495
        %512 = vmatprep.subr.bf16.mxu0 0
        %513 = vmatpush1.bf16.msra.mxu0 %v494
        %514 = vmatprep.subr.bf16.mxu0 0
        %515 = vmatpush1.bf16.msra.mxu0 %v493
        %516 = vmatprep.subr.bf16.mxu0 0
        %517 = vmatpush1.bf16.msra.mxu0 %v492
        %518 = vmatprep.subr.bf16.mxu0 0
        %519 = vmatpush1.bf16.msra.mxu0 %v491
        %520 = vmatprep.subr.bf16.mxu0 0
        %521 = vmatpush1.bf16.msra.mxu0 %v490
        %522 = vmatprep.subr.bf16.mxu0 0
        %523 = vmatpush2.bf16.msra.mxu0 0
        %524 = vmatprep.subr.bf16.mxu0 0
        %525 = vmatpush2.bf16.msra.mxu0 0
        %526 = vmatprep.subr.bf16.mxu0 0
        %527 = vmatpush2.bf16.msra.mxu0 0
        %528 = vmatprep.subr.bf16.mxu0 0
        %529 = vmatpush2.bf16.msra.mxu0 0
        %530 = vmatprep.subr.bf16.mxu0 0
        %531 = vmatpush2.bf16.msra.mxu0 0
        %532 = vmatprep.subr.bf16.mxu0 0
        %533 = vmatpush2.bf16.msra.mxu0 0
        %534 = vmatprep.subr.bf16.mxu0 0
        %535 = vmatpush2.bf16.msra.mxu0 0
        %536 = vmatprep.subr.bf16.mxu0 0
        %537 = vmatpush2.bf16.msra.mxu0 0
        %538 = vmatprep.mubr.bf16.mxu0 0
        %539 = vmatmul.mubr.bf16.gmra.mxu0 %v352
        %v540 = vpop.f32.mrf.mxu0
        %v541 = vadd.f32 %v451, %v540
        %v542 = vpop.f32.mrf.mxu0
        %v543 = vpop.f32.mrf.mxu0
        %v544 = vadd.f32 %v454, %v543
        %v545 = vpop.f32.mrf.mxu0
        %546 = vdwg.mxu0
        %s547 = scalar_lea.vmem %s1, 128
        %v548 = vld [vmem:[%s547] sm:$0xf]
        %v549 = vld [vmem:[%s547 + $0x4] sm:$0xf]
        %v550 = vld [vmem:[%s547 + $0x8] sm:$0xf]
        %v551 = vld [vmem:[%s547 + $0xc] sm:$0xf]
        %v552 = vld [vmem:[%s547 + $0x10] sm:$0xf]
        %v553 = vld [vmem:[%s547 + $0x14] sm:$0xf]
        %v554 = vld [vmem:[%s547 + $0x18] sm:$0xf]
        %v555 = vld [vmem:[%s547 + $0x1c] sm:$0xf]
        %v556 = vld [vmem:[%s547 + $0x20] sm:$0xf]
        %v557 = vld [vmem:[%s547 + $0x24] sm:$0xf]
        %v558 = vld [vmem:[%s547 + $0x28] sm:$0xf]
        %v559 = vld [vmem:[%s547 + $0x2c] sm:$0xf]
        %v560 = vld [vmem:[%s547 + $0x30] sm:$0xf]
        %v561 = vld [vmem:[%s547 + $0x34] sm:$0xf]
        %v562 = vld [vmem:[%s547 + $0x38] sm:$0xf]
        %v563 = vld [vmem:[%s547 + $0x3c] sm:$0xf]
        %vm564 = vcmask 1046528
        %v565 = vrot.slane %v352, 1
        %v566 = vrot.slane %v353, 1
        %v567 = vsel %vm564, %v565, %v566
        %v585 = vunpack.c.l.b16 %v548
        %v586 = vunpack.c.l.b16 %v549
        %v587 = vunpack.c.l.b16 %v550
        %v588 = vunpack.c.l.b16 %v551
        %v589 = vunpack.c.l.b16 %v552
        %v590 = vunpack.c.l.b16 %v553
        %v591 = vunpack.c.l.b16 %v554
        %v592 = vunpack.c.l.b16 %v555
        %v593 = vunpack.c.l.b16 %v556
        %v594 = vunpack.c.l.b16 %v557
        %v595 = vunpack.c.l.b16 %v558
        %v596 = vunpack.c.l.b16 %v559
        %v597 = vunpack.c.l.b16 %v560
        %v598 = vunpack.c.l.b16 %v561
        %v599 = vunpack.c.l.b16 %v562
        %v600 = vunpack.c.l.b16 %v563
        %v601 = vpack.c.b16 %v586, %v585
        %v602 = vpack.c.b16 %v588, %v587
        %v603 = vpack.c.b16 %v590, %v589
        %v604 = vpack.c.b16 %v592, %v591
        %v605 = vpack.c.b16 %v594, %v593
        %v606 = vpack.c.b16 %v596, %v595
        %v607 = vpack.c.b16 %v598, %v597
        %v608 = vpack.c.b16 %v600, %v599
        %617 = vmatprep.subr.bf16.mxu0 0
        %618 = vmatpush1.bf16.msra.mxu0 %v608
        %619 = vmatprep.subr.bf16.mxu0 0
        %620 = vmatpush1.bf16.msra.mxu0 %v607
        %621 = vmatprep.subr.bf16.mxu0 0
        %622 = vmatpush1.bf16.msra.mxu0 %v606
        %623 = vmatprep.subr.bf16.mxu0 0
        %624 = vmatpush1.bf16.msra.mxu0 %v605
        %625 = vmatprep.subr.bf16.mxu0 0
        %626 = vmatpush1.bf16.msra.mxu0 %v604
        %627 = vmatprep.subr.bf16.mxu0 0
        %628 = vmatpush1.bf16.msra.mxu0 %v603
        %629 = vmatprep.subr.bf16.mxu0 0
        %630 = vmatpush1.bf16.msra.mxu0 %v602
        %631 = vmatprep.subr.bf16.mxu0 0
        %632 = vmatpush1.bf16.msra.mxu0 %v601
        %633 = vmatprep.subr.bf16.mxu0 0
        %634 = vmatpush2.bf16.msra.mxu0 0
        %635 = vmatprep.subr.bf16.mxu0 0
        %636 = vmatpush2.bf16.msra.mxu0 0
        %637 = vmatprep.subr.bf16.mxu0 0
        %638 = vmatpush2.bf16.msra.mxu0 0
        %639 = vmatprep.subr.bf16.mxu0 0
        %640 = vmatpush2.bf16.msra.mxu0 0
        %641 = vmatprep.subr.bf16.mxu0 0
        %642 = vmatpush2.bf16.msra.mxu0 0
        %643 = vmatprep.subr.bf16.mxu0 0
        %644 = vmatpush2.bf16.msra.mxu0 0
        %645 = vmatprep.subr.bf16.mxu0 0
        %646 = vmatpush2.bf16.msra.mxu0 0
        %647 = vmatprep.subr.bf16.mxu0 0
        %648 = vmatpush2.bf16.msra.mxu0 0
        %649 = vmatprep.mubr.bf16.mxu0 0
        %650 = vmatmul.mubr.bf16.gmra.mxu0 %v567
        %v651 = vpop.f32.mrf.mxu0
        %v652 = vadd.f32 0.0, %v651
        %v653 = vpop.f32.mrf.mxu0
        %v654 = vpop.f32.mrf.mxu0
        %v655 = vadd.f32 0.0, %v654
        %v656 = vpop.f32.mrf.mxu0
        %657 = vdwg.mxu0
        %v658 = vadd.f32 %v541, %v652
        %v659 = vadd.f32 %v544, %v655
        %v660 = vld [vmem:[%s2] sm:$0x1]
        %v662 = vlaneseq
        %v663 = vshrl.u32 %v662, 7
        %v664 = vsub.s32 0, %v663
        %v665 = vrot.slane %v660, %v664
        %v667 = vadd.f32 %v658, %v665
        %v668 = vadd.f32 %v659, %v665
        %v669 = vmax.f32 %v667, 0.0
        %v670 = vmax.f32 %v668, 0.0
        %vm671 = vcmask 1040384
        %vm672 = vsmask.f32 256
        %vm673 = vmand %vm671, %vm672
        %v674 = vld [vmem:[#allocation2] sm:$0x1]
        %v675 = vsel %vm673, 0, %v674
        %676 = vst [vmem:[#allocation2] sm:$0x1] %v675
        %v677 = vpack.c.bf16 %v670, %v669
        %v679 = vunpack.c.l.b16 %v677
        %v680 = vunpack.c.h.b16 %v677
        %v681 = vpack.c.b16 %v679, %v679
        %v682 = vpack.c.b16 %v680, %v680
        %vm683 = vsmask.f32 4368
        %vm684 = vmor %vm672, %vm683
        %v686 = vshrl.u32 %v681, 16
        %v688 = vrot.slane %v686, 7
        %v689 = vshll.u32 %v681, 16
        %v691 = vor.u32 %v688, %v689
        %v692 = vrot.slane %v688, 4
        %v694 = vshrl.u32 %v682, 16
        %v696 = vrot.slane %v694, 7
        %v697 = vshll.u32 %v682, 16
        %v699 = vor.u32 %v696, %v697
        %v700 = vsel %vm684, %v692, %v699
        %v701 = vrot.slane %v696, 4
        %vm705 = vcmask 1043456
        %vm706 = vsmask.f32 7938
        %vm707 = vmand %vm705, %vm706
        %v708 = vld [vmem:[#allocation2] sm:$0xf]
        %v709 = vsel %vm707, %v691, %v708
        %710 = vst [vmem:[#allocation2] sm:$0xf] %v709
        %711 = vst [vmem:[#allocation2 + $0x4] sm:$0xf] %v700
        %v712 = vld [vmem:[#allocation2 + $0x8] sm:$0x1]
        %v713 = vsel %vm673, %v701, %v712
        %714 = vst [vmem:[#allocation2 + $0x8] sm:$0x1] %v713
        %vm715 = vmand %vm671, %vm706
        %v716 = vld [vmem:[#allocation2 + $0x8] sm:$0x1]
        %v717 = vsel %vm715, 0, %v716
        %718 = vst [vmem:[#allocation2 + $0x8] sm:$0x1] %v717
        %v719 = vld [vmem:[#allocation2] sm:$0xf]
        %v720 = vld [vmem:[#allocation2 + $0x4] sm:$0xf]
        %v721 = vld [vmem:[#allocation2 + $0x8] sm:$0x1]
        %v722 = vld [vmem:[#allocation3] sm:$0xf]
        %v723 = vld [vmem:[#allocation3 + $0x4] sm:$0xf]
        %v724 = vld [vmem:[#allocation3 + $0x8] sm:$0xf]
        %v725 = vld [vmem:[#allocation3 + $0xc] sm:$0xf]
        %v726 = vld [vmem:[#allocation3 + $0x10] sm:$0xf]
        %v727 = vld [vmem:[#allocation3 + $0x14] sm:$0xf]
        %v728 = vld [vmem:[#allocation3 + $0x18] sm:$0xf]
        %v729 = vld [vmem:[#allocation3 + $0x1c] sm:$0xf]
        %v730 = vld [vmem:[#allocation3 + $0x20] sm:$0xf]
        %v731 = vld [vmem:[#allocation3 + $0x24] sm:$0xf]
        %v732 = vld [vmem:[#allocation3 + $0x28] sm:$0xf]
        %v733 = vld [vmem:[#allocation3 + $0x2c] sm:$0xf]
        %v734 = vld [vmem:[#allocation3 + $0x30] sm:$0xf]
        %v735 = vld [vmem:[#allocation3 + $0x34] sm:$0xf]
        %v736 = vld [vmem:[#allocation3 + $0x38] sm:$0xf]
        %v737 = vld [vmem:[#allocation3 + $0x3c] sm:$0xf]
        %s738 = scalar_lea.vmem [#allocation3], 64
        %v739 = vld [vmem:[%s738] sm:$0xf]
        %v740 = vld [vmem:[%s738 + $0x4] sm:$0xf]
        %v741 = vld [vmem:[%s738 + $0x8] sm:$0xf]
        %v742 = vld [vmem:[%s738 + $0xc] sm:$0xf]
        %v743 = vld [vmem:[%s738 + $0x10] sm:$0xf]
        %v744 = vld [vmem:[%s738 + $0x14] sm:$0xf]
        %v745 = vld [vmem:[%s738 + $0x18] sm:$0xf]
        %v746 = vld [vmem:[%s738 + $0x1c] sm:$0xf]
        %v747 = vld [vmem:[%s738 + $0x20] sm:$0xf]
        %v748 = vld [vmem:[%s738 + $0x24] sm:$0xf]
        %v749 = vld [vmem:[%s738 + $0x28] sm:$0xf]
        %v750 = vld [vmem:[%s738 + $0x2c] sm:$0xf]
        %v751 = vld [vmem:[%s738 + $0x30] sm:$0xf]
        %v752 = vld [vmem:[%s738 + $0x34] sm:$0xf]
        %v753 = vld [vmem:[%s738 + $0x38] sm:$0xf]
        %v754 = vld [vmem:[%s738 + $0x3c] sm:$0xf]
        %v758 = vunpack.c.l.b16 %v719
        %v759 = vunpack.c.l.b16 %v720
        %v760 = vunpack.c.l.b16 %v721
        %v761 = vpack.c.b16 %v759, %v758
        %v762 = vpack.c.b16 %v760, %v760
        %v764 = vshrl.u32 %v761, 16
        %v766 = vshll.u32 %v761, 16
        %v768 = vrot.slane %v766, 1
        %v769 = vor.u32 %v764, %v768
        %v771 = vshll.u32 %v762, 16
        %v773 = vrot.slane %v771, 1
        %v774 = vsel %vm354, %v769, %v773
        %v792 = vunpack.c.l.b16 %v739
        %v793 = vunpack.c.l.b16 %v740
        %v794 = vunpack.c.l.b16 %v741
        %v795 = vunpack.c.l.b16 %v742
        %v796 = vunpack.c.l.b16 %v743
        %v797 = vunpack.c.l.b16 %v744
        %v798 = vunpack.c.l.b16 %v745
        %v799 = vunpack.c.l.b16 %v746
        %v800 = vunpack.c.l.b16 %v747
        %v801 = vunpack.c.l.b16 %v748
        %v802 = vunpack.c.l.b16 %v749
        %v803 = vunpack.c.l.b16 %v750
        %v804 = vunpack.c.l.b16 %v751
        %v805 = vunpack.c.l.b16 %v752
        %v806 = vunpack.c.l.b16 %v753
        %v807 = vunpack.c.l.b16 %v754
        %v808 = vpack.c.b16 %v793, %v792
        %v809 = vpack.c.b16 %v795, %v794
        %v810 = vpack.c.b16 %v797, %v796
        %v811 = vpack.c.b16 %v799, %v798
        %v812 = vpack.c.b16 %v801, %v800
        %v813 = vpack.c.b16 %v803, %v802
        %v814 = vpack.c.b16 %v805, %v804
        %v815 = vpack.c.b16 %v807, %v806
        %824 = vmatprep.subr.bf16.mxu0 0
        %825 = vmatpush1.bf16.msra.mxu0 %v815
        %826 = vmatprep.subr.bf16.mxu0 0
        %827 = vmatpush1.bf16.msra.mxu0 %v814
        %828 = vmatprep.subr.bf16.mxu0 0
        %829 = vmatpush1.bf16.msra.mxu0 %v813
        %830 = vmatprep.subr.bf16.mxu0 0
        %831 = vmatpush1.bf16.msra.mxu0 %v812
        %832 = vmatprep.subr.bf16.mxu0 0
        %833 = vmatpush1.bf16.msra.mxu0 %v811
        %834 = vmatprep.subr.bf16.mxu0 0
        %835 = vmatpush1.bf16.msra.mxu0 %v810
        %836 = vmatprep.subr.bf16.mxu0 0
        %837 = vmatpush1.bf16.msra.mxu0 %v809
        %838 = vmatprep.subr.bf16.mxu0 0
        %839 = vmatpush1.bf16.msra.mxu0 %v808
        %840 = vmatprep.subr.bf16.mxu0 0
        %841 = vmatpush2.bf16.msra.mxu0 0
        %842 = vmatprep.subr.bf16.mxu0 0
        %843 = vmatpush2.bf16.msra.mxu0 0
        %844 = vmatprep.subr.bf16.mxu0 0
        %845 = vmatpush2.bf16.msra.mxu0 0
        %846 = vmatprep.subr.bf16.mxu0 0
        %847 = vmatpush2.bf16.msra.mxu0 0
        %848 = vmatprep.subr.bf16.mxu0 0
        %849 = vmatpush2.bf16.msra.mxu0 0
        %850 = vmatprep.subr.bf16.mxu0 0
        %851 = vmatpush2.bf16.msra.mxu0 0
        %852 = vmatprep.subr.bf16.mxu0 0
        %853 = vmatpush2.bf16.msra.mxu0 0
        %854 = vmatprep.subr.bf16.mxu0 0
        %855 = vmatpush2.bf16.msra.mxu0 0
        %856 = vmatprep.mubr.bf16.mxu0 0
        %857 = vmatmul.mubr.bf16.gmra.mxu0 %v774
        %v858 = vpop.f32.mrf.mxu0
        %v859 = vadd.f32 0.0, %v858
        %v860 = vpop.f32.mrf.mxu0
        %v861 = vpop.f32.mrf.mxu0
        %v862 = vadd.f32 0.0, %v861
        %v863 = vpop.f32.mrf.mxu0
        %864 = vdwg.mxu0
        %v882 = vunpack.c.l.b16 %v722
        %v883 = vunpack.c.l.b16 %v723
        %v884 = vunpack.c.l.b16 %v724
        %v885 = vunpack.c.l.b16 %v725
        %v886 = vunpack.c.l.b16 %v726
        %v887 = vunpack.c.l.b16 %v727
        %v888 = vunpack.c.l.b16 %v728
        %v889 = vunpack.c.l.b16 %v729
        %v890 = vunpack.c.l.b16 %v730
        %v891 = vunpack.c.l.b16 %v731
        %v892 = vunpack.c.l.b16 %v732
        %v893 = vunpack.c.l.b16 %v733
        %v894 = vunpack.c.l.b16 %v734
        %v895 = vunpack.c.l.b16 %v735
        %v896 = vunpack.c.l.b16 %v736
        %v897 = vunpack.c.l.b16 %v737
        %v898 = vpack.c.b16 %v883, %v882
        %v899 = vpack.c.b16 %v885, %v884
        %v900 = vpack.c.b16 %v887, %v886
        %v901 = vpack.c.b16 %v889, %v888
        %v902 = vpack.c.b16 %v891, %v890
        %v903 = vpack.c.b16 %v893, %v892
        %v904 = vpack.c.b16 %v895, %v894
        %v905 = vpack.c.b16 %v897, %v896
        %914 = vmatprep.subr.bf16.mxu0 0
        %915 = vmatpush1.bf16.msra.mxu0 %v905
        %916 = vmatprep.subr.bf16.mxu0 0
        %917 = vmatpush1.bf16.msra.mxu0 %v904
        %918 = vmatprep.subr.bf16.mxu0 0
        %919 = vmatpush1.bf16.msra.mxu0 %v903
        %920 = vmatprep.subr.bf16.mxu0 0
        %921 = vmatpush1.bf16.msra.mxu0 %v902
        %922 = vmatprep.subr.bf16.mxu0 0
        %923 = vmatpush1.bf16.msra.mxu0 %v901
        %924 = vmatprep.subr.bf16.mxu0 0
        %925 = vmatpush1.bf16.msra.mxu0 %v900
        %926 = vmatprep.subr.bf16.mxu0 0
        %927 = vmatpush1.bf16.msra.mxu0 %v899
        %928 = vmatprep.subr.bf16.mxu0 0
        %929 = vmatpush1.bf16.msra.mxu0 %v898
        %930 = vmatprep.subr.bf16.mxu0 0
        %931 = vmatpush2.bf16.msra.mxu0 0
        %932 = vmatprep.subr.bf16.mxu0 0
        %933 = vmatpush2.bf16.msra.mxu0 0
        %934 = vmatprep.subr.bf16.mxu0 0
        %935 = vmatpush2.bf16.msra.mxu0 0
        %936 = vmatprep.subr.bf16.mxu0 0
        %937 = vmatpush2.bf16.msra.mxu0 0
        %938 = vmatprep.subr.bf16.mxu0 0
        %939 = vmatpush2.bf16.msra.mxu0 0
        %940 = vmatprep.subr.bf16.mxu0 0
        %941 = vmatpush2.bf16.msra.mxu0 0
        %942 = vmatprep.subr.bf16.mxu0 0
        %943 = vmatpush2.bf16.msra.mxu0 0
        %944 = vmatprep.subr.bf16.mxu0 0
        %945 = vmatpush2.bf16.msra.mxu0 0
        %946 = vmatprep.mubr.bf16.mxu0 0
        %947 = vmatmul.mubr.bf16.gmra.mxu0 %v761
        %v948 = vpop.f32.mrf.mxu0
        %v949 = vadd.f32 %v859, %v948
        %v950 = vpop.f32.mrf.mxu0
        %v951 = vpop.f32.mrf.mxu0
        %v952 = vadd.f32 %v862, %v951
        %v953 = vpop.f32.mrf.mxu0
        %954 = vdwg.mxu0
        %s955 = scalar_lea.vmem [#allocation3], 128
        %v956 = vld [vmem:[%s955] sm:$0xf]
        %v957 = vld [vmem:[%s955 + $0x4] sm:$0xf]
        %v958 = vld [vmem:[%s955 + $0x8] sm:$0xf]
        %v959 = vld [vmem:[%s955 + $0xc] sm:$0xf]
        %v960 = vld [vmem:[%s955 + $0x10] sm:$0xf]
        %v961 = vld [vmem:[%s955 + $0x14] sm:$0xf]
        %v962 = vld [vmem:[%s955 + $0x18] sm:$0xf]
        %v963 = vld [vmem:[%s955 + $0x1c] sm:$0xf]
        %v964 = vld [vmem:[%s955 + $0x20] sm:$0xf]
        %v965 = vld [vmem:[%s955 + $0x24] sm:$0xf]
        %v966 = vld [vmem:[%s955 + $0x28] sm:$0xf]
        %v967 = vld [vmem:[%s955 + $0x2c] sm:$0xf]
        %v968 = vld [vmem:[%s955 + $0x30] sm:$0xf]
        %v969 = vld [vmem:[%s955 + $0x34] sm:$0xf]
        %v970 = vld [vmem:[%s955 + $0x38] sm:$0xf]
        %v971 = vld [vmem:[%s955 + $0x3c] sm:$0xf]
        %v972 = vrot.slane %v761, 1
        %v973 = vrot.slane %v762, 1
        %v974 = vsel %vm564, %v972, %v973
        %v992 = vunpack.c.l.b16 %v956
        %v993 = vunpack.c.l.b16 %v957
        %v994 = vunpack.c.l.b16 %v958
        %v995 = vunpack.c.l.b16 %v959
        %v996 = vunpack.c.l.b16 %v960
        %v997 = vunpack.c.l.b16 %v961
        %v998 = vunpack.c.l.b16 %v962
        %v999 = vunpack.c.l.b16 %v963
        %v1000 = vunpack.c.l.b16 %v964
        %v1001 = vunpack.c.l.b16 %v965
        %v1002 = vunpack.c.l.b16 %v966
        %v1003 = vunpack.c.l.b16 %v967
        %v1004 = vunpack.c.l.b16 %v968
        %v1005 = vunpack.c.l.b16 %v969
        %v1006 = vunpack.c.l.b16 %v970
        %v1007 = vunpack.c.l.b16 %v971
        %v1008 = vpack.c.b16 %v993, %v992
        %v1009 = vpack.c.b16 %v995, %v994
        %v1010 = vpack.c.b16 %v997, %v996
        %v1011 = vpack.c.b16 %v999, %v998
        %v1012 = vpack.c.b16 %v1001, %v1000
        %v1013 = vpack.c.b16 %v1003, %v1002
        %v1014 = vpack.c.b16 %v1005, %v1004
        %v1015 = vpack.c.b16 %v1007, %v1006
        %1024 = vmatprep.subr.bf16.mxu0 0
        %1025 = vmatpush1.bf16.msra.mxu0 %v1015
        %1026 = vmatprep.subr.bf16.mxu0 0
        %1027 = vmatpush1.bf16.msra.mxu0 %v1014
        %1028 = vmatprep.subr.bf16.mxu0 0
        %1029 = vmatpush1.bf16.msra.mxu0 %v1013
        %1030 = vmatprep.subr.bf16.mxu0 0
        %1031 = vmatpush1.bf16.msra.mxu0 %v1012
        %1032 = vmatprep.subr.bf16.mxu0 0
        %1033 = vmatpush1.bf16.msra.mxu0 %v1011
        %1034 = vmatprep.subr.bf16.mxu0 0
        %1035 = vmatpush1.bf16.msra.mxu0 %v1010
        %1036 = vmatprep.subr.bf16.mxu0 0
        %1037 = vmatpush1.bf16.msra.mxu0 %v1009
        %1038 = vmatprep.subr.bf16.mxu0 0
        %1039 = vmatpush1.bf16.msra.mxu0 %v1008
        %1040 = vmatprep.subr.bf16.mxu0 0
        %1041 = vmatpush2.bf16.msra.mxu0 0
        %1042 = vmatprep.subr.bf16.mxu0 0
        %1043 = vmatpush2.bf16.msra.mxu0 0
        %1044 = vmatprep.subr.bf16.mxu0 0
        %1045 = vmatpush2.bf16.msra.mxu0 0
        %1046 = vmatprep.subr.bf16.mxu0 0
        %1047 = vmatpush2.bf16.msra.mxu0 0
        %1048 = vmatprep.subr.bf16.mxu0 0
        %1049 = vmatpush2.bf16.msra.mxu0 0
        %1050 = vmatprep.subr.bf16.mxu0 0
        %1051 = vmatpush2.bf16.msra.mxu0 0
        %1052 = vmatprep.subr.bf16.mxu0 0
        %1053 = vmatpush2.bf16.msra.mxu0 0
        %1054 = vmatprep.subr.bf16.mxu0 0
        %1055 = vmatpush2.bf16.msra.mxu0 0
        %1056 = vmatprep.mubr.bf16.mxu0 0
        %1057 = vmatmul.mubr.bf16.gmra.mxu0 %v974
        %v1058 = vpop.f32.mrf.mxu0
        %v1059 = vadd.f32 0.0, %v1058
        %v1060 = vpop.f32.mrf.mxu0
        %v1061 = vpop.f32.mrf.mxu0
        %v1062 = vadd.f32 0.0, %v1061
        %v1063 = vpop.f32.mrf.mxu0
        %1064 = vdwg.mxu0
        %v1065 = vadd.f32 %v949, %v1059
        %v1066 = vadd.f32 %v952, %v1062
        %v1067 = vld [vmem:[%s4] sm:$0x1]
        %v1069 = vlaneseq
        %v1070 = vshrl.u32 %v1069, 7
        %v1071 = vsub.s32 0, %v1070
        %v1072 = vrot.slane %v1067, %v1071
        %v1074 = vadd.f32 %v1065, %v1072
        %v1075 = vadd.f32 %v1066, %v1072
        %v1076 = vmax.f32 %v1074, 0.0
        %v1077 = vmax.f32 %v1075, 0.0
        %v1078 = vld [vmem:[#allocation5] sm:$0xf]
        %v1079 = vld [vmem:[#allocation5 + $0x4] sm:$0xf]
        %v1080 = vld [vmem:[#allocation5 + $0x8] sm:$0xf]
        %v1081 = vld [vmem:[#allocation5 + $0xc] sm:$0xf]
        %v1082 = vld [vmem:[#allocation5 + $0x10] sm:$0xf]
        %v1083 = vld [vmem:[#allocation5 + $0x14] sm:$0xf]
        %v1084 = vld [vmem:[#allocation5 + $0x18] sm:$0xf]
        %v1085 = vld [vmem:[#allocation5 + $0x1c] sm:$0xf]
        %v1086 = vld [vmem:[#allocation5 + $0x20] sm:$0xf]
        %v1087 = vld [vmem:[#allocation5 + $0x24] sm:$0xf]
        %v1088 = vld [vmem:[#allocation5 + $0x28] sm:$0xf]
        %v1089 = vld [vmem:[#allocation5 + $0x2c] sm:$0xf]
        %v1090 = vld [vmem:[#allocation5 + $0x30] sm:$0xf]
        %v1091 = vld [vmem:[#allocation5 + $0x34] sm:$0xf]
        %v1092 = vld [vmem:[#allocation5 + $0x38] sm:$0xf]
        %v1093 = vld [vmem:[#allocation5 + $0x3c] sm:$0xf]
        %v1094 = vld [vmem:[%s6] sm:$0x1]
        %v1096 = vlaneseq
        %v1097 = vshrl.u32 %v1096, 7
        %v1098 = vsub.s32 0, %v1097
        %v1099 = vrot.slane %v1094, %v1098
        %v1117 = vunpack.c.l.b16 %v1078
        %v1118 = vunpack.c.l.b16 %v1079
        %v1119 = vunpack.c.l.b16 %v1080
        %v1120 = vunpack.c.l.b16 %v1081
        %v1121 = vunpack.c.l.b16 %v1082
        %v1122 = vunpack.c.l.b16 %v1083
        %v1123 = vunpack.c.l.b16 %v1084
        %v1124 = vunpack.c.l.b16 %v1085
        %v1125 = vunpack.c.l.b16 %v1086
        %v1126 = vunpack.c.l.b16 %v1087
        %v1127 = vunpack.c.l.b16 %v1088
        %v1128 = vunpack.c.l.b16 %v1089
        %v1129 = vunpack.c.l.b16 %v1090
        %v1130 = vunpack.c.l.b16 %v1091
        %v1131 = vunpack.c.l.b16 %v1092
        %v1132 = vunpack.c.l.b16 %v1093
        %v1133 = vpack.c.b16 %v1118, %v1117
        %v1134 = vpack.c.b16 %v1120, %v1119
        %v1135 = vpack.c.b16 %v1122, %v1121
        %v1136 = vpack.c.b16 %v1124, %v1123
        %v1137 = vpack.c.b16 %v1126, %v1125
        %v1138 = vpack.c.b16 %v1128, %v1127
        %v1139 = vpack.c.b16 %v1130, %v1129
        %v1140 = vpack.c.b16 %v1132, %v1131
        %1149 = vmatprep.subr.bf16.mxu0 0
        %1150 = vmatpush1.bf16.msra.mxu0 %v1140
        %1151 = vmatprep.subr.bf16.mxu0 0
        %1152 = vmatpush1.bf16.msra.mxu0 %v1139
        %1153 = vmatprep.subr.bf16.mxu0 0
        %1154 = vmatpush1.bf16.msra.mxu0 %v1138
        %1155 = vmatprep.subr.bf16.mxu0 0
        %1156 = vmatpush1.bf16.msra.mxu0 %v1137
        %1157 = vmatprep.subr.bf16.mxu0 0
        %1158 = vmatpush1.bf16.msra.mxu0 %v1136
        %1159 = vmatprep.subr.bf16.mxu0 0
        %1160 = vmatpush1.bf16.msra.mxu0 %v1135
        %1161 = vmatprep.subr.bf16.mxu0 0
        %1162 = vmatpush1.bf16.msra.mxu0 %v1134
        %1163 = vmatprep.subr.bf16.mxu0 0
        %1164 = vmatpush1.bf16.msra.mxu0 %v1133
        %1165 = vmatprep.subr.bf16.mxu0 0
        %1166 = vmatpush2.bf16.msra.mxu0 0
        %1167 = vmatprep.subr.bf16.mxu0 0
        %1168 = vmatpush2.bf16.msra.mxu0 0
        %1169 = vmatprep.subr.bf16.mxu0 0
        %1170 = vmatpush2.bf16.msra.mxu0 0
        %1171 = vmatprep.subr.bf16.mxu0 0
        %1172 = vmatpush2.bf16.msra.mxu0 0
        %1173 = vmatprep.subr.bf16.mxu0 0
        %1174 = vmatpush2.bf16.msra.mxu0 0
        %1175 = vmatprep.subr.bf16.mxu0 0
        %1176 = vmatpush2.bf16.msra.mxu0 0
        %1177 = vmatprep.subr.bf16.mxu0 0
        %1178 = vmatpush2.bf16.msra.mxu0 0
        %1179 = vmatprep.subr.bf16.mxu0 0
        %1180 = vmatpush2.bf16.msra.mxu0 0
        %1181 = vmatprep.mubr.bf16.mxu0 0
        %1182 = vmatmul.mubr.bf16.gmra.mxu0 %v366
        %v1183 = vpop.f32.mrf.mxu0
        %v1184 = vadd.f32 %v1099, %v1183
        %v1185 = vpop.f32.mrf.mxu0
        %v1186 = vpop.f32.mrf.mxu0
        %v1187 = vadd.f32 %v1099, %v1186
        %v1188 = vpop.f32.mrf.mxu0
        %1189 = vdwg.mxu0
        %v1190 = vadd.f32 %v1076, %v1184
        %v1191 = vadd.f32 %v1077, %v1187
        %v1192 = vld [vmem:[%s308] sm:$0x1]
        %v1193 = vsel %vm673, 0, %v1192
        %1194 = vst [vmem:[%s308] sm:$0x1] %v1193
        %v1195 = vpack.c.bf16 %v1191, %v1190
        %v1197 = vunpack.c.l.b16 %v1195
        %v1198 = vunpack.c.h.b16 %v1195
        %v1199 = vpack.c.b16 %v1197, %v1197
        %v1200 = vpack.c.b16 %v1198, %v1198
        %v1202 = vshrl.u32 %v1199, 16
        %v1204 = vrot.slane %v1202, 7
        %v1205 = vshll.u32 %v1199, 16
        %v1207 = vor.u32 %v1204, %v1205
        %v1208 = vrot.slane %v1204, 4
        %v1210 = vshrl.u32 %v1200, 16
        %v1212 = vrot.slane %v1210, 7
        %v1213 = vshll.u32 %v1200, 16
        %v1215 = vor.u32 %v1212, %v1213
        %v1216 = vsel %vm684, %v1208, %v1215
        %v1217 = vrot.slane %v1212, 4
        %v1221 = vld [vmem:[%s308] sm:$0xf]
        %v1222 = vsel %vm707, %v1207, %v1221
        %1223 = vst [vmem:[%s308] sm:$0xf] %v1222
        %1224 = vst [vmem:[%s308 + $0x4] sm:$0xf] %v1216
        %v1225 = vld [vmem:[%s308 + $0x8] sm:$0x1]
        %v1226 = vsel %vm673, %v1217, %v1225
        %1227 = vst [vmem:[%s308 + $0x8] sm:$0x1] %v1226
        %v1228 = vld [vmem:[%s308 + $0x8] sm:$0x1]
        %v1229 = vsel %vm715, 0, %v1228
        %1230 = vst [vmem:[%s308 + $0x8] sm:$0x1] %v1229
        %p1231 = scmp.lt.s32.totalorder %s20, 1
        %s1232 = scalar_select %p1231, %s20, 1
        %s1233 = smul.addr %s1232, 3
        %s1234 = smul.addr %s1233, 4
        %s1235 = scalar_lea.vmem %s7, %s1234
        // Predicated region
        $region57: #{bossnet_forward.5} parent=47 // pred_check
          %p1236 = pneg %p190
        $region58: #{bossnet_forward.5} parent=47 // pred_check_branch
          %1238 = sbr.rel (%p1236) target = $region60
        $region59: #{bossnet_forward.5} parent=47 // pred_region
          _
        $region60: #{bossnet_forward.5} parent=47 // pred_fallthru
          _
      $region48: #{bossnet_forward.5} parent=5 // pred_fallthru
        _
      %p1239 = scmp.le.s32.totalorder 2, %s15
      // Predicated region
      $region61: #{bossnet_forward.5} parent=5 // pred_check
        %p1240 = pneg %p1239
      $region62: #{bossnet_forward.5} parent=5 // pred_check_branch
        %1242 = sbr.rel (%p1240) target = $region64
      $region63: #{bossnet_forward.5} parent=5 // pred_region
        %s1243 = ssub.s32 %s15, 2
        // Predicated region
        $region65: #{bossnet_forward.5} parent=63 // pred_check
          %p1244 = pneg %p196
        $region66: #{bossnet_forward.5} parent=63 // pred_check_branch
          %1246 = sbr.rel (%p1244) target = $region68
        $region67: #{bossnet_forward.5} parent=63 // pred_region
          %p1247 = scmp.lt.s32.totalorder %s21, 1
          %s1248 = scalar_select %p1247, %s21, 1
          %s1249 = smul.addr %s1248, 3
          %s1250 = smul.addr %s1249, 4
          %s1251 = scalar_lea.vmem %s7, %s1250
        $region68: #{bossnet_forward.5} parent=63 // pred_fallthru
          _
      $region64: #{bossnet_forward.5} parent=5 // pred_fallthru
        _
    $region6: #{bossnet_forward.5} parent=1 // loop_footer
      %s19 = sadd.s32 1, %s15
    $region7: #{bossnet_forward.5} parent=1 // loop_footer_branch
      %14 = sbr.rel target = $region3
    $region8: #{bossnet_forward.5} parent=1 // loop_exit
      _
    %1252 = vsyncpa [#allocation4], 1
    %s1253 = scalar_lea.sflag [#allocation4], 1
    %1254 = vsyncpa %s1253, 1
    %1255 = vsyncpa [#allocation6], 1

// kernel: bossnet_forward.6
$region0: #{bossnet_forward.6}
  #allocation0 [shape = 'u32[]', space=smem, size = 0x4, offset = 0x4, fixed_abs, tag = 'smem constant byte address 0x4 - core index']
  #allocation1 [shape = 'u32[144,128]{1,0:T(1,128)}', space=vmem, size = 0x12000, scoped, tag = 'internal scratch']
  #allocation2 [shape = 'bf16[18,128]{1,0:T(8,128)(2,1)}', space=vmem, size = 0x1800, scoped, tag = 'scratch operand']
  %s0 = inlined_call_operand.vmem [shape: bf16[2,18,128], index: 0, kind: input, shape index: {}]
  %s1 = inlined_call_operand.vmem [shape: bf16[3,128,128], index: 1, kind: input, shape index: {}]
  %s2 = inlined_call_operand.vmem [shape: f32[1,128], index: 2, kind: input, shape index: {}]
  %s3 = inlined_call_operand.vmem [shape: bf16[3,128,128], index: 3, kind: input, shape index: {}]
  %s4 = inlined_call_operand.vmem [shape: f32[1,128], index: 4, kind: input, shape index: {}]
  %s5 = inlined_call_operand.vmem [shape: bf16[128,128], index: 5, kind: input, shape index: {}]
  %s6 = inlined_call_operand.vmem [shape: f32[1,128], index: 6, kind: input, shape index: {}]
  %s7 = inlined_call_operand.vmem [shape: f32[2,1,512], index: 7, kind: output, shape index: {}]
  %s8 = sld [smem:[#allocation0]]
  $region61: #{bossnet_forward.6} parent=0
    _
  %s10 = ssub.s32 1, %s8
  %s11 = scalar_select 0, %s10, %s8
  loop: start=0, step=1, limit=4
  $region2: #{bossnet_forward.6} parent=0 // loop_pre_header
    _
  $region3: #{bossnet_forward.6} parent=0 // loop_header
    %s13 = sphi 0, %s17
    %p14 = scmp.ge.s32.totalorder %s13, 4
    %s23 = sphi 0, %s25
    %s26 = sphi 0, %s23
    %s27 = sphi 0, %s26
    %s43 = sphi 0, %s27
    %s47 = sphi 0, %s47
    %s49 = sphi 0, %s47
    %s50 = sphi 0, %s49
    %s64 = sphi 0, %s50
    %s68 = sphi 0, %s68
    %s70 = sphi 0, %s68
    %s71 = sphi 0, %s70
    %s85 = sphi 0, %s71
    %s89 = sphi 0, %s89
    %s91 = sphi 0, %s89
    %s92 = sphi 0, %s91
    %s106 = sphi 0, %s92
    %s110 = sphi 0, %s110
    %s112 = sphi 0, %s110
    %s113 = sphi 0, %s112
    %s127 = sphi 0, %s113
    %s131 = sphi 0, %s131
    %s133 = sphi 0, %s131
    %s134 = sphi 0, %s133
    %s148 = sphi 0, %s134
    %s152 = sphi 0, %s152
    %s154 = sphi 0, %s152
    %s155 = sphi 0, %s154
    %s169 = sphi 0, %s155
    %s175 = sphi 0, %s177
    %s178 = sphi 0, %s175
    %s179 = sphi 0, %s178
    %s195 = sphi 0, %s179
  $region4: #{bossnet_forward.6} parent=0 // loop_header_branch
    %16 = sbr.rel (%p14) target = $region8
  $region5: #{bossnet_forward.6} parent=0 // loop_body
    %s18 = ssub.s32 %s13, 1
    %s19 = ssub.s32 %s13, 2
    %s20 = sadd.s32 %s13, 1
    %s21 = ssub.s32 %s13, %s20
    %p22 = scmp.eq.s32.totalorder %s21, 0
    %s24 = sadd.s32 %s23, 1
    %s25 = scalar_select %p22, %s23, %s24
    %p28 = pneg %p22
    %p29 = scmp.eq.s32.totalorder %s13, 1
    %p30 = por %p28, %p29
    %p31 = scmp.ne.s32.totalorder %s23, %s26
    %p32 = scmp.eq.s32.totalorder %s13, 0
    %p33 = por %p31, %p32
    %p34 = scmp.ne.s32.totalorder %s23, %s26
    %p35 = scmp.eq.s32.totalorder %s18, 1
    %p36 = por %p34, %p35
    %p37 = scmp.ne.s32.totalorder %s26, %s27
    %p38 = scmp.eq.s32.totalorder %s18, 0
    %p39 = por %p37, %p38
    %p40 = scmp.ne.s32.totalorder %s26, %s27
    %p41 = scmp.eq.s32.totalorder %s19, 1
    %p42 = por %p40, %p41
    %p44 = scmp.ne.s32.totalorder %s27, %s43
    %p45 = scmp.eq.s32.totalorder %s19, 0
    %p46 = por %p44, %p45
    %s48 = sadd.s32 %s47, 1
    %p51 = scmp.eq.s32.totalorder %s13, 1
    %p52 = scmp.ne.s32.totalorder %s47, %s49
    %p53 = scmp.eq.s32.totalorder %s13, 0
    %p54 = por %p52, %p53
    %p55 = scmp.ne.s32.totalorder %s47, %s49
    %p56 = scmp.eq.s32.totalorder %s18, 1
    %p57 = por %p55, %p56
    %p58 = scmp.ne.s32.totalorder %s49, %s50
    %p59 = scmp.eq.s32.totalorder %s18, 0
    %p60 = por %p58, %p59
    %p61 = scmp.ne.s32.totalorder %s49, %s50
    %p62 = scmp.eq.s32.totalorder %s19, 1
    %p63 = por %p61, %p62
    %p65 = scmp.ne.s32.totalorder %s50, %s64
    %p66 = scmp.eq.s32.totalorder %s19, 0
    %p67 = por %p65, %p66
    %s69 = sadd.s32 %s68, 1
    %p72 = scmp.eq.s32.totalorder %s13, 1
    %p73 = scmp.ne.s32.totalorder %s68, %s70
    %p74 = scmp.eq.s32.totalorder %s13, 0
    %p75 = por %p73, %p74
    %p76 = scmp.ne.s32.totalorder %s68, %s70
    %p77 = scmp.eq.s32.totalorder %s18, 1
    %p78 = por %p76, %p77
    %p79 = scmp.ne.s32.totalorder %s70, %s71
    %p80 = scmp.eq.s32.totalorder %s18, 0
    %p81 = por %p79, %p80
    %p82 = scmp.ne.s32.totalorder %s70, %s71
    %p83 = scmp.eq.s32.totalorder %s19, 1
    %p84 = por %p82, %p83
    %p86 = scmp.ne.s32.totalorder %s71, %s85
    %p87 = scmp.eq.s32.totalorder %s19, 0
    %p88 = por %p86, %p87
    %s90 = sadd.s32 %s89, 1
    %p93 = scmp.eq.s32.totalorder %s13, 1
    %p94 = scmp.ne.s32.totalorder %s89, %s91
    %p95 = scmp.eq.s32.totalorder %s13, 0
    %p96 = por %p94, %p95
    %p97 = scmp.ne.s32.totalorder %s89, %s91
    %p98 = scmp.eq.s32.totalorder %s18, 1
    %p99 = por %p97, %p98
    %p100 = scmp.ne.s32.totalorder %s91, %s92
    %p101 = scmp.eq.s32.totalorder %s18, 0
    %p102 = por %p100, %p101
    %p103 = scmp.ne.s32.totalorder %s91, %s92
    %p104 = scmp.eq.s32.totalorder %s19, 1
    %p105 = por %p103, %p104
    %p107 = scmp.ne.s32.totalorder %s92, %s106
    %p108 = scmp.eq.s32.totalorder %s19, 0
    %p109 = por %p107, %p108
    %s111 = sadd.s32 %s110, 1
    %p114 = scmp.eq.s32.totalorder %s13, 1
    %p115 = scmp.ne.s32.totalorder %s110, %s112
    %p116 = scmp.eq.s32.totalorder %s13, 0
    %p117 = por %p115, %p116
    %p118 = scmp.ne.s32.totalorder %s110, %s112
    %p119 = scmp.eq.s32.totalorder %s18, 1
    %p120 = por %p118, %p119
    %p121 = scmp.ne.s32.totalorder %s112, %s113
    %p122 = scmp.eq.s32.totalorder %s18, 0
    %p123 = por %p121, %p122
    %p124 = scmp.ne.s32.totalorder %s112, %s113
    %p125 = scmp.eq.s32.totalorder %s19, 1
    %p126 = por %p124, %p125
    %p128 = scmp.ne.s32.totalorder %s113, %s127
    %p129 = scmp.eq.s32.totalorder %s19, 0
    %p130 = por %p128, %p129
    %s132 = sadd.s32 %s131, 1
    %p135 = scmp.eq.s32.totalorder %s13, 1
    %p136 = scmp.ne.s32.totalorder %s131, %s133
    %p137 = scmp.eq.s32.totalorder %s13, 0
    %p138 = por %p136, %p137
    %p139 = scmp.ne.s32.totalorder %s131, %s133
    %p140 = scmp.eq.s32.totalorder %s18, 1
    %p141 = por %p139, %p140
    %p142 = scmp.ne.s32.totalorder %s133, %s134
    %p143 = scmp.eq.s32.totalorder %s18, 0
    %p144 = por %p142, %p143
    %p145 = scmp.ne.s32.totalorder %s133, %s134
    %p146 = scmp.eq.s32.totalorder %s19, 1
    %p147 = por %p145, %p146
    %p149 = scmp.ne.s32.totalorder %s134, %s148
    %p150 = scmp.eq.s32.totalorder %s19, 0
    %p151 = por %p149, %p150
    %s153 = sadd.s32 %s152, 1
    %p156 = scmp.eq.s32.totalorder %s13, 1
    %p157 = scmp.ne.s32.totalorder %s152, %s154
    %p158 = scmp.eq.s32.totalorder %s13, 0
    %p159 = por %p157, %p158
    %p160 = scmp.ne.s32.totalorder %s152, %s154
    %p161 = scmp.eq.s32.totalorder %s18, 1
    %p162 = por %p160, %p161
    %p163 = scmp.ne.s32.totalorder %s154, %s155
    %p164 = scmp.eq.s32.totalorder %s18, 0
    %p165 = por %p163, %p164
    %p166 = scmp.ne.s32.totalorder %s154, %s155
    %p167 = scmp.eq.s32.totalorder %s19, 1
    %p168 = por %p166, %p167
    %p170 = scmp.ne.s32.totalorder %s155, %s169
    %p171 = scmp.eq.s32.totalorder %s19, 0
    %p172 = por %p170, %p171
    %s173 = ssub.s32 %s13, %s20
    %p174 = scmp.eq.s32.totalorder %s173, 0
    %s176 = sadd.s32 %s175, 1
    %s177 = scalar_select %p174, %s175, %s176
    %p180 = pneg %p174
    %p181 = scmp.eq.s32.totalorder %s13, 1
    %p182 = por %p180, %p181
    %p183 = scmp.ne.s32.totalorder %s175, %s178
    %p184 = scmp.eq.s32.totalorder %s13, 0
    %p185 = por %p183, %p184
    %p186 = scmp.ne.s32.totalorder %s175, %s178
    %p187 = scmp.eq.s32.totalorder %s18, 1
    %p188 = por %p186, %p187
    %p189 = scmp.ne.s32.totalorder %s178, %s179
    %p190 = scmp.eq.s32.totalorder %s18, 0
    %p191 = por %p189, %p190
    %p192 = scmp.ne.s32.totalorder %s178, %s179
    %p193 = scmp.eq.s32.totalorder %s19, 1
    %p194 = por %p192, %p193
    %p196 = scmp.ne.s32.totalorder %s179, %s195
    %p197 = scmp.eq.s32.totalorder %s19, 0
    %p198 = por %p196, %p197
    %p199 = scmp.le.s32.totalorder 1, %s13
    %p200 = scmp.lt.s32.totalorder %s13, 3
    %p201 = pnand %p199, %p200
    %p202 = pneg %p201
    // Predicated region
    $region9: #{bossnet_forward.6} parent=5 // pred_check
      _
    $region10: #{bossnet_forward.6} parent=5 // pred_check_branch
      %204 = sbr.rel (%p201) target = $region12
    $region11: #{bossnet_forward.6} parent=5 // pred_region
      %s205 = ssub.s32 %s13, 1
      // Predicated region
      $region13: #{bossnet_forward.6} parent=11 // pred_check
        %p206 = pneg %p60
      $region14: #{bossnet_forward.6} parent=11 // pred_check_branch
        %208 = sbr.rel (%p206) target = $region16
      $region15: #{bossnet_forward.6} parent=11 // pred_region
        _
      $region16: #{bossnet_forward.6} parent=11 // pred_fallthru
        _
      // Predicated region
      $region17: #{bossnet_forward.6} parent=11 // pred_check
        %p209 = pneg %p81
      $region18: #{bossnet_forward.6} parent=11 // pred_check_branch
        %211 = sbr.rel (%p209) target = $region20
      $region19: #{bossnet_forward.6} parent=11 // pred_region
        _
      $region20: #{bossnet_forward.6} parent=11 // pred_fallthru
        _
      // Predicated region
      $region21: #{bossnet_forward.6} parent=11 // pred_check
        %p212 = pneg %p102
      $region22: #{bossnet_forward.6} parent=11 // pred_check_branch
        %214 = sbr.rel (%p212) target = $region24
      $region23: #{bossnet_forward.6} parent=11 // pred_region
        _
      $region24: #{bossnet_forward.6} parent=11 // pred_fallthru
        _
      // Predicated region
      $region25: #{bossnet_forward.6} parent=11 // pred_check
        %p215 = pneg %p123
      $region26: #{bossnet_forward.6} parent=11 // pred_check_branch
        %217 = sbr.rel (%p215) target = $region28
      $region27: #{bossnet_forward.6} parent=11 // pred_region
        _
      $region28: #{bossnet_forward.6} parent=11 // pred_fallthru
        _
      // Predicated region
      $region29: #{bossnet_forward.6} parent=11 // pred_check
        %p218 = pneg %p144
      $region30: #{bossnet_forward.6} parent=11 // pred_check_branch
        %220 = sbr.rel (%p218) target = $region32
      $region31: #{bossnet_forward.6} parent=11 // pred_region
        _
      $region32: #{bossnet_forward.6} parent=11 // pred_fallthru
        _
      // Predicated region
      $region33: #{bossnet_forward.6} parent=11 // pred_check
        %p221 = pneg %p165
      $region34: #{bossnet_forward.6} parent=11 // pred_check_branch
        %223 = sbr.rel (%p221) target = $region36
      $region35: #{bossnet_forward.6} parent=11 // pred_region
        _
      $region36: #{bossnet_forward.6} parent=11 // pred_fallthru
        _
    $region12: #{bossnet_forward.6} parent=5 // pred_fallthru
      _
    %p224 = scmp.lt.s32.totalorder %s13, 2
    // Predicated region
    $region37: #{bossnet_forward.6} parent=5 // pred_check
      %p225 = pneg %p224
    $region38: #{bossnet_forward.6} parent=5 // pred_check_branch
      %227 = sbr.rel (%p225) target = $region40
    $region39: #{bossnet_forward.6} parent=5 // pred_region
      // Predicated region
      $region41: #{bossnet_forward.6} parent=39 // pred_check
        %p228 = pneg %p33
      $region42: #{bossnet_forward.6} parent=39 // pred_check_branch
        %230 = sbr.rel (%p228) target = $region44
      $region43: #{bossnet_forward.6} parent=39 // pred_region
        %p231 = scmp.lt.s32.totalorder %s13, 1
        %s232 = scalar_select %p231, %s13, 1
        %s233 = smul.addr %s232, 3
        %s234 = smul.addr %s233, 4
        %s235 = scalar_lea.vmem %s0, %s234
      $region44: #{bossnet_forward.6} parent=39 // pred_fallthru
        _
    $region40: #{bossnet_forward.6} parent=5 // pred_fallthru
      _
    %p236 = scmp.le.s32.totalorder 1, %s13
    %p237 = scmp.lt.s32.totalorder %s13, 3
    %p238 = pnand %p236, %p237
    %p239 = pneg %p238
    // Predicated region
    $region45: #{bossnet_forward.6} parent=5 // pred_check
      _
    $region46: #{bossnet_forward.6} parent=5 // pred_check_branch
      %241 = sbr.rel (%p238) target = $region48
    $region47: #{bossnet_forward.6} parent=5 // pred_region
      %s242 = ssub.s32 %s13, 1
      %p243 = scmp.lt.s32.totalorder %s18, 1
      %s244 = scalar_select %p243, %s18, 1
      %s245 = smul.addr %s244, 3
      %s246 = smul.addr %s245, 4
      %s247 = scalar_lea.vmem %s0, %s246
      %p248 = pneg %p39
      %p249 = pneg %p36
      %p250 = pneg %p60
      %p251 = pneg %p57
      %p252 = pneg %p81
      %p253 = pneg %p78
      %p254 = pneg %p102
      %p255 = pneg %p99
      %p256 = pneg %p123
      %p257 = pneg %p120
      %p258 = pneg %p144
      %p259 = pneg %p141
      %p260 = pneg %p165
      %p261 = pneg %p162
      %p262 = pneg %p191
      %p263 = pneg %p188
      %p264 = scmp.lt.s32.totalorder %s18, 1
      %s265 = scalar_select %p264, %s18, 1
      %s266 = smul.addr %s265, 4
      %s267 = scalar_lea.vmem %s7, %s266
      %p268 = scmp.lt.s32.totalorder %s18, 1
      %s269 = scalar_select %p268, %s18, 1
      %s270 = smul.addr %s269, 3
      %s271 = smul.addr %s270, 4
      %s272 = scalar_lea.vmem %s0, %s271
      %p273 = scmp.lt.s32.totalorder %s18, 1
      %s274 = scalar_select %p273, %s18, 1
      %s275 = smul.addr %s274, 4
      %s276 = scalar_lea.vmem %s7, %s275
      %v278 = vld [vmem:[%s272] sm:$0xf]
      %v279 = vld [vmem:[%s272 + $0x4] sm:$0xf]
      %v280 = vld [vmem:[%s272 + $0x8] sm:$0x1]
      %v281 = vld [vmem:[%s1] sm:$0xf]
      %v282 = vld [vmem:[%s1 + $0x4] sm:$0xf]
      %v283 = vld [vmem:[%s1 + $0x8] sm:$0xf]
      %v284 = vld [vmem:[%s1 + $0xc] sm:$0xf]
      %v285 = vld [vmem:[%s1 + $0x10] sm:$0xf]
      %v286 = vld [vmem:[%s1 + $0x14] sm:$0xf]
      %v287 = vld [vmem:[%s1 + $0x18] sm:$0xf]
      %v288 = vld [vmem:[%s1 + $0x1c] sm:$0xf]
      %v289 = vld [vmem:[%s1 + $0x20] sm:$0xf]
      %v290 = vld [vmem:[%s1 + $0x24] sm:$0xf]
      %v291 = vld [vmem:[%s1 + $0x28] sm:$0xf]
      %v292 = vld [vmem:[%s1 + $0x2c] sm:$0xf]
      %v293 = vld [vmem:[%s1 + $0x30] sm:$0xf]
      %v294 = vld [vmem:[%s1 + $0x34] sm:$0xf]
      %v295 = vld [vmem:[%s1 + $0x38] sm:$0xf]
      %v296 = vld [vmem:[%s1 + $0x3c] sm:$0xf]
      %s297 = scalar_lea.vmem %s1, 64
      %v298 = vld [vmem:[%s297] sm:$0xf]
      %v299 = vld [vmem:[%s297 + $0x4] sm:$0xf]
      %v300 = vld [vmem:[%s297 + $0x8] sm:$0xf]
      %v301 = vld [vmem:[%s297 + $0xc] sm:$0xf]
      %v302 = vld [vmem:[%s297 + $0x10] sm:$0xf]
      %v303 = vld [vmem:[%s297 + $0x14] sm:$0xf]
      %v304 = vld [vmem:[%s297 + $0x18] sm:$0xf]
      %v305 = vld [vmem:[%s297 + $0x1c] sm:$0xf]
      %v306 = vld [vmem:[%s297 + $0x20] sm:$0xf]
      %v307 = vld [vmem:[%s297 + $0x24] sm:$0xf]
      %v308 = vld [vmem:[%s297 + $0x28] sm:$0xf]
      %v309 = vld [vmem:[%s297 + $0x2c] sm:$0xf]
      %v310 = vld [vmem:[%s297 + $0x30] sm:$0xf]
      %v311 = vld [vmem:[%s297 + $0x34] sm:$0xf]
      %v312 = vld [vmem:[%s297 + $0x38] sm:$0xf]
      %v313 = vld [vmem:[%s297 + $0x3c] sm:$0xf]
      %v317 = vunpack.c.l.b16 %v278
      %v318 = vunpack.c.l.b16 %v279
      %v319 = vunpack.c.l.b16 %v280
      %v320 = vpack.c.b16 %v318, %v317
      %v321 = vpack.c.b16 %v319, %v319
      %vm322 = vsmask.f32 7424
      %v324 = vshrl.u32 %v320, 16
      %v326 = vshll.u32 %v320, 16
      %v328 = vrot.slane %v326, 1
      %v329 = vor.u32 %v324, %v328
      %v331 = vshll.u32 %v321, 16
      %v333 = vrot.slane %v331, 1
      %v334 = vsel %vm322, %v329, %v333
      %v352 = vunpack.c.l.b16 %v298
      %v353 = vunpack.c.l.b16 %v299
      %v354 = vunpack.c.l.b16 %v300
      %v355 = vunpack.c.l.b16 %v301
      %v356 = vunpack.c.l.b16 %v302
      %v357 = vunpack.c.l.b16 %v303
      %v358 = vunpack.c.l.b16 %v304
      %v359 = vunpack.c.l.b16 %v305
      %v360 = vunpack.c.l.b16 %v306
      %v361 = vunpack.c.l.b16 %v307
      %v362 = vunpack.c.l.b16 %v308
      %v363 = vunpack.c.l.b16 %v309
      %v364 = vunpack.c.l.b16 %v310
      %v365 = vunpack.c.l.b16 %v311
      %v366 = vunpack.c.l.b16 %v312
      %v367 = vunpack.c.l.b16 %v313
      %v368 = vpack.c.b16 %v353, %v352
      %v369 = vpack.c.b16 %v355, %v354
      %v370 = vpack.c.b16 %v357, %v356
      %v371 = vpack.c.b16 %v359, %v358
      %v372 = vpack.c.b16 %v361, %v360
      %v373 = vpack.c.b16 %v363, %v362
      %v374 = vpack.c.b16 %v365, %v364
      %v375 = vpack.c.b16 %v367, %v366
      %384 = vmatprep.subr.bf16.mxu0 0
      %385 = vmatpush1.bf16.msra.mxu0 %v375
      %386 = vmatprep.subr.bf16.mxu0 0
      %387 = vmatpush1.bf16.msra.mxu0 %v374
      %388 = vmatprep.subr.bf16.mxu0 0
      %389 = vmatpush1.bf16.msra.mxu0 %v373
      %390 = vmatprep.subr.bf16.mxu0 0
      %391 = vmatpush1.bf16.msra.mxu0 %v372
      %392 = vmatprep.subr.bf16.mxu0 0
      %393 = vmatpush1.bf16.msra.mxu0 %v371
      %394 = vmatprep.subr.bf16.mxu0 0
      %395 = vmatpush1.bf16.msra.mxu0 %v370
      %396 = vmatprep.subr.bf16.mxu0 0
      %397 = vmatpush1.bf16.msra.mxu0 %v369
      %398 = vmatprep.subr.bf16.mxu0 0
      %399 = vmatpush1.bf16.msra.mxu0 %v368
      %400 = vmatprep.subr.bf16.mxu0 0
      %401 = vmatpush2.bf16.msra.mxu0 0
      %402 = vmatprep.subr.bf16.mxu0 0
      %403 = vmatpush2.bf16.msra.mxu0 0
      %404 = vmatprep.subr.bf16.mxu0 0
      %405 = vmatpush2.bf16.msra.mxu0 0
      %406 = vmatprep.subr.bf16.mxu0 0
      %407 = vmatpush2.bf16.msra.mxu0 0
      %408 = vmatprep.subr.bf16.mxu0 0
      %409 = vmatpush2.bf16.msra.mxu0 0
      %410 = vmatprep.subr.bf16.mxu0 0
      %411 = vmatpush2.bf16.msra.mxu0 0
      %412 = vmatprep.subr.bf16.mxu0 0
      %413 = vmatpush2.bf16.msra.mxu0 0
      %414 = vmatprep.subr.bf16.mxu0 0
      %415 = vmatpush2.bf16.msra.mxu0 0
      %416 = vmatprep.mubr.bf16.mxu0 0
      %417 = vmatmul.mubr.bf16.gmra.mxu0 %v334
      %v418 = vpop.f32.mrf.mxu0
      %v419 = vadd.f32 0.0, %v418
      %v420 = vpop.f32.mrf.mxu0
      %v421 = vpop.f32.mrf.mxu0
      %v422 = vadd.f32 0.0, %v421
      %v423 = vpop.f32.mrf.mxu0
      %424 = vdwg.mxu0
      %v442 = vunpack.c.l.b16 %v281
      %v443 = vunpack.c.l.b16 %v282
      %v444 = vunpack.c.l.b16 %v283
      %v445 = vunpack.c.l.b16 %v284
      %v446 = vunpack.c.l.b16 %v285
      %v447 = vunpack.c.l.b16 %v286
      %v448 = vunpack.c.l.b16 %v287
      %v449 = vunpack.c.l.b16 %v288
      %v450 = vunpack.c.l.b16 %v289
      %v451 = vunpack.c.l.b16 %v290
      %v452 = vunpack.c.l.b16 %v291
      %v453 = vunpack.c.l.b16 %v292
      %v454 = vunpack.c.l.b16 %v293
      %v455 = vunpack.c.l.b16 %v294
      %v456 = vunpack.c.l.b16 %v295
      %v457 = vunpack.c.l.b16 %v296
      %v458 = vpack.c.b16 %v443, %v442
      %v459 = vpack.c.b16 %v445, %v444
      %v460 = vpack.c.b16 %v447, %v446
      %v461 = vpack.c.b16 %v449, %v448
      %v462 = vpack.c.b16 %v451, %v450
      %v463 = vpack.c.b16 %v453, %v452
      %v464 = vpack.c.b16 %v455, %v454
      %v465 = vpack.c.b16 %v457, %v456
      %474 = vmatprep.subr.bf16.mxu0 0
      %475 = vmatpush1.bf16.msra.mxu0 %v465
      %476 = vmatprep.subr.bf16.mxu0 0
      %477 = vmatpush1.bf16.msra.mxu0 %v464
      %478 = vmatprep.subr.bf16.mxu0 0
      %479 = vmatpush1.bf16.msra.mxu0 %v463
      %480 = vmatprep.subr.bf16.mxu0 0
      %481 = vmatpush1.bf16.msra.mxu0 %v462
      %482 = vmatprep.subr.bf16.mxu0 0
      %483 = vmatpush1.bf16.msra.mxu0 %v461
      %484 = vmatprep.subr.bf16.mxu0 0
      %485 = vmatpush1.bf16.msra.mxu0 %v460
      %486 = vmatprep.subr.bf16.mxu0 0
      %487 = vmatpush1.bf16.msra.mxu0 %v459
      %488 = vmatprep.subr.bf16.mxu0 0
      %489 = vmatpush1.bf16.msra.mxu0 %v458
      %490 = vmatprep.subr.bf16.mxu0 0
      %491 = vmatpush2.bf16.msra.mxu0 0
      %492 = vmatprep.subr.bf16.mxu0 0
      %493 = vmatpush2.bf16.msra.mxu0 0
      %494 = vmatprep.subr.bf16.mxu0 0
      %495 = vmatpush2.bf16.msra.mxu0 0
      %496 = vmatprep.subr.bf16.mxu0 0
      %497 = vmatpush2.bf16.msra.mxu0 0
      %498 = vmatprep.subr.bf16.mxu0 0
      %499 = vmatpush2.bf16.msra.mxu0 0
      %500 = vmatprep.subr.bf16.mxu0 0
      %501 = vmatpush2.bf16.msra.mxu0 0
      %502 = vmatprep.subr.bf16.mxu0 0
      %503 = vmatpush2.bf16.msra.mxu0 0
      %504 = vmatprep.subr.bf16.mxu0 0
      %505 = vmatpush2.bf16.msra.mxu0 0
      %506 = vmatprep.mubr.bf16.mxu0 0
      %507 = vmatmul.mubr.bf16.gmra.mxu0 %v320
      %v508 = vpop.f32.mrf.mxu0
      %v509 = vadd.f32 %v419, %v508
      %v510 = vpop.f32.mrf.mxu0
      %v511 = vpop.f32.mrf.mxu0
      %v512 = vadd.f32 %v422, %v511
      %v513 = vpop.f32.mrf.mxu0
      %514 = vdwg.mxu0
      %s515 = scalar_lea.vmem %s1, 128
      %v516 = vld [vmem:[%s515] sm:$0xf]
      %v517 = vld [vmem:[%s515 + $0x4] sm:$0xf]
      %v518 = vld [vmem:[%s515 + $0x8] sm:$0xf]
      %v519 = vld [vmem:[%s515 + $0xc] sm:$0xf]
      %v520 = vld [vmem:[%s515 + $0x10] sm:$0xf]
      %v521 = vld [vmem:[%s515 + $0x14] sm:$0xf]
      %v522 = vld [vmem:[%s515 + $0x18] sm:$0xf]
      %v523 = vld [vmem:[%s515 + $0x1c] sm:$0xf]
      %v524 = vld [vmem:[%s515 + $0x20] sm:$0xf]
      %v525 = vld [vmem:[%s515 + $0x24] sm:$0xf]
      %v526 = vld [vmem:[%s515 + $0x28] sm:$0xf]
      %v527 = vld [vmem:[%s515 + $0x2c] sm:$0xf]
      %v528 = vld [vmem:[%s515 + $0x30] sm:$0xf]
      %v529 = vld [vmem:[%s515 + $0x34] sm:$0xf]
      %v530 = vld [vmem:[%s515 + $0x38] sm:$0xf]
      %v531 = vld [vmem:[%s515 + $0x3c] sm:$0xf]
      %vm532 = vcmask 1046528
      %v533 = vrot.slane %v320, 1
      %v534 = vrot.slane %v321, 1
      %v535 = vsel %vm532, %v533, %v534
      %v553 = vunpack.c.l.b16 %v516
      %v554 = vunpack.c.l.b16 %v517
      %v555 = vunpack.c.l.b16 %v518
      %v556 = vunpack.c.l.b16 %v519
      %v557 = vunpack.c.l.b16 %v520
      %v558 = vunpack.c.l.b16 %v521
      %v559 = vunpack.c.l.b16 %v522
      %v560 = vunpack.c.l.b16 %v523
      %v561 = vunpack.c.l.b16 %v524
      %v562 = vunpack.c.l.b16 %v525
      %v563 = vunpack.c.l.b16 %v526
      %v564 = vunpack.c.l.b16 %v527
      %v565 = vunpack.c.l.b16 %v528
      %v566 = vunpack.c.l.b16 %v529
      %v567 = vunpack.c.l.b16 %v530
      %v568 = vunpack.c.l.b16 %v531
      %v569 = vpack.c.b16 %v554, %v553
      %v570 = vpack.c.b16 %v556, %v555
      %v571 = vpack.c.b16 %v558, %v557
      %v572 = vpack.c.b16 %v560, %v559
      %v573 = vpack.c.b16 %v562, %v561
      %v574 = vpack.c.b16 %v564, %v563
      %v575 = vpack.c.b16 %v566, %v565
      %v576 = vpack.c.b16 %v568, %v567
      %585 = vmatprep.subr.bf16.mxu0 0
      %586 = vmatpush1.bf16.msra.mxu0 %v576
      %587 = vmatprep.subr.bf16.mxu0 0
      %588 = vmatpush1.bf16.msra.mxu0 %v575
      %589 = vmatprep.subr.bf16.mxu0 0
      %590 = vmatpush1.bf16.msra.mxu0 %v574
      %591 = vmatprep.subr.bf16.mxu0 0
      %592 = vmatpush1.bf16.msra.mxu0 %v573
      %593 = vmatprep.subr.bf16.mxu0 0
      %594 = vmatpush1.bf16.msra.mxu0 %v572
      %595 = vmatprep.subr.bf16.mxu0 0
      %596 = vmatpush1.bf16.msra.mxu0 %v571
      %597 = vmatprep.subr.bf16.mxu0 0
      %598 = vmatpush1.bf16.msra.mxu0 %v570
      %599 = vmatprep.subr.bf16.mxu0 0
      %600 = vmatpush1.bf16.msra.mxu0 %v569
      %601 = vmatprep.subr.bf16.mxu0 0
      %602 = vmatpush2.bf16.msra.mxu0 0
      %603 = vmatprep.subr.bf16.mxu0 0
      %604 = vmatpush2.bf16.msra.mxu0 0
      %605 = vmatprep.subr.bf16.mxu0 0
      %606 = vmatpush2.bf16.msra.mxu0 0
      %607 = vmatprep.subr.bf16.mxu0 0
      %608 = vmatpush2.bf16.msra.mxu0 0
      %609 = vmatprep.subr.bf16.mxu0 0
      %610 = vmatpush2.bf16.msra.mxu0 0
      %611 = vmatprep.subr.bf16.mxu0 0
      %612 = vmatpush2.bf16.msra.mxu0 0
      %613 = vmatprep.subr.bf16.mxu0 0
      %614 = vmatpush2.bf16.msra.mxu0 0
      %615 = vmatprep.subr.bf16.mxu0 0
      %616 = vmatpush2.bf16.msra.mxu0 0
      %617 = vmatprep.mubr.bf16.mxu0 0
      %618 = vmatmul.mubr.bf16.gmra.mxu0 %v535
      %v619 = vpop.f32.mrf.mxu0
      %v620 = vadd.f32 0.0, %v619
      %v621 = vpop.f32.mrf.mxu0
      %v622 = vpop.f32.mrf.mxu0
      %v623 = vadd.f32 0.0, %v622
      %v624 = vpop.f32.mrf.mxu0
      %625 = vdwg.mxu0
      %v626 = vadd.f32 %v509, %v620
      %v627 = vadd.f32 %v512, %v623
      %v628 = vld [vmem:[%s2] sm:$0x1]
      %v630 = vlaneseq
      %v631 = vshrl.u32 %v630, 7
      %v632 = vsub.s32 0, %v631
      %v633 = vrot.slane %v628, %v632
      %v635 = vadd.f32 %v626, %v633
      %v636 = vadd.f32 %v627, %v633
      %v637 = vmax.f32 %v635, 0.0
      %v638 = vmax.f32 %v636, 0.0
      %vm639 = vcmask 1040384
      %vm640 = vsmask.f32 256
      %vm641 = vmand %vm639, %vm640
      %v642 = vld [vmem:[#allocation2] sm:$0x1]
      %v643 = vsel %vm641, 0, %v642
      %644 = vst [vmem:[#allocation2] sm:$0x1] %v643
      %v645 = vpack.c.bf16 %v638, %v637
      %v647 = vunpack.c.l.b16 %v645
      %v648 = vunpack.c.h.b16 %v645
      %v649 = vpack.c.b16 %v647, %v647
      %v650 = vpack.c.b16 %v648, %v648
      %vm651 = vsmask.f32 4368
      %vm652 = vmor %vm640, %vm651
      %v654 = vshrl.u32 %v649, 16
      %v656 = vrot.slane %v654, 7
      %v657 = vshll.u32 %v649, 16
      %v659 = vor.u32 %v656, %v657
      %v660 = vrot.slane %v656, 4
      %v662 = vshrl.u32 %v650, 16
      %v664 = vrot.slane %v662, 7
      %v665 = vshll.u32 %v650, 16
      %v667 = vor.u32 %v664, %v665
      %v668 = vsel %vm652, %v660, %v667
      %v669 = vrot.slane %v664, 4
      %vm673 = vcmask 1043456
      %vm674 = vsmask.f32 7938
      %vm675 = vmand %vm673, %vm674
      %v676 = vld [vmem:[#allocation2] sm:$0xf]
      %v677 = vsel %vm675, %v659, %v676
      %678 = vst [vmem:[#allocation2] sm:$0xf] %v677
      %679 = vst [vmem:[#allocation2 + $0x4] sm:$0xf] %v668
      %v680 = vld [vmem:[#allocation2 + $0x8] sm:$0x1]
      %v681 = vsel %vm641, %v669, %v680
      %682 = vst [vmem:[#allocation2 + $0x8] sm:$0x1] %v681
      %vm683 = vmand %vm639, %vm674
      %v684 = vld [vmem:[#allocation2 + $0x8] sm:$0x1]
      %v685 = vsel %vm683, 0, %v684
      %686 = vst [vmem:[#allocation2 + $0x8] sm:$0x1] %v685
      %v687 = vld [vmem:[#allocation2] sm:$0xf]
      %v688 = vld [vmem:[#allocation2 + $0x4] sm:$0xf]
      %v689 = vld [vmem:[#allocation2 + $0x8] sm:$0x1]
      %v690 = vld [vmem:[%s3] sm:$0xf]
      %v691 = vld [vmem:[%s3 + $0x4] sm:$0xf]
      %v692 = vld [vmem:[%s3 + $0x8] sm:$0xf]
      %v693 = vld [vmem:[%s3 + $0xc] sm:$0xf]
      %v694 = vld [vmem:[%s3 + $0x10] sm:$0xf]
      %v695 = vld [vmem:[%s3 + $0x14] sm:$0xf]
      %v696 = vld [vmem:[%s3 + $0x18] sm:$0xf]
      %v697 = vld [vmem:[%s3 + $0x1c] sm:$0xf]
      %v698 = vld [vmem:[%s3 + $0x20] sm:$0xf]
      %v699 = vld [vmem:[%s3 + $0x24] sm:$0xf]
      %v700 = vld [vmem:[%s3 + $0x28] sm:$0xf]
      %v701 = vld [vmem:[%s3 + $0x2c] sm:$0xf]
      %v702 = vld [vmem:[%s3 + $0x30] sm:$0xf]
      %v703 = vld [vmem:[%s3 + $0x34] sm:$0xf]
      %v704 = vld [vmem:[%s3 + $0x38] sm:$0xf]
      %v705 = vld [vmem:[%s3 + $0x3c] sm:$0xf]
      %s706 = scalar_lea.vmem %s3, 64
      %v707 = vld [vmem:[%s706] sm:$0xf]
      %v708 = vld [vmem:[%s706 + $0x4] sm:$0xf]
      %v709 = vld [vmem:[%s706 + $0x8] sm:$0xf]
      %v710 = vld [vmem:[%s706 + $0xc] sm:$0xf]
      %v711 = vld [vmem:[%s706 + $0x10] sm:$0xf]
      %v712 = vld [vmem:[%s706 + $0x14] sm:$0xf]
      %v713 = vld [vmem:[%s706 + $0x18] sm:$0xf]
      %v714 = vld [vmem:[%s706 + $0x1c] sm:$0xf]
      %v715 = vld [vmem:[%s706 + $0x20] sm:$0xf]
      %v716 = vld [vmem:[%s706 + $0x24] sm:$0xf]
      %v717 = vld [vmem:[%s706 + $0x28] sm:$0xf]
      %v718 = vld [vmem:[%s706 + $0x2c] sm:$0xf]
      %v719 = vld [vmem:[%s706 + $0x30] sm:$0xf]
      %v720 = vld [vmem:[%s706 + $0x34] sm:$0xf]
      %v721 = vld [vmem:[%s706 + $0x38] sm:$0xf]
      %v722 = vld [vmem:[%s706 + $0x3c] sm:$0xf]
      %v726 = vunpack.c.l.b16 %v687
      %v727 = vunpack.c.l.b16 %v688
      %v728 = vunpack.c.l.b16 %v689
      %v729 = vpack.c.b16 %v727, %v726
      %v730 = vpack.c.b16 %v728, %v728
      %v732 = vshrl.u32 %v729, 16
      %v734 = vshll.u32 %v729, 16
      %v736 = vrot.slane %v734, 1
      %v737 = vor.u32 %v732, %v736
      %v739 = vshll.u32 %v730, 16
      %v741 = vrot.slane %v739, 1
      %v742 = vsel %vm322, %v737, %v741
      %v760 = vunpack.c.l.b16 %v707
      %v761 = vunpack.c.l.b16 %v708
      %v762 = vunpack.c.l.b16 %v709
      %v763 = vunpack.c.l.b16 %v710
      %v764 = vunpack.c.l.b16 %v711
      %v765 = vunpack.c.l.b16 %v712
      %v766 = vunpack.c.l.b16 %v713
      %v767 = vunpack.c.l.b16 %v714
      %v768 = vunpack.c.l.b16 %v715
      %v769 = vunpack.c.l.b16 %v716
      %v770 = vunpack.c.l.b16 %v717
      %v771 = vunpack.c.l.b16 %v718
      %v772 = vunpack.c.l.b16 %v719
      %v773 = vunpack.c.l.b16 %v720
      %v774 = vunpack.c.l.b16 %v721
      %v775 = vunpack.c.l.b16 %v722
      %v776 = vpack.c.b16 %v761, %v760
      %v777 = vpack.c.b16 %v763, %v762
      %v778 = vpack.c.b16 %v765, %v764
      %v779 = vpack.c.b16 %v767, %v766
      %v780 = vpack.c.b16 %v769, %v768
      %v781 = vpack.c.b16 %v771, %v770
      %v782 = vpack.c.b16 %v773, %v772
      %v783 = vpack.c.b16 %v775, %v774
      %792 = vmatprep.subr.bf16.mxu0 0
      %793 = vmatpush1.bf16.msra.mxu0 %v783
      %794 = vmatprep.subr.bf16.mxu0 0
      %795 = vmatpush1.bf16.msra.mxu0 %v782
      %796 = vmatprep.subr.bf16.mxu0 0
      %797 = vmatpush1.bf16.msra.mxu0 %v781
      %798 = vmatprep.subr.bf16.mxu0 0
      %799 = vmatpush1.bf16.msra.mxu0 %v780
      %800 = vmatprep.subr.bf16.mxu0 0
      %801 = vmatpush1.bf16.msra.mxu0 %v779
      %802 = vmatprep.subr.bf16.mxu0 0
      %803 = vmatpush1.bf16.msra.mxu0 %v778
      %804 = vmatprep.subr.bf16.mxu0 0
      %805 = vmatpush1.bf16.msra.mxu0 %v777
      %806 = vmatprep.subr.bf16.mxu0 0
      %807 = vmatpush1.bf16.msra.mxu0 %v776
      %808 = vmatprep.subr.bf16.mxu0 0
      %809 = vmatpush2.bf16.msra.mxu0 0
      %810 = vmatprep.subr.bf16.mxu0 0
      %811 = vmatpush2.bf16.msra.mxu0 0
      %812 = vmatprep.subr.bf16.mxu0 0
      %813 = vmatpush2.bf16.msra.mxu0 0
      %814 = vmatprep.subr.bf16.mxu0 0
      %815 = vmatpush2.bf16.msra.mxu0 0
      %816 = vmatprep.subr.bf16.mxu0 0
      %817 = vmatpush2.bf16.msra.mxu0 0
      %818 = vmatprep.subr.bf16.mxu0 0
      %819 = vmatpush2.bf16.msra.mxu0 0
      %820 = vmatprep.subr.bf16.mxu0 0
      %821 = vmatpush2.bf16.msra.mxu0 0
      %822 = vmatprep.subr.bf16.mxu0 0
      %823 = vmatpush2.bf16.msra.mxu0 0
      %824 = vmatprep.mubr.bf16.mxu0 0
      %825 = vmatmul.mubr.bf16.gmra.mxu0 %v742
      %v826 = vpop.f32.mrf.mxu0
      %v827 = vadd.f32 0.0, %v826
      %v828 = vpop.f32.mrf.mxu0
      %v829 = vpop.f32.mrf.mxu0
      %v830 = vadd.f32 0.0, %v829
      %v831 = vpop.f32.mrf.mxu0
      %832 = vdwg.mxu0
      %v850 = vunpack.c.l.b16 %v690
      %v851 = vunpack.c.l.b16 %v691
      %v852 = vunpack.c.l.b16 %v692
      %v853 = vunpack.c.l.b16 %v693
      %v854 = vunpack.c.l.b16 %v694
      %v855 = vunpack.c.l.b16 %v695
      %v856 = vunpack.c.l.b16 %v696
      %v857 = vunpack.c.l.b16 %v697
      %v858 = vunpack.c.l.b16 %v698
      %v859 = vunpack.c.l.b16 %v699
      %v860 = vunpack.c.l.b16 %v700
      %v861 = vunpack.c.l.b16 %v701
      %v862 = vunpack.c.l.b16 %v702
      %v863 = vunpack.c.l.b16 %v703
      %v864 = vunpack.c.l.b16 %v704
      %v865 = vunpack.c.l.b16 %v705
      %v866 = vpack.c.b16 %v851, %v850
      %v867 = vpack.c.b16 %v853, %v852
      %v868 = vpack.c.b16 %v855, %v854
      %v869 = vpack.c.b16 %v857, %v856
      %v870 = vpack.c.b16 %v859, %v858
      %v871 = vpack.c.b16 %v861, %v860
      %v872 = vpack.c.b16 %v863, %v862
      %v873 = vpack.c.b16 %v865, %v864
      %882 = vmatprep.subr.bf16.mxu0 0
      %883 = vmatpush1.bf16.msra.mxu0 %v873
      %884 = vmatprep.subr.bf16.mxu0 0
      %885 = vmatpush1.bf16.msra.mxu0 %v872
      %886 = vmatprep.subr.bf16.mxu0 0
      %887 = vmatpush1.bf16.msra.mxu0 %v871
      %888 = vmatprep.subr.bf16.mxu0 0
      %889 = vmatpush1.bf16.msra.mxu0 %v870
      %890 = vmatprep.subr.bf16.mxu0 0
      %891 = vmatpush1.bf16.msra.mxu0 %v869
      %892 = vmatprep.subr.bf16.mxu0 0
      %893 = vmatpush1.bf16.msra.mxu0 %v868
      %894 = vmatprep.subr.bf16.mxu0 0
      %895 = vmatpush1.bf16.msra.mxu0 %v867
      %896 = vmatprep.subr.bf16.mxu0 0
      %897 = vmatpush1.bf16.msra.mxu0 %v866
      %898 = vmatprep.subr.bf16.mxu0 0
      %899 = vmatpush2.bf16.msra.mxu0 0
      %900 = vmatprep.subr.bf16.mxu0 0
      %901 = vmatpush2.bf16.msra.mxu0 0
      %902 = vmatprep.subr.bf16.mxu0 0
      %903 = vmatpush2.bf16.msra.mxu0 0
      %904 = vmatprep.subr.bf16.mxu0 0
      %905 = vmatpush2.bf16.msra.mxu0 0
      %906 = vmatprep.subr.bf16.mxu0 0
      %907 = vmatpush2.bf16.msra.mxu0 0
      %908 = vmatprep.subr.bf16.mxu0 0
      %909 = vmatpush2.bf16.msra.mxu0 0
      %910 = vmatprep.subr.bf16.mxu0 0
      %911 = vmatpush2.bf16.msra.mxu0 0
      %912 = vmatprep.subr.bf16.mxu0 0
      %913 = vmatpush2.bf16.msra.mxu0 0
      %914 = vmatprep.mubr.bf16.mxu0 0
      %915 = vmatmul.mubr.bf16.gmra.mxu0 %v729
      %v916 = vpop.f32.mrf.mxu0
      %v917 = vadd.f32 %v827, %v916
      %v918 = vpop.f32.mrf.mxu0
      %v919 = vpop.f32.mrf.mxu0
      %v920 = vadd.f32 %v830, %v919
      %v921 = vpop.f32.mrf.mxu0
      %922 = vdwg.mxu0
      %s923 = scalar_lea.vmem %s3, 128
      %v924 = vld [vmem:[%s923] sm:$0xf]
      %v925 = vld [vmem:[%s923 + $0x4] sm:$0xf]
      %v926 = vld [vmem:[%s923 + $0x8] sm:$0xf]
      %v927 = vld [vmem:[%s923 + $0xc] sm:$0xf]
      %v928 = vld [vmem:[%s923 + $0x10] sm:$0xf]
      %v929 = vld [vmem:[%s923 + $0x14] sm:$0xf]
      %v930 = vld [vmem:[%s923 + $0x18] sm:$0xf]
      %v931 = vld [vmem:[%s923 + $0x1c] sm:$0xf]
      %v932 = vld [vmem:[%s923 + $0x20] sm:$0xf]
      %v933 = vld [vmem:[%s923 + $0x24] sm:$0xf]
      %v934 = vld [vmem:[%s923 + $0x28] sm:$0xf]
      %v935 = vld [vmem:[%s923 + $0x2c] sm:$0xf]
      %v936 = vld [vmem:[%s923 + $0x30] sm:$0xf]
      %v937 = vld [vmem:[%s923 + $0x34] sm:$0xf]
      %v938 = vld [vmem:[%s923 + $0x38] sm:$0xf]
      %v939 = vld [vmem:[%s923 + $0x3c] sm:$0xf]
      %v940 = vrot.slane %v729, 1
      %v941 = vrot.slane %v730, 1
      %v942 = vsel %vm532, %v940, %v941
      %v960 = vunpack.c.l.b16 %v924
      %v961 = vunpack.c.l.b16 %v925
      %v962 = vunpack.c.l.b16 %v926
      %v963 = vunpack.c.l.b16 %v927
      %v964 = vunpack.c.l.b16 %v928
      %v965 = vunpack.c.l.b16 %v929
      %v966 = vunpack.c.l.b16 %v930
      %v967 = vunpack.c.l.b16 %v931
      %v968 = vunpack.c.l.b16 %v932
      %v969 = vunpack.c.l.b16 %v933
      %v970 = vunpack.c.l.b16 %v934
      %v971 = vunpack.c.l.b16 %v935
      %v972 = vunpack.c.l.b16 %v936
      %v973 = vunpack.c.l.b16 %v937
      %v974 = vunpack.c.l.b16 %v938
      %v975 = vunpack.c.l.b16 %v939
      %v976 = vpack.c.b16 %v961, %v960
      %v977 = vpack.c.b16 %v963, %v962
      %v978 = vpack.c.b16 %v965, %v964
      %v979 = vpack.c.b16 %v967, %v966
      %v980 = vpack.c.b16 %v969, %v968
      %v981 = vpack.c.b16 %v971, %v970
      %v982 = vpack.c.b16 %v973, %v972
      %v983 = vpack.c.b16 %v975, %v974
      %992 = vmatprep.subr.bf16.mxu0 0
      %993 = vmatpush1.bf16.msra.mxu0 %v983
      %994 = vmatprep.subr.bf16.mxu0 0
      %995 = vmatpush1.bf16.msra.mxu0 %v982
      %996 = vmatprep.subr.bf16.mxu0 0
      %997 = vmatpush1.bf16.msra.mxu0 %v981
      %998 = vmatprep.subr.bf16.mxu0 0
      %999 = vmatpush1.bf16.msra.mxu0 %v980
      %1000 = vmatprep.subr.bf16.mxu0 0
      %1001 = vmatpush1.bf16.msra.mxu0 %v979
      %1002 = vmatprep.subr.bf16.mxu0 0
      %1003 = vmatpush1.bf16.msra.mxu0 %v978
      %1004 = vmatprep.subr.bf16.mxu0 0
      %1005 = vmatpush1.bf16.msra.mxu0 %v977
      %1006 = vmatprep.subr.bf16.mxu0 0
      %1007 = vmatpush1.bf16.msra.mxu0 %v976
      %1008 = vmatprep.subr.bf16.mxu0 0
      %1009 = vmatpush2.bf16.msra.mxu0 0
      %1010 = vmatprep.subr.bf16.mxu0 0
      %1011 = vmatpush2.bf16.msra.mxu0 0
      %1012 = vmatprep.subr.bf16.mxu0 0
      %1013 = vmatpush2.bf16.msra.mxu0 0
      %1014 = vmatprep.subr.bf16.mxu0 0
      %1015 = vmatpush2.bf16.msra.mxu0 0
      %1016 = vmatprep.subr.bf16.mxu0 0
      %1017 = vmatpush2.bf16.msra.mxu0 0
      %1018 = vmatprep.subr.bf16.mxu0 0
      %1019 = vmatpush2.bf16.msra.mxu0 0
      %1020 = vmatprep.subr.bf16.mxu0 0
      %1021 = vmatpush2.bf16.msra.mxu0 0
      %1022 = vmatprep.subr.bf16.mxu0 0
      %1023 = vmatpush2.bf16.msra.mxu0 0
      %1024 = vmatprep.mubr.bf16.mxu0 0
      %1025 = vmatmul.mubr.bf16.gmra.mxu0 %v942
      %v1026 = vpop.f32.mrf.mxu0
      %v1027 = vadd.f32 0.0, %v1026
      %v1028 = vpop.f32.mrf.mxu0
      %v1029 = vpop.f32.mrf.mxu0
      %v1030 = vadd.f32 0.0, %v1029
      %v1031 = vpop.f32.mrf.mxu0
      %1032 = vdwg.mxu0
      %v1033 = vadd.f32 %v917, %v1027
      %v1034 = vadd.f32 %v920, %v1030
      %v1035 = vld [vmem:[%s4] sm:$0x1]
      %v1037 = vlaneseq
      %v1038 = vshrl.u32 %v1037, 7
      %v1039 = vsub.s32 0, %v1038
      %v1040 = vrot.slane %v1035, %v1039
      %v1042 = vadd.f32 %v1033, %v1040
      %v1043 = vadd.f32 %v1034, %v1040
      %v1044 = vmax.f32 %v1042, 0.0
      %v1045 = vmax.f32 %v1043, 0.0
      %v1046 = vld [vmem:[%s5] sm:$0xf]
      %v1047 = vld [vmem:[%s5 + $0x4] sm:$0xf]
      %v1048 = vld [vmem:[%s5 + $0x8] sm:$0xf]
      %v1049 = vld [vmem:[%s5 + $0xc] sm:$0xf]
      %v1050 = vld [vmem:[%s5 + $0x10] sm:$0xf]
      %v1051 = vld [vmem:[%s5 + $0x14] sm:$0xf]
      %v1052 = vld [vmem:[%s5 + $0x18] sm:$0xf]
      %v1053 = vld [vmem:[%s5 + $0x1c] sm:$0xf]
      %v1054 = vld [vmem:[%s5 + $0x20] sm:$0xf]
      %v1055 = vld [vmem:[%s5 + $0x24] sm:$0xf]
      %v1056 = vld [vmem:[%s5 + $0x28] sm:$0xf]
      %v1057 = vld [vmem:[%s5 + $0x2c] sm:$0xf]
      %v1058 = vld [vmem:[%s5 + $0x30] sm:$0xf]
      %v1059 = vld [vmem:[%s5 + $0x34] sm:$0xf]
      %v1060 = vld [vmem:[%s5 + $0x38] sm:$0xf]
      %v1061 = vld [vmem:[%s5 + $0x3c] sm:$0xf]
      %v1062 = vld [vmem:[%s6] sm:$0x1]
      %v1064 = vlaneseq
      %v1065 = vshrl.u32 %v1064, 7
      %v1066 = vsub.s32 0, %v1065
      %v1067 = vrot.slane %v1062, %v1066
      %v1085 = vunpack.c.l.b16 %v1046
      %v1086 = vunpack.c.l.b16 %v1047
      %v1087 = vunpack.c.l.b16 %v1048
      %v1088 = vunpack.c.l.b16 %v1049
      %v1089 = vunpack.c.l.b16 %v1050
      %v1090 = vunpack.c.l.b16 %v1051
      %v1091 = vunpack.c.l.b16 %v1052
      %v1092 = vunpack.c.l.b16 %v1053
      %v1093 = vunpack.c.l.b16 %v1054
      %v1094 = vunpack.c.l.b16 %v1055
      %v1095 = vunpack.c.l.b16 %v1056
      %v1096 = vunpack.c.l.b16 %v1057
      %v1097 = vunpack.c.l.b16 %v1058
      %v1098 = vunpack.c.l.b16 %v1059
      %v1099 = vunpack.c.l.b16 %v1060
      %v1100 = vunpack.c.l.b16 %v1061
      %v1101 = vpack.c.b16 %v1086, %v1085
      %v1102 = vpack.c.b16 %v1088, %v1087
      %v1103 = vpack.c.b16 %v1090, %v1089
      %v1104 = vpack.c.b16 %v1092, %v1091
      %v1105 = vpack.c.b16 %v1094, %v1093
      %v1106 = vpack.c.b16 %v1096, %v1095
      %v1107 = vpack.c.b16 %v1098, %v1097
      %v1108 = vpack.c.b16 %v1100, %v1099
      %1117 = vmatprep.subr.bf16.mxu0 0
      %1118 = vmatpush1.bf16.msra.mxu0 %v1108
      %1119 = vmatprep.subr.bf16.mxu0 0
      %1120 = vmatpush1.bf16.msra.mxu0 %v1107
      %1121 = vmatprep.subr.bf16.mxu0 0
      %1122 = vmatpush1.bf16.msra.mxu0 %v1106
      %1123 = vmatprep.subr.bf16.mxu0 0
      %1124 = vmatpush1.bf16.msra.mxu0 %v1105
      %1125 = vmatprep.subr.bf16.mxu0 0
      %1126 = vmatpush1.bf16.msra.mxu0 %v1104
      %1127 = vmatprep.subr.bf16.mxu0 0
      %1128 = vmatpush1.bf16.msra.mxu0 %v1103
      %1129 = vmatprep.subr.bf16.mxu0 0
      %1130 = vmatpush1.bf16.msra.mxu0 %v1102
      %1131 = vmatprep.subr.bf16.mxu0 0
      %1132 = vmatpush1.bf16.msra.mxu0 %v1101
      %1133 = vmatprep.subr.bf16.mxu0 0
      %1134 = vmatpush2.bf16.msra.mxu0 0
      %1135 = vmatprep.subr.bf16.mxu0 0
      %1136 = vmatpush2.bf16.msra.mxu0 0
      %1137 = vmatprep.subr.bf16.mxu0 0
      %1138 = vmatpush2.bf16.msra.mxu0 0
      %1139 = vmatprep.subr.bf16.mxu0 0
      %1140 = vmatpush2.bf16.msra.mxu0 0
      %1141 = vmatprep.subr.bf16.mxu0 0
      %1142 = vmatpush2.bf16.msra.mxu0 0
      %1143 = vmatprep.subr.bf16.mxu0 0
      %1144 = vmatpush2.bf16.msra.mxu0 0
      %1145 = vmatprep.subr.bf16.mxu0 0
      %1146 = vmatpush2.bf16.msra.mxu0 0
      %1147 = vmatprep.subr.bf16.mxu0 0
      %1148 = vmatpush2.bf16.msra.mxu0 0
      %1149 = vmatprep.mubr.bf16.mxu0 0
      %1150 = vmatmul.mubr.bf16.gmra.mxu0 %v334
      %v1151 = vpop.f32.mrf.mxu0
      %v1152 = vadd.f32 %v1067, %v1151
      %v1153 = vpop.f32.mrf.mxu0
      %v1154 = vpop.f32.mrf.mxu0
      %v1155 = vadd.f32 %v1067, %v1154
      %v1156 = vpop.f32.mrf.mxu0
      %1157 = vdwg.mxu0
      %v1158 = vadd.f32 %v1044, %v1152
      %v1159 = vadd.f32 %v1045, %v1155
      %vm1160 = vcmask 1043456
      %v1161 = vsel %vm1160, %v1158, 0.0
      %v1162 = vrot.slane %v1161, 4
      %v1163 = vadd.f32 %v1161, %v1162
      %v1164 = vrot.slane %v1163, 2
      %v1165 = vadd.f32 %v1163, %v1164
      %v1166 = vrot.slane %v1165, 1
      %v1167 = vadd.f32 %v1165, %v1166
      %v1168 = vmul.f32 %v1167, 0.25
      %v1169 = vlaneseq
      %vm1170 = vcmp.ge.s32.totalorder %v1169, 0
      %vm1171 = vcmp.lt.s32.totalorder %v1169, 128
      %vm1172 = vmand %vm1170, %vm1171
      %1173 = vst.msk [vmem:[%s276] sm:$0x1] %vm1172, %v1168
      %v1175 = vrot.slane %v1158, 4
      %v1177 = vsel %vm1160, %v1175, 0.0
      %v1178 = vrot.slane %v1177, 4
      %v1179 = vadd.f32 %v1177, %v1178
      %v1180 = vrot.slane %v1179, 2
      %v1181 = vadd.f32 %v1179, %v1180
      %v1182 = vrot.slane %v1181, 1
      %v1183 = vadd.f32 %v1181, %v1182
      %v1184 = vmul.f32 %v1183, 0.25
      %1185 = vst.msk [vmem:[%s276 + $0x1] sm:$0x1] %vm1172, %v1184
      %v1186 = vsel %vm1160, %v1159, 0.0
      %v1187 = vrot.slane %v1186, 4
      %v1188 = vadd.f32 %v1186, %v1187
      %v1189 = vrot.slane %v1188, 2
      %v1190 = vadd.f32 %v1188, %v1189
      %v1191 = vrot.slane %v1190, 1
      %v1192 = vadd.f32 %v1190, %v1191
      %v1193 = vmul.f32 %v1192, 0.25
      %1194 = vst.msk [vmem:[%s276 + $0x2] sm:$0x1] %vm1172, %v1193
      %v1196 = vrot.slane %v1159, 4
      %v1198 = vsel %vm1160, %v1196, 0.0
      %v1199 = vrot.slane %v1198, 4
      %v1200 = vadd.f32 %v1198, %v1199
      %v1201 = vrot.slane %v1200, 2
      %v1202 = vadd.f32 %v1200, %v1201
      %v1203 = vrot.slane %v1202, 1
      %v1204 = vadd.f32 %v1202, %v1203
      %v1205 = vmul.f32 %v1204, 0.25
      %1206 = vst.msk [vmem:[%s276 + $0x3] sm:$0x1] %vm1172, %v1205
      %p1207 = scmp.lt.s32.totalorder %s18, 1
      %s1208 = scalar_select %p1207, %s18, 1
      %s1209 = smul.addr %s1208, 4
      %s1210 = scalar_lea.vmem %s7, %s1209
      // Predicated region
      $region49: #{bossnet_forward.6} parent=47 // pred_check
        %p1211 = pneg %p188
      $region50: #{bossnet_forward.6} parent=47 // pred_check_branch
        %1213 = sbr.rel (%p1211) target = $region52
      $region51: #{bossnet_forward.6} parent=47 // pred_region
        _
      $region52: #{bossnet_forward.6} parent=47 // pred_fallthru
        _
    $region48: #{bossnet_forward.6} parent=5 // pred_fallthru
      _
    %p1214 = scmp.le.s32.totalorder 2, %s13
    // Predicated region
    $region53: #{bossnet_forward.6} parent=5 // pred_check
      %p1215 = pneg %p1214
    $region54: #{bossnet_forward.6} parent=5 // pred_check_branch
      %1217 = sbr.rel (%p1215) target = $region56
    $region55: #{bossnet_forward.6} parent=5 // pred_region
      %s1218 = ssub.s32 %s13, 2
      // Predicated region
      $region57: #{bossnet_forward.6} parent=55 // pred_check
        %p1219 = pneg %p194
      $region58: #{bossnet_forward.6} parent=55 // pred_check_branch
        %1221 = sbr.rel (%p1219) target = $region60
      $region59: #{bossnet_forward.6} parent=55 // pred_region
        %p1222 = scmp.lt.s32.totalorder %s19, 1
        %s1223 = scalar_select %p1222, %s19, 1
        %s1224 = smul.addr %s1223, 4
        %s1225 = scalar_lea.vmem %s7, %s1224
      $region60: #{bossnet_forward.6} parent=55 // pred_fallthru
        _
    $region56: #{bossnet_forward.6} parent=5 // pred_fallthru
      _
  $region6: #{bossnet_forward.6} parent=0 // loop_footer
    %s17 = sadd.s32 1, %s13
  $region7: #{bossnet_forward.6} parent=0 // loop_footer_branch
    %12 = sbr.rel target = $region3
  $region8: #{bossnet_forward.6} parent=0 // loop_exit
    _

</llo_original>
